<compile_context>
chip_gen: v7x
topology: tpu7x:2x2x1
jax: 0.10.0
libtpu: 0.0.40
codegen_flags: <defaults>
</compile_context>

<pallas_src>
import functools
import numpy as np
import jax
import jax.numpy as jnp
from jax import lax
from jax.experimental import pallas as pl
from jax.experimental.pallas import tpu as pltpu

_VMEM_LIMIT = 48 * 1024 * 1024   # below v7x's 64 MiB physical VMEM; fine on v5e/v6e.


def _pick_tile(dim, target, align):
    """Largest tile <= target that divides dim and respects TPU (8,128) alignment."""
    if dim <= target:
        return dim
    t = (target // align) * align
    while t >= align:
        if dim % t == 0:
            return t
        t -= align
    return dim


def _pick_rows_tile(M, target=256):
    tm = _pick_tile(M, target, 8)
    # v7x: prefer >= 2 blocks on the (parallel) row axis so both TensorCores work.
    if tm == M and M >= 16 and (M // 2) % 8 == 0:
        tm = M // 2
    return tm


# ----------------------------- fused decoder layer -----------------------------

def _decoder_layer_kernel(
        x_ref, enc_ref, mask_ref,
        wqkv_ref, wfc1_ref, ln1g_ref, ln1b_ref,
        wq2_ref, wkv2_ref, wfc2_ref, ln2g_ref, ln2b_ref,
        w1_ref, bias1_ref, w2_ref, bias2_ref, ln3g_ref, ln3b_ref,
        o_ref, att_ref,
        *, n_head, d_k, d_v, scale, eps):
    """One full decoder layer for a single batch element.

    x_ref:   (L, D)   bf16  decoder state
    enc_ref: (Ls, D)  bf16  encoder output (== src_seq)
    mask_ref:(L, L)   f32   {0,1} self-attention mask
    o_ref:   (L, D)   bf16  new decoder state
    att_ref: (H, L, Ls) f32 cross-attention probabilities (returned as enc_att)
    """
    f32, bf16 = jnp.float32, jnp.bfloat16
    hk = n_head * d_k

    def layer_norm(y, g_ref, b_ref):
        mu = jnp.mean(y, axis=-1, keepdims=True)
        var = jnp.mean(jnp.square(y - mu), axis=-1, keepdims=True)
        return (y - mu) * lax.rsqrt(var + eps) * g_ref[...] + b_ref[...]

    def mha(q_proj, kv_proj, mask, att_out_ref):
        # q_proj: (Lq, H*dk) f32; kv_proj: (Lk, H*dk + H*dv) f32
        outs = []
        for h in range(n_head):
            q = (q_proj[:, h * d_k:(h + 1) * d_k] * scale).astype(bf16)
            k = kv_proj[:, h * d_k:(h + 1) * d_k].astype(bf16)
            v = kv_proj[:, hk + h * d_v: hk + (h + 1) * d_v].astype(bf16)
            s = lax.dot_general(q, k, (((1,), (1,)), ((), ())),
                                preferred_element_type=f32)          # (Lq, Lk)
            if mask is not None:
                s = jnp.where(mask > 0, s, -1e9)
            s = s - jnp.max(s, axis=-1, keepdims=True)
            e = jnp.exp(s)
            p = e / jnp.sum(e, axis=-1, keepdims=True)                # exact softmax
            if att_out_ref is not None:
                att_out_ref[h, :, :] = p.astype(att_out_ref.dtype)
            outs.append(jnp.dot(p.astype(bf16), v, preferred_element_type=f32))
        return jnp.concatenate(outs, axis=-1).astype(bf16)            # (Lq, H*dv)

    x = x_ref[...]                                                    # (L, D) bf16
    mask = mask_ref[...]                                              # (L, L) f32

    # ---- masked self-attention sublayer (Q/K/V fused into one matmul) ----
    qkv = jnp.dot(x, wqkv_ref[...], preferred_element_type=f32)       # (L, 2*hk+hv)
    o = mha(qkv[:, :hk], qkv[:, hk:], mask, None)
    y = jnp.dot(o, wfc1_ref[...], preferred_element_type=f32) + x.astype(f32)
    x1 = layer_norm(y, ln1g_ref, ln1b_ref)                            # (L, D) f32

    # ---- encoder-decoder attention sublayer (src_mask is None) ----
    enc = enc_ref[...]                                                # (Ls, D) bf16
    q2 = jnp.dot(x1.astype(bf16), wq2_ref[...], preferred_element_type=f32)
    kv2 = jnp.dot(enc, wkv2_ref[...], preferred_element_type=f32)
    o = mha(q2, kv2, None, att_ref)
    y = jnp.dot(o, wfc2_ref[...], preferred_element_type=f32) + x1
    x2 = layer_norm(y, ln2g_ref, ln2b_ref)                            # (L, D) f32

    # ---- position-wise FFN sublayer ----
    h1 = jnp.dot(x2.astype(bf16), w1_ref[...], preferred_element_type=f32)
    h1 = jnp.maximum(h1 + bias1_ref[...], 0.0).astype(bf16)           # (L, d_inner)
    y = jnp.dot(h1, w2_ref[...], preferred_element_type=f32) + bias2_ref[...] + x2
    x3 = layer_norm(y, ln3g_ref, ln3b_ref)

    o_ref[...] = x3.astype(o_ref.dtype)


def decoder_layer(x, enc, mask, p, *, n_head, d_k, d_v, eps=1e-6):
    """x: (B, L, D) bf16; enc: (B, Ls, D) bf16; mask: (B, L, L) f32."""
    B, L, D = x.shape
    Ls = enc.shape[1]
    d_inner = p['w1'].shape[1]
    scale = float(d_k) ** -0.5
    const2 = lambda b: (0, 0)

    kernel = functools.partial(_decoder_layer_kernel, n_head=n_head, d_k=d_k,
                               d_v=d_v, scale=scale, eps=eps)
    out, attn = pl.pallas_call(
        kernel,
        out_shape=(jax.ShapeDtypeStruct((B, L, D), jnp.bfloat16),
                   jax.ShapeDtypeStruct((B, n_head, L, Ls), jnp.float32)),
        grid=(B,),
        in_specs=[
            pl.BlockSpec((None, L, D), lambda b: (b, 0, 0)),     # x
            pl.BlockSpec((None, Ls, D), lambda b: (b, 0, 0)),    # enc
            pl.BlockSpec((None, L, L), lambda b: (b, 0, 0)),     # mask
            pl.BlockSpec(p['w_qkv'].shape, const2),              # weights: resident
            pl.BlockSpec(p['w_fc1'].shape, const2),
            pl.BlockSpec((1, D), const2),
            pl.BlockSpec((1, D), const2),
            pl.BlockSpec(p['w_q2'].shape, const2),
            pl.BlockSpec(p['w_kv2'].shape, const2),
            pl.BlockSpec(p['w_fc2'].shape, const2),
            pl.BlockSpec((1, D), const2),
            pl.BlockSpec((1, D), const2),
            pl.BlockSpec(p['w1'].shape, const2),
            pl.BlockSpec((1, d_inner), const2),
            pl.BlockSpec(p['w2'].shape, const2),
            pl.BlockSpec((1, D), const2),
            pl.BlockSpec((1, D), const2),
            pl.BlockSpec((1, D), const2),
        ],
        out_specs=(pl.BlockSpec((None, L, D), lambda b: (b, 0, 0)),
                   pl.BlockSpec((None, n_head, L, Ls), lambda b: (b, 0, 0, 0))),
        compiler_params=pltpu.CompilerParams(
            dimension_semantics=("parallel",), vmem_limit_bytes=_VMEM_LIMIT),
    )(x, enc, mask,
      p['w_qkv'], p['w_fc1'], p['ln1_g'], p['ln1_b'],
      p['w_q2'], p['w_kv2'], p['w_fc2'], p['ln2_g'], p['ln2_b'],
      p['w1'], p['b1'], p['w2'], p['b2'], p['ln3_g'], p['ln3_b'])
    return out, attn


# ----------------------------- embedding prep: pos-add + LayerNorm -----------------------------

def _embed_ln_kernel(e_ref, pos_ref, g_ref, b_ref, o_ref, *, eps):
    y = e_ref[...] + pos_ref[...]
    mu = jnp.mean(y, axis=-1, keepdims=True)
    var = jnp.mean(jnp.square(y - mu), axis=-1, keepdims=True)
    o_ref[...] = ((y - mu) * lax.rsqrt(var + eps) * g_ref[...]
                  + b_ref[...]).astype(o_ref.dtype)


def embed_layernorm(e, pos, g, b, eps=1e-6):
    """e: (B, L, D) f32 (embedding gather); pos: (L, D) f32 -> (B, L, D) bf16."""
    B, L, D = e.shape
    return pl.pallas_call(
        functools.partial(_embed_ln_kernel, eps=eps),
        out_shape=jax.ShapeDtypeStruct((B, L, D), jnp.bfloat16),
        grid=(B,),
        in_specs=[pl.BlockSpec((None, L, D), lambda bb: (bb, 0, 0)),
                  pl.BlockSpec((L, D), lambda bb: (0, 0)),
                  pl.BlockSpec((1, D), lambda bb: (0, 0)),
                  pl.BlockSpec((1, D), lambda bb: (0, 0))],
        out_specs=pl.BlockSpec((None, L, D), lambda bb: (bb, 0, 0)),
        compiler_params=pltpu.CompilerParams(
            dimension_semantics=("parallel",), vmem_limit_bytes=_VMEM_LIMIT),
    )(e, pos, g, b)


# ----------------------------- shared-weight projection + softmax -----------------------------

def _proj_softmax_kernel(x_ref, et_ref, o_ref, *, scale):
    logits = jnp.dot(x_ref[...], et_ref[...],
                     preferred_element_type=jnp.float32) * scale
    mx = jnp.max(logits, axis=-1, keepdims=True)
    ex = jnp.exp(logits - mx)
    o_ref[...] = (ex / jnp.sum(ex, axis=-1, keepdims=True)).astype(o_ref.dtype)


def shared_proj_softmax(x2d, emb_t_bf16, scale):
    """x2d: (M, D) bf16; emb_t_bf16: (D, V) bf16 (pre-transposed at init)."""
    M, D = x2d.shape
    V = emb_t_bf16.shape[1]
    tm = _pick_rows_tile(M)
    return pl.pallas_call(
        functools.partial(_proj_softmax_kernel, scale=scale),
        out_shape=jax.ShapeDtypeStruct((M, V), jnp.float32),
        grid=(M // tm,),
        in_specs=[pl.BlockSpec((tm, D), lambda i: (i, 0)),
                  pl.BlockSpec((D, V), lambda i: (0, 0))],
        out_specs=pl.BlockSpec((tm, V), lambda i: (i, 0)),
        compiler_params=pltpu.CompilerParams(
            dimension_semantics=("parallel",), vmem_limit_bytes=_VMEM_LIMIT),
    )(x2d, emb_t_bf16)


# ----------------------------- model glue (plain JAX) -----------------------------

def get_pad_mask(seq, pad_idx):
    return (seq != pad_idx)[:, None, :]                       # (B, 1, L)


def get_subsequent_mask(len_s):
    return jnp.tril(jnp.ones((1, len_s, len_s), jnp.bool_))   # 1 - triu(ones, diag=1)


def sinusoid_table(n_position, d_hid):
    pos = np.arange(n_position, dtype=np.float64)[:, None]
    hid = np.arange(d_hid)
    angle = pos / np.power(10000.0, 2 * (hid // 2) / d_hid)
    table = np.zeros_like(angle)
    table[:, 0::2] = np.sin(angle[:, 0::2])
    table[:, 1::2] = np.cos(angle[:, 1::2])
    return jnp.asarray(table, jnp.float32)                    # (n_position, d_hid)


def transformer_forward(params, src_seq, trg_seq, label, *, pad_idx, n_head, d_k, d_v):
    """Mirrors Transformer.forward with linear_type='normal' (encoder bypassed)."""
    del label  # unused in the 'normal' projection path
    B, L = trg_seq.shape
    D = params['emb'].shape[1]
    trg_mask = get_pad_mask(trg_seq, pad_idx) & get_subsequent_mask(L)   # (B, L, L)
    mask_f = trg_mask.astype(jnp.float32)       # shared per batch, never broadcast to B*H

    enc_bf16 = src_seq.astype(jnp.bfloat16)     # enc_output = src_seq, bf16 operand

    # Decoder input: embedding gather (XLA) then pos-add + LayerNorm in one kernel.
    emb_rows = params['emb'][trg_seq]                                    # (B, L, D)
    dec = embed_layernorm(emb_rows, params['pos_table'][:L],
                          params['dec_ln_g'], params['dec_ln_b'])        # bf16

    enc_atts = []
    for lp in params['layers']:
        dec, ca = decoder_layer(dec, enc_bf16, mask_f, lp,
                                n_head=n_head, d_k=d_k, d_v=d_v)
        enc_atts.append(ca)

    # Shared-weight projection * d_model**-0.5 + exact softmax, fused in one kernel.
    probs = shared_proj_softmax(dec.reshape(B * L, D), params['emb_t_bf16'],
                                float(D) ** -0.5).reshape(B, L, -1)

    return {'pred_prob_tfm': probs, 'enc_att': enc_atts,
            'dec_out': dec.astype(jnp.float32), 'env_att': None}


# ----------------------------- deterministic param init -----------------------------

def init_params(key, *, n_trg_vocab, d_model, d_inner, n_layers, n_head, d_k, d_v,
                n_position=200):
    keys = iter(jax.random.split(key, 2 + n_layers * 10))

    def xavier(shape):
        limit = float(np.sqrt(6.0 / (shape[0] + shape[1])))
        return jax.random.uniform(next(keys), shape, jnp.float32, -limit, limit)

    def ones(): return jnp.ones((1, d_model), jnp.float32)
    def zeros(n=None): return jnp.zeros((1, n or d_model), jnp.float32)

    def layer_params():
        w_qs = xavier((d_model, n_head * d_k))
        w_ks = xavier((d_model, n_head * d_k))
        w_vs = xavier((d_model, n_head * d_v))
        w_fc1 = xavier((n_head * d_v, d_model))
        w_q2 = xavier((d_model, n_head * d_k))
        w_k2 = xavier((d_model, n_head * d_k))
        w_v2 = xavier((d_model, n_head * d_v))
        w_fc2 = xavier((n_head * d_v, d_model))
        w1 = xavier((d_model, d_inner))
        w2 = xavier((d_inner, d_model))
        return dict(
            w_qkv=jnp.concatenate([w_qs, w_ks, w_vs], 1).astype(jnp.bfloat16),
            w_fc1=w_fc1.astype(jnp.bfloat16),
            ln1_g=ones(), ln1_b=zeros(),
            w_q2=w_q2.astype(jnp.bfloat16),
            w_kv2=jnp.concatenate([w_k2, w_v2], 1).astype(jnp.bfloat16),
            w_fc2=w_fc2.astype(jnp.bfloat16),
            ln2_g=ones(), ln2_b=zeros(),
            w1=w1.astype(jnp.bfloat16), b1=zeros(d_inner),
            w2=w2.astype(jnp.bfloat16), b2=zeros(),
            ln3_g=ones(), ln3_b=zeros(),
        )

    layers = [layer_params() for _ in range(n_layers)]
    emb = xavier((n_trg_vocab, d_model))
    return dict(
        emb=emb,                                       # f32 master (embedding gather)
        emb_t_bf16=emb.T.astype(jnp.bfloat16),         # (D, V) pre-transposed operand
        dec_ln_g=jnp.ones((1, d_model), jnp.float32),
        dec_ln_b=jnp.zeros((1, d_model), jnp.float32),
        pos_table=sinusoid_table(n_position, d_model),
        layers=layers,
    )


# ----------------------------- main -----------------------------

if __name__ == "__main__":
    # Small config consistent with the module's __init__
    B, L_TRG, L_SRC = 2, 8, 8
    D_MODEL = 32          # net_conf['transformer']['num_channels']
    N_VOCAB = 16          # net_conf['transformer']['num_classes']
    PAD_IDX = 0           # net_conf['transformer']['pad_idx']
    N_LAYERS = 2          # num_layers
    N_HEAD = 2            # num_heads
    D_K = D_V = 64        # hardcoded in Transformer.__init__
    D_INNER = 2048        # hardcoded in Transformer.__init__

    key = jax.random.PRNGKey(0)
    kp, ks, kt = jax.random.split(key, 3)
    params = init_params(kp, n_trg_vocab=N_VOCAB, d_model=D_MODEL, d_inner=D_INNER,
                         n_layers=N_LAYERS, n_head=N_HEAD, d_k=D_K, d_v=D_V)

    # src_seq plays the role of enc_output directly (B, L_src, d_model), float.
    src_seq = jax.random.normal(ks, (B, L_SRC, D_MODEL), jnp.float32)
    trg_seq = jax.random.randint(kt, (B, L_TRG), 0, N_VOCAB).astype(jnp.int32)
    label = trg_seq  # unused for linear_type='normal'

    fwd = jax.jit(functools.partial(transformer_forward, pad_idx=PAD_IDX,
                                    n_head=N_HEAD, d_k=D_K, d_v=D_V))
    out = fwd(params, src_seq, trg_seq, label)
    jax.block_until_ready(out['pred_prob_tfm'])
    jax.block_until_ready(out['dec_out'])
    jax.block_until_ready(out['enc_att'][0])

    assert out['pred_prob_tfm'].shape == (B, L_TRG, N_VOCAB)
    assert out['dec_out'].shape == (B, L_TRG, D_MODEL)
    assert len(out['enc_att']) == N_LAYERS
    assert out['enc_att'][0].shape == (B, N_HEAD, L_TRG, L_SRC)
    np.testing.assert_allclose(
        np.asarray(out['pred_prob_tfm']).sum(-1), 1.0, rtol=1e-3, atol=1e-3)
    print("KERNEL_OK")
</pallas_src>

<mosaic_0001>
module attributes {stable_mosaic.version = 11 : i64} {
  func.func @_decoder_layer_kernel(%arg0: i32, %arg1: memref<1x8x32xbf16, #tpu.memory_space<vmem>>, %arg2: memref<1x8x32xbf16, #tpu.memory_space<vmem>>, %arg3: memref<1x8x8xf32, #tpu.memory_space<vmem>>, %arg4: memref<32x384xbf16, #tpu.memory_space<vmem>>, %arg5: memref<128x32xbf16, #tpu.memory_space<vmem>>, %arg6: memref<1x32xf32, #tpu.memory_space<vmem>>, %arg7: memref<1x32xf32, #tpu.memory_space<vmem>>, %arg8: memref<32x128xbf16, #tpu.memory_space<vmem>>, %arg9: memref<32x256xbf16, #tpu.memory_space<vmem>>, %arg10: memref<128x32xbf16, #tpu.memory_space<vmem>>, %arg11: memref<1x32xf32, #tpu.memory_space<vmem>>, %arg12: memref<1x32xf32, #tpu.memory_space<vmem>>, %arg13: memref<32x2048xbf16, #tpu.memory_space<vmem>>, %arg14: memref<1x2048xf32, #tpu.memory_space<vmem>>, %arg15: memref<2048x32xbf16, #tpu.memory_space<vmem>>, %arg16: memref<1x32xf32, #tpu.memory_space<vmem>>, %arg17: memref<1x32xf32, #tpu.memory_space<vmem>>, %arg18: memref<1x32xf32, #tpu.memory_space<vmem>>, %arg19: memref<1x8x32xbf16, #tpu.memory_space<vmem>>, %arg20: memref<1x2x8x8xf32, #tpu.memory_space<vmem>>) attributes {dimension_semantics = [#tpu.dimension_semantics<parallel>], iteration_bounds = array<i64: 2>, scalar_prefetch = 0 : i64, scratch_operands = 0 : i64, tpu.core_type = #tpu.core_type<tc>, window_params = [{transform_indices = @transform_0, window_bounds = array<i64: 1, 8, 32>}, {transform_indices = @transform_1, window_bounds = array<i64: 1, 8, 32>}, {transform_indices = @transform_2, window_bounds = array<i64: 1, 8, 8>}, {pipeline_mode = #tpu.pipeline_mode<synchronous>, transform_indices = @transform_3, window_bounds = array<i64: 32, 384>}, {pipeline_mode = #tpu.pipeline_mode<synchronous>, transform_indices = @transform_4, window_bounds = array<i64: 128, 32>}, {pipeline_mode = #tpu.pipeline_mode<synchronous>, transform_indices = @transform_5, window_bounds = array<i64: 1, 32>}, {pipeline_mode = #tpu.pipeline_mode<synchronous>, transform_indices = @transform_6, window_bounds = array<i64: 1, 32>}, {pipeline_mode = #tpu.pipeline_mode<synchronous>, transform_indices = @transform_7, window_bounds = array<i64: 32, 128>}, {pipeline_mode = #tpu.pipeline_mode<synchronous>, transform_indices = @transform_8, window_bounds = array<i64: 32, 256>}, {pipeline_mode = #tpu.pipeline_mode<synchronous>, transform_indices = @transform_9, window_bounds = array<i64: 128, 32>}, {pipeline_mode = #tpu.pipeline_mode<synchronous>, transform_indices = @transform_10, window_bounds = array<i64: 1, 32>}, {pipeline_mode = #tpu.pipeline_mode<synchronous>, transform_indices = @transform_11, window_bounds = array<i64: 1, 32>}, {pipeline_mode = #tpu.pipeline_mode<synchronous>, transform_indices = @transform_12, window_bounds = array<i64: 32, 2048>}, {pipeline_mode = #tpu.pipeline_mode<synchronous>, transform_indices = @transform_13, window_bounds = array<i64: 1, 2048>}, {pipeline_mode = #tpu.pipeline_mode<synchronous>, transform_indices = @transform_14, window_bounds = array<i64: 2048, 32>}, {pipeline_mode = #tpu.pipeline_mode<synchronous>, transform_indices = @transform_15, window_bounds = array<i64: 1, 32>}, {pipeline_mode = #tpu.pipeline_mode<synchronous>, transform_indices = @transform_16, window_bounds = array<i64: 1, 32>}, {pipeline_mode = #tpu.pipeline_mode<synchronous>, transform_indices = @transform_17, window_bounds = array<i64: 1, 32>}, {transform_indices = @transform_18, window_bounds = array<i64: 1, 8, 32>}, {transform_indices = @transform_19, window_bounds = array<i64: 1, 2, 8, 8>}]} {
    %c0 = arith.constant 0 : index
    %c0_0 = arith.constant 0 : index
    %c0_1 = arith.constant 0 : index
    %0 = vector.load %arg1[%c0, %c0_0, %c0_1] : memref<1x8x32xbf16, #tpu.memory_space<vmem>>, vector<1x8x32xbf16>
    %1 = vector.shape_cast %0 : vector<1x8x32xbf16> to vector<8x32xbf16>
    %c0_2 = arith.constant 0 : index
    %c0_3 = arith.constant 0 : index
    %c0_4 = arith.constant 0 : index
    %2 = vector.load %arg3[%c0_2, %c0_3, %c0_4] : memref<1x8x8xf32, #tpu.memory_space<vmem>>, vector<1x8x8xf32>
    %3 = vector.shape_cast %2 : vector<1x8x8xf32> to vector<8x8xf32>
    %c0_5 = arith.constant 0 : index
    %c0_6 = arith.constant 0 : index
    %4 = vector.load %arg4[%c0_5, %c0_6] : memref<32x384xbf16, #tpu.memory_space<vmem>>, vector<32x384xbf16>
    %cst = arith.constant dense<0.000000e+00> : vector<8x384xf32>
    %5 = tpu.matmul %1, %4, %cst {dimension_numbers = #tpu.dot_dimension_numbers<[1], [0], [0], [1], [0, 0, 1, 1], [], []>} : vector<8x32xbf16>, vector<32x384xbf16>, vector<8x384xf32> -> vector<8x384xf32>
    %6 = vector.extract_strided_slice %5 {offsets = [0, 0], sizes = [8, 128], strides = [1, 1]} : vector<8x384xf32> to vector<8x128xf32>
    %7 = vector.extract_strided_slice %5 {offsets = [0, 128], sizes = [8, 256], strides = [1, 1]} : vector<8x384xf32> to vector<8x256xf32>
    %8 = vector.extract_strided_slice %6 {offsets = [0, 0], sizes = [8, 64], strides = [1, 1]} : vector<8x128xf32> to vector<8x64xf32>
    %cst_7 = arith.constant 1.250000e-01 : f32
    %9 = vector.broadcast %cst_7 : f32 to vector<8x64xf32>
    %10 = arith.mulf %8, %9 : vector<8x64xf32>
    %11 = arith.truncf %10 : vector<8x64xf32> to vector<8x64xbf16>
    %12 = vector.extract_strided_slice %7 {offsets = [0, 0], sizes = [8, 64], strides = [1, 1]} : vector<8x256xf32> to vector<8x64xf32>
    %13 = arith.truncf %12 : vector<8x64xf32> to vector<8x64xbf16>
    %14 = vector.extract_strided_slice %7 {offsets = [0, 128], sizes = [8, 64], strides = [1, 1]} : vector<8x256xf32> to vector<8x64xf32>
    %15 = arith.truncf %14 : vector<8x64xf32> to vector<8x64xbf16>
    %cst_8 = arith.constant dense<0.000000e+00> : vector<8x8xf32>
    %16 = tpu.matmul %11, %13, %cst_8 {dimension_numbers = #tpu.dot_dimension_numbers<[1], [1], [0], [0], [0, 0, 1, 0], [], []>} : vector<8x64xbf16>, vector<8x64xbf16>, vector<8x8xf32> -> vector<8x8xf32>
    %cst_9 = arith.constant 0.000000e+00 : f32
    %17 = vector.broadcast %cst_9 : f32 to vector<8x8xf32>
    %18 = arith.cmpf ogt, %3, %17 : vector<8x8xf32>
    %cst_10 = arith.constant -1.000000e+09 : f32
    %19 = vector.broadcast %cst_10 : f32 to vector<8x8xf32>
    %20 = arith.select %18, %16, %19 : vector<8x8xi1>, vector<8x8xf32>
    %cst_11 = arith.constant dense<0xFF800000> : vector<8xf32>
    %21 = vector.multi_reduction <maximumf>, %20, %cst_11 [1] : vector<8x8xf32> to vector<8xf32>
    %22 = vector.shape_cast %21 : vector<8xf32> to vector<8x1xf32>
    %23 = vector.broadcast %22 : vector<8x1xf32> to vector<8x8xf32>
    %24 = arith.subf %20, %23 : vector<8x8xf32>
    %25 = math.exp %24 : vector<8x8xf32>
    %cst_12 = arith.constant dense<0.000000e+00> : vector<8xf32>
    %26 = vector.multi_reduction <add>, %25, %cst_12 [1] : vector<8x8xf32> to vector<8xf32>
    %27 = vector.shape_cast %26 : vector<8xf32> to vector<8x1xf32>
    %28 = vector.broadcast %27 : vector<8x1xf32> to vector<8x8xf32>
    %29 = arith.divf %25, %28 : vector<8x8xf32>
    %30 = arith.truncf %29 : vector<8x8xf32> to vector<8x8xbf16>
    %cst_13 = arith.constant dense<0.000000e+00> : vector<8x64xf32>
    %31 = tpu.matmul %30, %15, %cst_13 {dimension_numbers = #tpu.dot_dimension_numbers<[1], [0], [0], [1], [0, 0, 1, 1], [], []>} : vector<8x8xbf16>, vector<8x64xbf16>, vector<8x64xf32> -> vector<8x64xf32>
    %32 = vector.extract_strided_slice %6 {offsets = [0, 64], sizes = [8, 64], strides = [1, 1]} : vector<8x128xf32> to vector<8x64xf32>
    %cst_14 = arith.constant 1.250000e-01 : f32
    %33 = vector.broadcast %cst_14 : f32 to vector<8x64xf32>
    %34 = arith.mulf %32, %33 : vector<8x64xf32>
    %35 = arith.truncf %34 : vector<8x64xf32> to vector<8x64xbf16>
    %36 = vector.extract_strided_slice %7 {offsets = [0, 64], sizes = [8, 64], strides = [1, 1]} : vector<8x256xf32> to vector<8x64xf32>
    %37 = arith.truncf %36 : vector<8x64xf32> to vector<8x64xbf16>
    %38 = vector.extract_strided_slice %7 {offsets = [0, 192], sizes = [8, 64], strides = [1, 1]} : vector<8x256xf32> to vector<8x64xf32>
    %39 = arith.truncf %38 : vector<8x64xf32> to vector<8x64xbf16>
    %cst_15 = arith.constant dense<0.000000e+00> : vector<8x8xf32>
    %40 = tpu.matmul %35, %37, %cst_15 {dimension_numbers = #tpu.dot_dimension_numbers<[1], [1], [0], [0], [0, 0, 1, 0], [], []>} : vector<8x64xbf16>, vector<8x64xbf16>, vector<8x8xf32> -> vector<8x8xf32>
    %cst_16 = arith.constant 0.000000e+00 : f32
    %41 = vector.broadcast %cst_16 : f32 to vector<8x8xf32>
    %42 = arith.cmpf ogt, %3, %41 : vector<8x8xf32>
    %cst_17 = arith.constant -1.000000e+09 : f32
    %43 = vector.broadcast %cst_17 : f32 to vector<8x8xf32>
    %44 = arith.select %42, %40, %43 : vector<8x8xi1>, vector<8x8xf32>
    %cst_18 = arith.constant dense<0xFF800000> : vector<8xf32>
    %45 = vector.multi_reduction <maximumf>, %44, %cst_18 [1] : vector<8x8xf32> to vector<8xf32>
    %46 = vector.shape_cast %45 : vector<8xf32> to vector<8x1xf32>
    %47 = vector.broadcast %46 : vector<8x1xf32> to vector<8x8xf32>
    %48 = arith.subf %44, %47 : vector<8x8xf32>
    %49 = math.exp %48 : vector<8x8xf32>
    %cst_19 = arith.constant dense<0.000000e+00> : vector<8xf32>
    %50 = vector.multi_reduction <add>, %49, %cst_19 [1] : vector<8x8xf32> to vector<8xf32>
    %51 = vector.shape_cast %50 : vector<8xf32> to vector<8x1xf32>
    %52 = vector.broadcast %51 : vector<8x1xf32> to vector<8x8xf32>
    %53 = arith.divf %49, %52 : vector<8x8xf32>
    %54 = arith.truncf %53 : vector<8x8xf32> to vector<8x8xbf16>
    %cst_20 = arith.constant dense<0.000000e+00> : vector<8x64xf32>
    %55 = tpu.matmul %54, %39, %cst_20 {dimension_numbers = #tpu.dot_dimension_numbers<[1], [0], [0], [1], [0, 0, 1, 1], [], []>} : vector<8x8xbf16>, vector<8x64xbf16>, vector<8x64xf32> -> vector<8x64xf32>
    %56 = tpu.concatenate %31, %55 in 1 : vector<8x64xf32>, vector<8x64xf32> -> vector<8x128xf32>
    %57 = arith.truncf %56 : vector<8x128xf32> to vector<8x128xbf16>
    %c0_21 = arith.constant 0 : index
    %c0_22 = arith.constant 0 : index
    %58 = vector.load %arg5[%c0_21, %c0_22] : memref<128x32xbf16, #tpu.memory_space<vmem>>, vector<128x32xbf16>
    %cst_23 = arith.constant dense<0.000000e+00> : vector<8x32xf32>
    %59 = tpu.matmul %57, %58, %cst_23 {dimension_numbers = #tpu.dot_dimension_numbers<[1], [0], [0], [1], [0, 0, 1, 1], [], []>} : vector<8x128xbf16>, vector<128x32xbf16>, vector<8x32xf32> -> vector<8x32xf32>
    %60 = arith.extf %1 : vector<8x32xbf16> to vector<8x32xf32>
    %61 = arith.addf %59, %60 : vector<8x32xf32>
    %cst_24 = arith.constant dense<0.000000e+00> : vector<8xf32>
    %62 = vector.multi_reduction <add>, %61, %cst_24 [1] : vector<8x32xf32> to vector<8xf32>
    %63 = vector.shape_cast %62 : vector<8xf32> to vector<8x1xf32>
    %cst_25 = arith.constant 3.200000e+01 : f32
    %64 = vector.broadcast %cst_25 : f32 to vector<8x1xf32>
    %65 = arith.divf %63, %64 : vector<8x1xf32>
    %66 = vector.broadcast %65 : vector<8x1xf32> to vector<8x32xf32>
    %67 = arith.subf %61, %66 : vector<8x32xf32>
    %68 = arith.mulf %67, %67 : vector<8x32xf32>
    %cst_26 = arith.constant dense<0.000000e+00> : vector<8xf32>
    %69 = vector.multi_reduction <add>, %68, %cst_26 [1] : vector<8x32xf32> to vector<8xf32>
    %70 = vector.shape_cast %69 : vector<8xf32> to vector<8x1xf32>
    %cst_27 = arith.constant 3.200000e+01 : f32
    %71 = vector.broadcast %cst_27 : f32 to vector<8x1xf32>
    %72 = arith.divf %70, %71 : vector<8x1xf32>
    %73 = vector.broadcast %65 : vector<8x1xf32> to vector<8x32xf32>
    %74 = arith.subf %61, %73 : vector<8x32xf32>
    %cst_28 = arith.constant 9.99999997E-7 : f32
    %75 = vector.broadcast %cst_28 : f32 to vector<8x1xf32>
    %76 = arith.addf %72, %75 : vector<8x1xf32>
    %77 = math.rsqrt %76 : vector<8x1xf32>
    %78 = vector.broadcast %77 : vector<8x1xf32> to vector<8x32xf32>
    %79 = arith.mulf %74, %78 : vector<8x32xf32>
    %c0_29 = arith.constant 0 : index
    %c0_30 = arith.constant 0 : index
    %80 = vector.load %arg6[%c0_29, %c0_30] : memref<1x32xf32, #tpu.memory_space<vmem>>, vector<1x32xf32>
    %81 = vector.broadcast %80 : vector<1x32xf32> to vector<8x32xf32>
    %82 = arith.mulf %79, %81 : vector<8x32xf32>
    %c0_31 = arith.constant 0 : index
    %c0_32 = arith.constant 0 : index
    %83 = vector.load %arg7[%c0_31, %c0_32] : memref<1x32xf32, #tpu.memory_space<vmem>>, vector<1x32xf32>
    %84 = vector.broadcast %83 : vector<1x32xf32> to vector<8x32xf32>
    %85 = arith.addf %82, %84 : vector<8x32xf32>
    %c0_33 = arith.constant 0 : index
    %c0_34 = arith.constant 0 : index
    %c0_35 = arith.constant 0 : index
    %86 = vector.load %arg2[%c0_33, %c0_34, %c0_35] : memref<1x8x32xbf16, #tpu.memory_space<vmem>>, vector<1x8x32xbf16>
    %87 = vector.shape_cast %86 : vector<1x8x32xbf16> to vector<8x32xbf16>
    %88 = arith.truncf %85 : vector<8x32xf32> to vector<8x32xbf16>
    %c0_36 = arith.constant 0 : index
    %c0_37 = arith.constant 0 : index
    %89 = vector.load %arg8[%c0_36, %c0_37] : memref<32x128xbf16, #tpu.memory_space<vmem>>, vector<32x128xbf16>
    %cst_38 = arith.constant dense<0.000000e+00> : vector<8x128xf32>
    %90 = tpu.matmul %88, %89, %cst_38 {dimension_numbers = #tpu.dot_dimension_numbers<[1], [0], [0], [1], [0, 0, 1, 1], [], []>} : vector<8x32xbf16>, vector<32x128xbf16>, vector<8x128xf32> -> vector<8x128xf32>
    %c0_39 = arith.constant 0 : index
    %c0_40 = arith.constant 0 : index
    %91 = vector.load %arg9[%c0_39, %c0_40] : memref<32x256xbf16, #tpu.memory_space<vmem>>, vector<32x256xbf16>
    %cst_41 = arith.constant dense<0.000000e+00> : vector<8x256xf32>
    %92 = tpu.matmul %87, %91, %cst_41 {dimension_numbers = #tpu.dot_dimension_numbers<[1], [0], [0], [1], [0, 0, 1, 1], [], []>} : vector<8x32xbf16>, vector<32x256xbf16>, vector<8x256xf32> -> vector<8x256xf32>
    %93 = vector.extract_strided_slice %90 {offsets = [0, 0], sizes = [8, 64], strides = [1, 1]} : vector<8x128xf32> to vector<8x64xf32>
    %cst_42 = arith.constant 1.250000e-01 : f32
    %94 = vector.broadcast %cst_42 : f32 to vector<8x64xf32>
    %95 = arith.mulf %93, %94 : vector<8x64xf32>
    %96 = arith.truncf %95 : vector<8x64xf32> to vector<8x64xbf16>
    %97 = vector.extract_strided_slice %92 {offsets = [0, 0], sizes = [8, 64], strides = [1, 1]} : vector<8x256xf32> to vector<8x64xf32>
    %98 = arith.truncf %97 : vector<8x64xf32> to vector<8x64xbf16>
    %99 = vector.extract_strided_slice %92 {offsets = [0, 128], sizes = [8, 64], strides = [1, 1]} : vector<8x256xf32> to vector<8x64xf32>
    %100 = arith.truncf %99 : vector<8x64xf32> to vector<8x64xbf16>
    %cst_43 = arith.constant dense<0.000000e+00> : vector<8x8xf32>
    %101 = tpu.matmul %96, %98, %cst_43 {dimension_numbers = #tpu.dot_dimension_numbers<[1], [1], [0], [0], [0, 0, 1, 0], [], []>} : vector<8x64xbf16>, vector<8x64xbf16>, vector<8x8xf32> -> vector<8x8xf32>
    %cst_44 = arith.constant dense<0xFF800000> : vector<8xf32>
    %102 = vector.multi_reduction <maximumf>, %101, %cst_44 [1] : vector<8x8xf32> to vector<8xf32>
    %103 = vector.shape_cast %102 : vector<8xf32> to vector<8x1xf32>
    %104 = vector.broadcast %103 : vector<8x1xf32> to vector<8x8xf32>
    %105 = arith.subf %101, %104 : vector<8x8xf32>
    %106 = math.exp %105 : vector<8x8xf32>
    %cst_45 = arith.constant dense<0.000000e+00> : vector<8xf32>
    %107 = vector.multi_reduction <add>, %106, %cst_45 [1] : vector<8x8xf32> to vector<8xf32>
    %108 = vector.shape_cast %107 : vector<8xf32> to vector<8x1xf32>
    %109 = vector.broadcast %108 : vector<8x1xf32> to vector<8x8xf32>
    %110 = arith.divf %106, %109 : vector<8x8xf32>
    %c0_46 = arith.constant 0 : index
    %c0_47 = arith.constant 0 : index
    %c0_48 = arith.constant 0 : index
    %c0_49 = arith.constant 0 : index
    %111 = vector.load %arg20[%c0_46, %c0_47, %c0_48, %c0_49] : memref<1x2x8x8xf32, #tpu.memory_space<vmem>>, vector<1x1x8x8xf32>
    %112 = vector.shape_cast %111 : vector<1x1x8x8xf32> to vector<8x8xf32>
    %113 = vector.shape_cast %110 : vector<8x8xf32> to vector<1x1x8x8xf32>
    tpu.vector_store %arg20[%c0_46, %c0_47, %c0_48, %c0_49], %113 {strides = array<i32>} : memref<1x2x8x8xf32, #tpu.memory_space<vmem>>, vector<1x1x8x8xf32>,
    %114 = arith.truncf %110 : vector<8x8xf32> to vector<8x8xbf16>
    %cst_50 = arith.constant dense<0.000000e+00> : vector<8x64xf32>
    %115 = tpu.matmul %114, %100, %cst_50 {dimension_numbers = #tpu.dot_dimension_numbers<[1], [0], [0], [1], [0, 0, 1, 1], [], []>} : vector<8x8xbf16>, vector<8x64xbf16>, vector<8x64xf32> -> vector<8x64xf32>
    %116 = vector.extract_strided_slice %90 {offsets = [0, 64], sizes = [8, 64], strides = [1, 1]} : vector<8x128xf32> to vector<8x64xf32>
    %cst_51 = arith.constant 1.250000e-01 : f32
    %117 = vector.broadcast %cst_51 : f32 to vector<8x64xf32>
    %118 = arith.mulf %116, %117 : vector<8x64xf32>
    %119 = arith.truncf %118 : vector<8x64xf32> to vector<8x64xbf16>
    %120 = vector.extract_strided_slice %92 {offsets = [0, 64], sizes = [8, 64], strides = [1, 1]} : vector<8x256xf32> to vector<8x64xf32>
    %121 = arith.truncf %120 : vector<8x64xf32> to vector<8x64xbf16>
    %122 = vector.extract_strided_slice %92 {offsets = [0, 192], sizes = [8, 64], strides = [1, 1]} : vector<8x256xf32> to vector<8x64xf32>
    %123 = arith.truncf %122 : vector<8x64xf32> to vector<8x64xbf16>
    %cst_52 = arith.constant dense<0.000000e+00> : vector<8x8xf32>
    %124 = tpu.matmul %119, %121, %cst_52 {dimension_numbers = #tpu.dot_dimension_numbers<[1], [1], [0], [0], [0, 0, 1, 0], [], []>} : vector<8x64xbf16>, vector<8x64xbf16>, vector<8x8xf32> -> vector<8x8xf32>
    %cst_53 = arith.constant dense<0xFF800000> : vector<8xf32>
    %125 = vector.multi_reduction <maximumf>, %124, %cst_53 [1] : vector<8x8xf32> to vector<8xf32>
    %126 = vector.shape_cast %125 : vector<8xf32> to vector<8x1xf32>
    %127 = vector.broadcast %126 : vector<8x1xf32> to vector<8x8xf32>
    %128 = arith.subf %124, %127 : vector<8x8xf32>
    %129 = math.exp %128 : vector<8x8xf32>
    %cst_54 = arith.constant dense<0.000000e+00> : vector<8xf32>
    %130 = vector.multi_reduction <add>, %129, %cst_54 [1] : vector<8x8xf32> to vector<8xf32>
    %131 = vector.shape_cast %130 : vector<8xf32> to vector<8x1xf32>
    %132 = vector.broadcast %131 : vector<8x1xf32> to vector<8x8xf32>
    %133 = arith.divf %129, %132 : vector<8x8xf32>
    %c0_55 = arith.constant 0 : index
    %c1 = arith.constant 1 : index
    %c0_56 = arith.constant 0 : index
    %c0_57 = arith.constant 0 : index
    %134 = vector.load %arg20[%c0_55, %c1, %c0_56, %c0_57] : memref<1x2x8x8xf32, #tpu.memory_space<vmem>>, vector<1x1x8x8xf32>
    %135 = vector.shape_cast %134 : vector<1x1x8x8xf32> to vector<8x8xf32>
    %136 = vector.shape_cast %133 : vector<8x8xf32> to vector<1x1x8x8xf32>
    tpu.vector_store %arg20[%c0_55, %c1, %c0_56, %c0_57], %136 {strides = array<i32>} : memref<1x2x8x8xf32, #tpu.memory_space<vmem>>, vector<1x1x8x8xf32>,
    %137 = arith.truncf %133 : vector<8x8xf32> to vector<8x8xbf16>
    %cst_58 = arith.constant dense<0.000000e+00> : vector<8x64xf32>
    %138 = tpu.matmul %137, %123, %cst_58 {dimension_numbers = #tpu.dot_dimension_numbers<[1], [0], [0], [1], [0, 0, 1, 1], [], []>} : vector<8x8xbf16>, vector<8x64xbf16>, vector<8x64xf32> -> vector<8x64xf32>
    %139 = tpu.concatenate %115, %138 in 1 : vector<8x64xf32>, vector<8x64xf32> -> vector<8x128xf32>
    %140 = arith.truncf %139 : vector<8x128xf32> to vector<8x128xbf16>
    %c0_59 = arith.constant 0 : index
    %c0_60 = arith.constant 0 : index
    %141 = vector.load %arg10[%c0_59, %c0_60] : memref<128x32xbf16, #tpu.memory_space<vmem>>, vector<128x32xbf16>
    %cst_61 = arith.constant dense<0.000000e+00> : vector<8x32xf32>
    %142 = tpu.matmul %140, %141, %cst_61 {dimension_numbers = #tpu.dot_dimension_numbers<[1], [0], [0], [1], [0, 0, 1, 1], [], []>} : vector<8x128xbf16>, vector<128x32xbf16>, vector<8x32xf32> -> vector<8x32xf32>
    %143 = arith.addf %142, %85 : vector<8x32xf32>
    %cst_62 = arith.constant dense<0.000000e+00> : vector<8xf32>
    %144 = vector.multi_reduction <add>, %143, %cst_62 [1] : vector<8x32xf32> to vector<8xf32>
    %145 = vector.shape_cast %144 : vector<8xf32> to vector<8x1xf32>
    %cst_63 = arith.constant 3.200000e+01 : f32
    %146 = vector.broadcast %cst_63 : f32 to vector<8x1xf32>
    %147 = arith.divf %145, %146 : vector<8x1xf32>
    %148 = vector.broadcast %147 : vector<8x1xf32> to vector<8x32xf32>
    %149 = arith.subf %143, %148 : vector<8x32xf32>
    %150 = arith.mulf %149, %149 : vector<8x32xf32>
    %cst_64 = arith.constant dense<0.000000e+00> : vector<8xf32>
    %151 = vector.multi_reduction <add>, %150, %cst_64 [1] : vector<8x32xf32> to vector<8xf32>
    %152 = vector.shape_cast %151 : vector<8xf32> to vector<8x1xf32>
    %cst_65 = arith.constant 3.200000e+01 : f32
    %153 = vector.broadcast %cst_65 : f32 to vector<8x1xf32>
    %154 = arith.divf %152, %153 : vector<8x1xf32>
    %155 = vector.broadcast %147 : vector<8x1xf32> to vector<8x32xf32>
    %156 = arith.subf %143, %155 : vector<8x32xf32>
    %cst_66 = arith.constant 9.99999997E-7 : f32
    %157 = vector.broadcast %cst_66 : f32 to vector<8x1xf32>
    %158 = arith.addf %154, %157 : vector<8x1xf32>
    %159 = math.rsqrt %158 : vector<8x1xf32>
    %160 = vector.broadcast %159 : vector<8x1xf32> to vector<8x32xf32>
    %161 = arith.mulf %156, %160 : vector<8x32xf32>
    %c0_67 = arith.constant 0 : index
    %c0_68 = arith.constant 0 : index
    %162 = vector.load %arg11[%c0_67, %c0_68] : memref<1x32xf32, #tpu.memory_space<vmem>>, vector<1x32xf32>
    %163 = vector.broadcast %162 : vector<1x32xf32> to vector<8x32xf32>
    %164 = arith.mulf %161, %163 : vector<8x32xf32>
    %c0_69 = arith.constant 0 : index
    %c0_70 = arith.constant 0 : index
    %165 = vector.load %arg12[%c0_69, %c0_70] : memref<1x32xf32, #tpu.memory_space<vmem>>, vector<1x32xf32>
    %166 = vector.broadcast %165 : vector<1x32xf32> to vector<8x32xf32>
    %167 = arith.addf %164, %166 : vector<8x32xf32>
    %168 = arith.truncf %167 : vector<8x32xf32> to vector<8x32xbf16>
    %c0_71 = arith.constant 0 : index
    %c0_72 = arith.constant 0 : index
    %169 = vector.load %arg13[%c0_71, %c0_72] : memref<32x2048xbf16, #tpu.memory_space<vmem>>, vector<32x2048xbf16>
    %cst_73 = arith.constant dense<0.000000e+00> : vector<8x2048xf32>
    %170 = tpu.matmul %168, %169, %cst_73 {dimension_numbers = #tpu.dot_dimension_numbers<[1], [0], [0], [1], [0, 0, 1, 1], [], []>} : vector<8x32xbf16>, vector<32x2048xbf16>, vector<8x2048xf32> -> vector<8x2048xf32>
    %c0_74 = arith.constant 0 : index
    %c0_75 = arith.constant 0 : index
    %171 = vector.load %arg14[%c0_74, %c0_75] : memref<1x2048xf32, #tpu.memory_space<vmem>>, vector<1x2048xf32>
    %172 = vector.broadcast %171 : vector<1x2048xf32> to vector<8x2048xf32>
    %173 = arith.addf %170, %172 : vector<8x2048xf32>
    %cst_76 = arith.constant 0.000000e+00 : f32
    %174 = vector.broadcast %cst_76 : f32 to vector<8x2048xf32>
    %175 = arith.maximumf %173, %174 : vector<8x2048xf32>
    %176 = arith.truncf %175 : vector<8x2048xf32> to vector<8x2048xbf16>
    %c0_77 = arith.constant 0 : index
    %c0_78 = arith.constant 0 : index
    %177 = vector.load %arg15[%c0_77, %c0_78] : memref<2048x32xbf16, #tpu.memory_space<vmem>>, vector<2048x32xbf16>
    %cst_79 = arith.constant dense<0.000000e+00> : vector<8x32xf32>
    %178 = tpu.matmul %176, %177, %cst_79 {dimension_numbers = #tpu.dot_dimension_numbers<[1], [0], [0], [1], [0, 0, 1, 1], [], []>} : vector<8x2048xbf16>, vector<2048x32xbf16>, vector<8x32xf32> -> vector<8x32xf32>
    %c0_80 = arith.constant 0 : index
    %c0_81 = arith.constant 0 : index
    %179 = vector.load %arg16[%c0_80, %c0_81] : memref<1x32xf32, #tpu.memory_space<vmem>>, vector<1x32xf32>
    %180 = vector.broadcast %179 : vector<1x32xf32> to vector<8x32xf32>
    %181 = arith.addf %178, %180 : vector<8x32xf32>
    %182 = arith.addf %181, %167 : vector<8x32xf32>
    %cst_82 = arith.constant dense<0.000000e+00> : vector<8xf32>
    %183 = vector.multi_reduction <add>, %182, %cst_82 [1] : vector<8x32xf32> to vector<8xf32>
    %184 = vector.shape_cast %183 : vector<8xf32> to vector<8x1xf32>
    %cst_83 = arith.constant 3.200000e+01 : f32
    %185 = vector.broadcast %cst_83 : f32 to vector<8x1xf32>
    %186 = arith.divf %184, %185 : vector<8x1xf32>
    %187 = vector.broadcast %186 : vector<8x1xf32> to vector<8x32xf32>
    %188 = arith.subf %182, %187 : vector<8x32xf32>
    %189 = arith.mulf %188, %188 : vector<8x32xf32>
    %cst_84 = arith.constant dense<0.000000e+00> : vector<8xf32>
    %190 = vector.multi_reduction <add>, %189, %cst_84 [1] : vector<8x32xf32> to vector<8xf32>
    %191 = vector.shape_cast %190 : vector<8xf32> to vector<8x1xf32>
    %cst_85 = arith.constant 3.200000e+01 : f32
    %192 = vector.broadcast %cst_85 : f32 to vector<8x1xf32>
    %193 = arith.divf %191, %192 : vector<8x1xf32>
    %194 = vector.broadcast %186 : vector<8x1xf32> to vector<8x32xf32>
    %195 = arith.subf %182, %194 : vector<8x32xf32>
    %cst_86 = arith.constant 9.99999997E-7 : f32
    %196 = vector.broadcast %cst_86 : f32 to vector<8x1xf32>
    %197 = arith.addf %193, %196 : vector<8x1xf32>
    %198 = math.rsqrt %197 : vector<8x1xf32>
    %199 = vector.broadcast %198 : vector<8x1xf32> to vector<8x32xf32>
    %200 = arith.mulf %195, %199 : vector<8x32xf32>
    %c0_87 = arith.constant 0 : index
    %c0_88 = arith.constant 0 : index
    %201 = vector.load %arg17[%c0_87, %c0_88] : memref<1x32xf32, #tpu.memory_space<vmem>>, vector<1x32xf32>
    %202 = vector.broadcast %201 : vector<1x32xf32> to vector<8x32xf32>
    %203 = arith.mulf %200, %202 : vector<8x32xf32>
    %c0_89 = arith.constant 0 : index
    %c0_90 = arith.constant 0 : index
    %204 = vector.load %arg18[%c0_89, %c0_90] : memref<1x32xf32, #tpu.memory_space<vmem>>, vector<1x32xf32>
    %205 = vector.broadcast %204 : vector<1x32xf32> to vector<8x32xf32>
    %206 = arith.addf %203, %205 : vector<8x32xf32>
    %207 = arith.truncf %206 : vector<8x32xf32> to vector<8x32xbf16>
    %c0_91 = arith.constant 0 : index
    %c0_92 = arith.constant 0 : index
    %c0_93 = arith.constant 0 : index
    %208 = vector.load %arg19[%c0_91, %c0_92, %c0_93] : memref<1x8x32xbf16, #tpu.memory_space<vmem>>, vector<1x8x32xbf16>
    %209 = vector.shape_cast %208 : vector<1x8x32xbf16> to vector<8x32xbf16>
    %210 = vector.shape_cast %207 : vector<8x32xbf16> to vector<1x8x32xbf16>
    tpu.vector_store %arg19[%c0_91, %c0_92, %c0_93], %210 {strides = array<i32>} : memref<1x8x32xbf16, #tpu.memory_space<vmem>>, vector<1x8x32xbf16>,
    return
  }
  func.func @transform_0(%arg0: i32) -> (i32, i32, i32) {
    %c0_i32 = arith.constant 0 : i32
    %c0_i32_0 = arith.constant 0 : i32
    %c0_i32_1 = arith.constant 0 : i32
    return %arg0, %c0_i32, %c0_i32_0 : i32, i32, i32
  }
  func.func @transform_1(%arg0: i32) -> (i32, i32, i32) {
    %c0_i32 = arith.constant 0 : i32
    %c0_i32_0 = arith.constant 0 : i32
    %c0_i32_1 = arith.constant 0 : i32
    return %arg0, %c0_i32, %c0_i32_0 : i32, i32, i32
  }
  func.func @transform_2(%arg0: i32) -> (i32, i32, i32) {
    %c0_i32 = arith.constant 0 : i32
    %c0_i32_0 = arith.constant 0 : i32
    %c0_i32_1 = arith.constant 0 : i32
    return %arg0, %c0_i32, %c0_i32_0 : i32, i32, i32
  }
  func.func @transform_3(%arg0: i32) -> (i32, i32) {
    %c0_i32 = arith.constant 0 : i32
    %c0_i32_0 = arith.constant 0 : i32
    %c0_i32_1 = arith.constant 0 : i32
    return %c0_i32, %c0_i32_0 : i32, i32
  }
  func.func @transform_4(%arg0: i32) -> (i32, i32) {
    %c0_i32 = arith.constant 0 : i32
    %c0_i32_0 = arith.constant 0 : i32
    %c0_i32_1 = arith.constant 0 : i32
    return %c0_i32, %c0_i32_0 : i32, i32
  }
  func.func @transform_5(%arg0: i32) -> (i32, i32) {
    %c0_i32 = arith.constant 0 : i32
    %c0_i32_0 = arith.constant 0 : i32
    %c0_i32_1 = arith.constant 0 : i32
    return %c0_i32, %c0_i32_0 : i32, i32
  }
  func.func @transform_6(%arg0: i32) -> (i32, i32) {
    %c0_i32 = arith.constant 0 : i32
    %c0_i32_0 = arith.constant 0 : i32
    %c0_i32_1 = arith.constant 0 : i32
    return %c0_i32, %c0_i32_0 : i32, i32
  }
  func.func @transform_7(%arg0: i32) -> (i32, i32) {
    %c0_i32 = arith.constant 0 : i32
    %c0_i32_0 = arith.constant 0 : i32
    %c0_i32_1 = arith.constant 0 : i32
    return %c0_i32, %c0_i32_0 : i32, i32
  }
  func.func @transform_8(%arg0: i32) -> (i32, i32) {
    %c0_i32 = arith.constant 0 : i32
    %c0_i32_0 = arith.constant 0 : i32
    %c0_i32_1 = arith.constant 0 : i32
    return %c0_i32, %c0_i32_0 : i32, i32
  }
  func.func @transform_9(%arg0: i32) -> (i32, i32) {
    %c0_i32 = arith.constant 0 : i32
    %c0_i32_0 = arith.constant 0 : i32
    %c0_i32_1 = arith.constant 0 : i32
    return %c0_i32, %c0_i32_0 : i32, i32
  }
  func.func @transform_10(%arg0: i32) -> (i32, i32) {
    %c0_i32 = arith.constant 0 : i32
    %c0_i32_0 = arith.constant 0 : i32
    %c0_i32_1 = arith.constant 0 : i32
    return %c0_i32, %c0_i32_0 : i32, i32
  }
  func.func @transform_11(%arg0: i32) -> (i32, i32) {
    %c0_i32 = arith.constant 0 : i32
    %c0_i32_0 = arith.constant 0 : i32
    %c0_i32_1 = arith.constant 0 : i32
    return %c0_i32, %c0_i32_0 : i32, i32
  }
  func.func @transform_12(%arg0: i32) -> (i32, i32) {
    %c0_i32 = arith.constant 0 : i32
    %c0_i32_0 = arith.constant 0 : i32
    %c0_i32_1 = arith.constant 0 : i32
    return %c0_i32, %c0_i32_0 : i32, i32
  }
  func.func @transform_13(%arg0: i32) -> (i32, i32) {
    %c0_i32 = arith.constant 0 : i32
    %c0_i32_0 = arith.constant 0 : i32
    %c0_i32_1 = arith.constant 0 : i32
    return %c0_i32, %c0_i32_0 : i32, i32
  }
  func.func @transform_14(%arg0: i32) -> (i32, i32) {
    %c0_i32 = arith.constant 0 : i32
    %c0_i32_0 = arith.constant 0 : i32
    %c0_i32_1 = arith.constant 0 : i32
    return %c0_i32, %c0_i32_0 : i32, i32
  }
  func.func @transform_15(%arg0: i32) -> (i32, i32) {
    %c0_i32 = arith.constant 0 : i32
    %c0_i32_0 = arith.constant 0 : i32
    %c0_i32_1 = arith.constant 0 : i32
    return %c0_i32, %c0_i32_0 : i32, i32
  }
  func.func @transform_16(%arg0: i32) -> (i32, i32) {
    %c0_i32 = arith.constant 0 : i32
    %c0_i32_0 = arith.constant 0 : i32
    %c0_i32_1 = arith.constant 0 : i32
    return %c0_i32, %c0_i32_0 : i32, i32
  }
  func.func @transform_17(%arg0: i32) -> (i32, i32) {
    %c0_i32 = arith.constant 0 : i32
    %c0_i32_0 = arith.constant 0 : i32
    %c0_i32_1 = arith.constant 0 : i32
    return %c0_i32, %c0_i32_0 : i32, i32
  }
  func.func @transform_18(%arg0: i32) -> (i32, i32, i32) {
    %c0_i32 = arith.constant 0 : i32
    %c0_i32_0 = arith.constant 0 : i32
    %c0_i32_1 = arith.constant 0 : i32
    return %arg0, %c0_i32, %c0_i32_0 : i32, i32, i32
  }
  func.func @transform_19(%arg0: i32) -> (i32, i32, i32, i32) {
    %c0_i32 = arith.constant 0 : i32
    %c0_i32_0 = arith.constant 0 : i32
    %c0_i32_1 = arith.constant 0 : i32
    %c0_i32_2 = arith.constant 0 : i32
    return %arg0, %c0_i32, %c0_i32_0, %c0_i32_1 : i32, i32, i32, i32
  }
}

module attributes {stable_mosaic.version = 11 : i64} {
  func.func @_embed_ln_kernel(%arg0: i32, %arg1: memref<1x8x32xf32, #tpu.memory_space<vmem>>, %arg2: memref<8x32xf32, #tpu.memory_space<vmem>>, %arg3: memref<1x32xf32, #tpu.memory_space<vmem>>, %arg4: memref<1x32xf32, #tpu.memory_space<vmem>>, %arg5: memref<1x8x32xbf16, #tpu.memory_space<vmem>>) attributes {dimension_semantics = [#tpu.dimension_semantics<parallel>], iteration_bounds = array<i64: 2>, scalar_prefetch = 0 : i64, scratch_operands = 0 : i64, tpu.core_type = #tpu.core_type<tc>, window_params = [{transform_indices = @transform_0, window_bounds = array<i64: 1, 8, 32>}, {pipeline_mode = #tpu.pipeline_mode<synchronous>, transform_indices = @transform_1, window_bounds = array<i64: 8, 32>}, {pipeline_mode = #tpu.pipeline_mode<synchronous>, transform_indices = @transform_2, window_bounds = array<i64: 1, 32>}, {pipeline_mode = #tpu.pipeline_mode<synchronous>, transform_indices = @transform_3, window_bounds = array<i64: 1, 32>}, {transform_indices = @transform_4, window_bounds = array<i64: 1, 8, 32>}]} {
    %c0 = arith.constant 0 : index
    %c0_0 = arith.constant 0 : index
    %c0_1 = arith.constant 0 : index
    %0 = vector.load %arg1[%c0, %c0_0, %c0_1] : memref<1x8x32xf32, #tpu.memory_space<vmem>>, vector<1x8x32xf32>
    %1 = vector.shape_cast %0 : vector<1x8x32xf32> to vector<8x32xf32>
    %c0_2 = arith.constant 0 : index
    %c0_3 = arith.constant 0 : index
    %2 = vector.load %arg2[%c0_2, %c0_3] : memref<8x32xf32, #tpu.memory_space<vmem>>, vector<8x32xf32>
    %3 = arith.addf %1, %2 : vector<8x32xf32>
    %cst = arith.constant dense<0.000000e+00> : vector<8xf32>
    %4 = vector.multi_reduction <add>, %3, %cst [1] : vector<8x32xf32> to vector<8xf32>
    %5 = vector.shape_cast %4 : vector<8xf32> to vector<8x1xf32>
    %cst_4 = arith.constant 3.200000e+01 : f32
    %6 = vector.broadcast %cst_4 : f32 to vector<8x1xf32>
    %7 = arith.divf %5, %6 : vector<8x1xf32>
    %8 = vector.broadcast %7 : vector<8x1xf32> to vector<8x32xf32>
    %9 = arith.subf %3, %8 : vector<8x32xf32>
    %10 = arith.mulf %9, %9 : vector<8x32xf32>
    %cst_5 = arith.constant dense<0.000000e+00> : vector<8xf32>
    %11 = vector.multi_reduction <add>, %10, %cst_5 [1] : vector<8x32xf32> to vector<8xf32>
    %12 = vector.shape_cast %11 : vector<8xf32> to vector<8x1xf32>
    %cst_6 = arith.constant 3.200000e+01 : f32
    %13 = vector.broadcast %cst_6 : f32 to vector<8x1xf32>
    %14 = arith.divf %12, %13 : vector<8x1xf32>
    %15 = vector.broadcast %7 : vector<8x1xf32> to vector<8x32xf32>
    %16 = arith.subf %3, %15 : vector<8x32xf32>
    %cst_7 = arith.constant 9.99999997E-7 : f32
    %17 = vector.broadcast %cst_7 : f32 to vector<8x1xf32>
    %18 = arith.addf %14, %17 : vector<8x1xf32>
    %19 = math.rsqrt %18 : vector<8x1xf32>
    %20 = vector.broadcast %19 : vector<8x1xf32> to vector<8x32xf32>
    %21 = arith.mulf %16, %20 : vector<8x32xf32>
    %c0_8 = arith.constant 0 : index
    %c0_9 = arith.constant 0 : index
    %22 = vector.load %arg3[%c0_8, %c0_9] : memref<1x32xf32, #tpu.memory_space<vmem>>, vector<1x32xf32>
    %23 = vector.broadcast %22 : vector<1x32xf32> to vector<8x32xf32>
    %24 = arith.mulf %21, %23 : vector<8x32xf32>
    %c0_10 = arith.constant 0 : index
    %c0_11 = arith.constant 0 : index
    %25 = vector.load %arg4[%c0_10, %c0_11] : memref<1x32xf32, #tpu.memory_space<vmem>>, vector<1x32xf32>
    %26 = vector.broadcast %25 : vector<1x32xf32> to vector<8x32xf32>
    %27 = arith.addf %24, %26 : vector<8x32xf32>
    %28 = arith.truncf %27 : vector<8x32xf32> to vector<8x32xbf16>
    %c0_12 = arith.constant 0 : index
    %c0_13 = arith.constant 0 : index
    %c0_14 = arith.constant 0 : index
    %29 = vector.load %arg5[%c0_12, %c0_13, %c0_14] : memref<1x8x32xbf16, #tpu.memory_space<vmem>>, vector<1x8x32xbf16>
    %30 = vector.shape_cast %29 : vector<1x8x32xbf16> to vector<8x32xbf16>
    %31 = vector.shape_cast %28 : vector<8x32xbf16> to vector<1x8x32xbf16>
    tpu.vector_store %arg5[%c0_12, %c0_13, %c0_14], %31 {strides = array<i32>} : memref<1x8x32xbf16, #tpu.memory_space<vmem>>, vector<1x8x32xbf16>,
    return
  }
  func.func @transform_0(%arg0: i32) -> (i32, i32, i32) {
    %c0_i32 = arith.constant 0 : i32
    %c0_i32_0 = arith.constant 0 : i32
    %c0_i32_1 = arith.constant 0 : i32
    return %arg0, %c0_i32, %c0_i32_0 : i32, i32, i32
  }
  func.func @transform_1(%arg0: i32) -> (i32, i32) {
    %c0_i32 = arith.constant 0 : i32
    %c0_i32_0 = arith.constant 0 : i32
    %c0_i32_1 = arith.constant 0 : i32
    return %c0_i32, %c0_i32_0 : i32, i32
  }
  func.func @transform_2(%arg0: i32) -> (i32, i32) {
    %c0_i32 = arith.constant 0 : i32
    %c0_i32_0 = arith.constant 0 : i32
    %c0_i32_1 = arith.constant 0 : i32
    return %c0_i32, %c0_i32_0 : i32, i32
  }
  func.func @transform_3(%arg0: i32) -> (i32, i32) {
    %c0_i32 = arith.constant 0 : i32
    %c0_i32_0 = arith.constant 0 : i32
    %c0_i32_1 = arith.constant 0 : i32
    return %c0_i32, %c0_i32_0 : i32, i32
  }
  func.func @transform_4(%arg0: i32) -> (i32, i32, i32) {
    %c0_i32 = arith.constant 0 : i32
    %c0_i32_0 = arith.constant 0 : i32
    %c0_i32_1 = arith.constant 0 : i32
    return %arg0, %c0_i32, %c0_i32_0 : i32, i32, i32
  }
}

module attributes {stable_mosaic.version = 11 : i64} {
  func.func @_proj_softmax_kernel(%arg0: i32, %arg1: memref<8x32xbf16, #tpu.memory_space<vmem>>, %arg2: memref<32x16xbf16, #tpu.memory_space<vmem>>, %arg3: memref<8x16xf32, #tpu.memory_space<vmem>>) attributes {dimension_semantics = [#tpu.dimension_semantics<parallel>], iteration_bounds = array<i64: 2>, scalar_prefetch = 0 : i64, scratch_operands = 0 : i64, tpu.core_type = #tpu.core_type<tc>, window_params = [{transform_indices = @transform_0, window_bounds = array<i64: 8, 32>}, {pipeline_mode = #tpu.pipeline_mode<synchronous>, transform_indices = @transform_1, window_bounds = array<i64: 32, 16>}, {transform_indices = @transform_2, window_bounds = array<i64: 8, 16>}]} {
    %c0 = arith.constant 0 : index
    %c0_0 = arith.constant 0 : index
    %0 = vector.load %arg1[%c0, %c0_0] : memref<8x32xbf16, #tpu.memory_space<vmem>>, vector<8x32xbf16>
    %c0_1 = arith.constant 0 : index
    %c0_2 = arith.constant 0 : index
    %1 = vector.load %arg2[%c0_1, %c0_2] : memref<32x16xbf16, #tpu.memory_space<vmem>>, vector<32x16xbf16>
    %cst = arith.constant dense<0.000000e+00> : vector<8x16xf32>
    %2 = tpu.matmul %0, %1, %cst {dimension_numbers = #tpu.dot_dimension_numbers<[1], [0], [0], [1], [0, 0, 1, 1], [], []>} : vector<8x32xbf16>, vector<32x16xbf16>, vector<8x16xf32> -> vector<8x16xf32>
    %cst_3 = arith.constant 0.176776692 : f32
    %3 = vector.broadcast %cst_3 : f32 to vector<8x16xf32>
    %4 = arith.mulf %2, %3 : vector<8x16xf32>
    %cst_4 = arith.constant dense<0xFF800000> : vector<8xf32>
    %5 = vector.multi_reduction <maximumf>, %4, %cst_4 [1] : vector<8x16xf32> to vector<8xf32>
    %6 = vector.shape_cast %5 : vector<8xf32> to vector<8x1xf32>
    %7 = vector.broadcast %6 : vector<8x1xf32> to vector<8x16xf32>
    %8 = arith.subf %4, %7 : vector<8x16xf32>
    %9 = math.exp %8 : vector<8x16xf32>
    %cst_5 = arith.constant dense<0.000000e+00> : vector<8xf32>
    %10 = vector.multi_reduction <add>, %9, %cst_5 [1] : vector<8x16xf32> to vector<8xf32>
    %11 = vector.shape_cast %10 : vector<8xf32> to vector<8x1xf32>
    %12 = vector.broadcast %11 : vector<8x1xf32> to vector<8x16xf32>
    %13 = arith.divf %9, %12 : vector<8x16xf32>
    %c0_6 = arith.constant 0 : index
    %c0_7 = arith.constant 0 : index
    %14 = vector.load %arg3[%c0_6, %c0_7] : memref<8x16xf32, #tpu.memory_space<vmem>>, vector<8x16xf32>
    tpu.vector_store %arg3[%c0_6, %c0_7], %13 {strides = array<i32>} : memref<8x16xf32, #tpu.memory_space<vmem>>, vector<8x16xf32>,
    return
  }
  func.func @transform_0(%arg0: i32) -> (i32, i32) {
    %c0_i32 = arith.constant 0 : i32
    %c0_i32_0 = arith.constant 0 : i32
    return %arg0, %c0_i32 : i32, i32
  }
  func.func @transform_1(%arg0: i32) -> (i32, i32) {
    %c0_i32 = arith.constant 0 : i32
    %c0_i32_0 = arith.constant 0 : i32
    %c0_i32_1 = arith.constant 0 : i32
    return %c0_i32, %c0_i32_0 : i32, i32
  }
  func.func @transform_2(%arg0: i32) -> (i32, i32) {
    %c0_i32 = arith.constant 0 : i32
    %c0_i32_0 = arith.constant 0 : i32
    return %arg0, %c0_i32 : i32, i32
  }
}

</mosaic_0001>

<llo_original>
// kernel: transformer_forward.4
$region0: #{transformer_forward.4}
  #allocation0 [shape = 'u32[]', space=smem, size = 0x4, offset = 0x4, fixed_abs, tag = 'smem constant byte address 0x4 - core index']
  #allocation1 [shape = 'u32[144,128]{1,0:T(1,128)}', space=vmem, size = 0x12000, scoped, tag = 'internal scratch']
  %s0 = inlined_call_operand.vmem [shape: f32[2,8,32], index: 0, kind: input, shape index: {}]
  %s1 = inlined_call_operand.vmem [shape: f32[8,32], index: 1, kind: input, shape index: {}]
  %s2 = inlined_call_operand.vmem [shape: f32[1,32], index: 2, kind: input, shape index: {}]
  %s3 = inlined_call_operand.vmem [shape: f32[1,32], index: 3, kind: input, shape index: {}]
  %s4 = inlined_call_operand.vmem [shape: bf16[2,8,32], index: 4, kind: output, shape index: {}]
  %s5 = sld [smem:[#allocation0]]
  $region49: #{transformer_forward.4} parent=0
    _
  %s7 = ssub.s32 1, %s5
  %s8 = scalar_select 0, %s7, %s5
  loop: start=0, step=1, limit=4
  $region2: #{transformer_forward.4} parent=0 // loop_pre_header
    _
  $region3: #{transformer_forward.4} parent=0 // loop_header
    %s10 = sphi 0, %s14
    %p11 = scmp.ge.s32.totalorder %s10, 4
    %s20 = sphi 0, %s22
    %s23 = sphi 0, %s20
    %s24 = sphi 0, %s23
    %s40 = sphi 0, %s24
    %s44 = sphi 0, %s44
    %s46 = sphi 0, %s44
    %s47 = sphi 0, %s46
    %s61 = sphi 0, %s47
    %s65 = sphi 0, %s65
    %s67 = sphi 0, %s65
    %s68 = sphi 0, %s67
    %s82 = sphi 0, %s68
    %s86 = sphi 0, %s86
    %s88 = sphi 0, %s86
    %s89 = sphi 0, %s88
    %s103 = sphi 0, %s89
    %s109 = sphi 0, %s111
    %s112 = sphi 0, %s109
    %s113 = sphi 0, %s112
    %s129 = sphi 0, %s113
  $region4: #{transformer_forward.4} parent=0 // loop_header_branch
    %13 = sbr.rel (%p11) target = $region8
  $region5: #{transformer_forward.4} parent=0 // loop_body
    %s15 = ssub.s32 %s10, 1
    %s16 = ssub.s32 %s10, 2
    %s17 = sadd.s32 %s10, 1
    %s18 = ssub.s32 %s10, %s17
    %p19 = scmp.eq.s32.totalorder %s18, 0
    %s21 = sadd.s32 %s20, 1
    %s22 = scalar_select %p19, %s20, %s21
    %p25 = pneg %p19
    %p26 = scmp.eq.s32.totalorder %s10, 1
    %p27 = por %p25, %p26
    %p28 = scmp.ne.s32.totalorder %s20, %s23
    %p29 = scmp.eq.s32.totalorder %s10, 0
    %p30 = por %p28, %p29
    %p31 = scmp.ne.s32.totalorder %s20, %s23
    %p32 = scmp.eq.s32.totalorder %s15, 1
    %p33 = por %p31, %p32
    %p34 = scmp.ne.s32.totalorder %s23, %s24
    %p35 = scmp.eq.s32.totalorder %s15, 0
    %p36 = por %p34, %p35
    %p37 = scmp.ne.s32.totalorder %s23, %s24
    %p38 = scmp.eq.s32.totalorder %s16, 1
    %p39 = por %p37, %p38
    %p41 = scmp.ne.s32.totalorder %s24, %s40
    %p42 = scmp.eq.s32.totalorder %s16, 0
    %p43 = por %p41, %p42
    %s45 = sadd.s32 %s44, 1
    %p48 = scmp.eq.s32.totalorder %s10, 1
    %p49 = scmp.ne.s32.totalorder %s44, %s46
    %p50 = scmp.eq.s32.totalorder %s10, 0
    %p51 = por %p49, %p50
    %p52 = scmp.ne.s32.totalorder %s44, %s46
    %p53 = scmp.eq.s32.totalorder %s15, 1
    %p54 = por %p52, %p53
    %p55 = scmp.ne.s32.totalorder %s46, %s47
    %p56 = scmp.eq.s32.totalorder %s15, 0
    %p57 = por %p55, %p56
    %p58 = scmp.ne.s32.totalorder %s46, %s47
    %p59 = scmp.eq.s32.totalorder %s16, 1
    %p60 = por %p58, %p59
    %p62 = scmp.ne.s32.totalorder %s47, %s61
    %p63 = scmp.eq.s32.totalorder %s16, 0
    %p64 = por %p62, %p63
    %s66 = sadd.s32 %s65, 1
    %p69 = scmp.eq.s32.totalorder %s10, 1
    %p70 = scmp.ne.s32.totalorder %s65, %s67
    %p71 = scmp.eq.s32.totalorder %s10, 0
    %p72 = por %p70, %p71
    %p73 = scmp.ne.s32.totalorder %s65, %s67
    %p74 = scmp.eq.s32.totalorder %s15, 1
    %p75 = por %p73, %p74
    %p76 = scmp.ne.s32.totalorder %s67, %s68
    %p77 = scmp.eq.s32.totalorder %s15, 0
    %p78 = por %p76, %p77
    %p79 = scmp.ne.s32.totalorder %s67, %s68
    %p80 = scmp.eq.s32.totalorder %s16, 1
    %p81 = por %p79, %p80
    %p83 = scmp.ne.s32.totalorder %s68, %s82
    %p84 = scmp.eq.s32.totalorder %s16, 0
    %p85 = por %p83, %p84
    %s87 = sadd.s32 %s86, 1
    %p90 = scmp.eq.s32.totalorder %s10, 1
    %p91 = scmp.ne.s32.totalorder %s86, %s88
    %p92 = scmp.eq.s32.totalorder %s10, 0
    %p93 = por %p91, %p92
    %p94 = scmp.ne.s32.totalorder %s86, %s88
    %p95 = scmp.eq.s32.totalorder %s15, 1
    %p96 = por %p94, %p95
    %p97 = scmp.ne.s32.totalorder %s88, %s89
    %p98 = scmp.eq.s32.totalorder %s15, 0
    %p99 = por %p97, %p98
    %p100 = scmp.ne.s32.totalorder %s88, %s89
    %p101 = scmp.eq.s32.totalorder %s16, 1
    %p102 = por %p100, %p101
    %p104 = scmp.ne.s32.totalorder %s89, %s103
    %p105 = scmp.eq.s32.totalorder %s16, 0
    %p106 = por %p104, %p105
    %s107 = ssub.s32 %s10, %s17
    %p108 = scmp.eq.s32.totalorder %s107, 0
    %s110 = sadd.s32 %s109, 1
    %s111 = scalar_select %p108, %s109, %s110
    %p114 = pneg %p108
    %p115 = scmp.eq.s32.totalorder %s10, 1
    %p116 = por %p114, %p115
    %p117 = scmp.ne.s32.totalorder %s109, %s112
    %p118 = scmp.eq.s32.totalorder %s10, 0
    %p119 = por %p117, %p118
    %p120 = scmp.ne.s32.totalorder %s109, %s112
    %p121 = scmp.eq.s32.totalorder %s15, 1
    %p122 = por %p120, %p121
    %p123 = scmp.ne.s32.totalorder %s112, %s113
    %p124 = scmp.eq.s32.totalorder %s15, 0
    %p125 = por %p123, %p124
    %p126 = scmp.ne.s32.totalorder %s112, %s113
    %p127 = scmp.eq.s32.totalorder %s16, 1
    %p128 = por %p126, %p127
    %p130 = scmp.ne.s32.totalorder %s113, %s129
    %p131 = scmp.eq.s32.totalorder %s16, 0
    %p132 = por %p130, %p131
    %p133 = scmp.le.s32.totalorder 1, %s10
    %p134 = scmp.lt.s32.totalorder %s10, 3
    %p135 = pnand %p133, %p134
    %p136 = pneg %p135
    // Predicated region
    $region9: #{transformer_forward.4} parent=5 // pred_check
      _
    $region10: #{transformer_forward.4} parent=5 // pred_check_branch
      %138 = sbr.rel (%p135) target = $region12
    $region11: #{transformer_forward.4} parent=5 // pred_region
      %s139 = ssub.s32 %s10, 1
      // Predicated region
      $region13: #{transformer_forward.4} parent=11 // pred_check
        %p140 = pneg %p57
      $region14: #{transformer_forward.4} parent=11 // pred_check_branch
        %142 = sbr.rel (%p140) target = $region16
      $region15: #{transformer_forward.4} parent=11 // pred_region
        _
      $region16: #{transformer_forward.4} parent=11 // pred_fallthru
        _
      // Predicated region
      $region17: #{transformer_forward.4} parent=11 // pred_check
        %p143 = pneg %p78
      $region18: #{transformer_forward.4} parent=11 // pred_check_branch
        %145 = sbr.rel (%p143) target = $region20
      $region19: #{transformer_forward.4} parent=11 // pred_region
        _
      $region20: #{transformer_forward.4} parent=11 // pred_fallthru
        _
      // Predicated region
      $region21: #{transformer_forward.4} parent=11 // pred_check
        %p146 = pneg %p99
      $region22: #{transformer_forward.4} parent=11 // pred_check_branch
        %148 = sbr.rel (%p146) target = $region24
      $region23: #{transformer_forward.4} parent=11 // pred_region
        _
      $region24: #{transformer_forward.4} parent=11 // pred_fallthru
        _
    $region12: #{transformer_forward.4} parent=5 // pred_fallthru
      _
    %p149 = scmp.lt.s32.totalorder %s10, 2
    // Predicated region
    $region25: #{transformer_forward.4} parent=5 // pred_check
      %p150 = pneg %p149
    $region26: #{transformer_forward.4} parent=5 // pred_check_branch
      %152 = sbr.rel (%p150) target = $region28
    $region27: #{transformer_forward.4} parent=5 // pred_region
      // Predicated region
      $region29: #{transformer_forward.4} parent=27 // pred_check
        %p153 = pneg %p30
      $region30: #{transformer_forward.4} parent=27 // pred_check_branch
        %155 = sbr.rel (%p153) target = $region32
      $region31: #{transformer_forward.4} parent=27 // pred_region
        %p156 = scmp.lt.s32.totalorder %s10, 1
        %s157 = scalar_select %p156, %s10, 1
        %s158 = smul.addr %s157, 8
        %s159 = scalar_lea.vmem %s0, %s158
      $region32: #{transformer_forward.4} parent=27 // pred_fallthru
        _
    $region28: #{transformer_forward.4} parent=5 // pred_fallthru
      _
    %p160 = scmp.le.s32.totalorder 1, %s10
    %p161 = scmp.lt.s32.totalorder %s10, 3
    %p162 = pnand %p160, %p161
    %p163 = pneg %p162
    // Predicated region
    $region33: #{transformer_forward.4} parent=5 // pred_check
      _
    $region34: #{transformer_forward.4} parent=5 // pred_check_branch
      %165 = sbr.rel (%p162) target = $region36
    $region35: #{transformer_forward.4} parent=5 // pred_region
      %s166 = ssub.s32 %s10, 1
      %p167 = scmp.lt.s32.totalorder %s15, 1
      %s168 = scalar_select %p167, %s15, 1
      %s169 = smul.addr %s168, 8
      %s170 = scalar_lea.vmem %s0, %s169
      %p171 = pneg %p36
      %p172 = pneg %p33
      %p173 = pneg %p57
      %p174 = pneg %p54
      %p175 = pneg %p78
      %p176 = pneg %p75
      %p177 = pneg %p99
      %p178 = pneg %p96
      %p179 = pneg %p125
      %p180 = pneg %p122
      %p181 = scmp.lt.s32.totalorder %s15, 1
      %s182 = scalar_select %p181, %s15, 1
      %s183 = smul.addr %s182, 4
      %s184 = scalar_lea.vmem %s4, %s183
      %p185 = scmp.lt.s32.totalorder %s15, 1
      %s186 = scalar_select %p185, %s15, 1
      %s187 = smul.addr %s186, 8
      %s188 = scalar_lea.vmem %s0, %s187
      %p189 = scmp.lt.s32.totalorder %s15, 1
      %s190 = scalar_select %p189, %s15, 1
      %s191 = smul.addr %s190, 4
      %s192 = scalar_lea.vmem %s4, %s191
      %v193 = vld [vmem:[%s188] sm:$0xff]
      %v194 = vld [vmem:[%s1] sm:$0xff]
      %v195 = vadd.f32 %v193, %v194
      %vm196 = vcmask 261120
      %v197 = vsel %vm196, %v195, 0.0
      %198 = vadd.xlane.f32.xlu0 %v197
      %v199 = vpop.xlane.xlu0 %198
      %v200 = vrcp.pop 32.0
      %v201 = vmul.f32 %v199, %v200
      %v202 = vsub.f32 %v195, %v201
      %v203 = vmul.f32 %v202, %v202
      %v204 = vsel %vm196, %v203, 0.0
      %205 = vadd.xlane.f32.xlu0 %v204
      %v206 = vpop.xlane.xlu0 %205
      %v207 = vmul.f32 %v206, %v200
      %v208 = vadd.f32 %v207, 1e-06
      %v209 = vrsqrt.pop %v208
      %v210 = vmul.f32 %v202, %v209
      %v211 = vld [vmem:[%s2] sm:$0x1]
      %v213 = vlaneseq
      %v214 = vshrl.u32 %v213, 7
      %v215 = vsub.s32 0, %v214
      %v216 = vrot.slane %v211, %v215
      %v218 = vmul.f32 %v210, %v216
      %v219 = vld [vmem:[%s3] sm:$0x1]
      %v221 = vlaneseq
      %v222 = vshrl.u32 %v221, 7
      %v223 = vsub.s32 0, %v222
      %v224 = vrot.slane %v219, %v223
      %v226 = vadd.f32 %v218, %v224
      %v227 = vpack.c.bf16 %v226, %v226
      %vm228 = vcmask 257024
      %229 = vst.msk [vmem:[%s192] sm:$0xf] %vm228, %v227
      %p230 = scmp.lt.s32.totalorder %s15, 1
      %s231 = scalar_select %p230, %s15, 1
      %s232 = smul.addr %s231, 4
      %s233 = scalar_lea.vmem %s4, %s232
      // Predicated region
      $region37: #{transformer_forward.4} parent=35 // pred_check
        %p234 = pneg %p122
      $region38: #{transformer_forward.4} parent=35 // pred_check_branch
        %236 = sbr.rel (%p234) target = $region40
      $region39: #{transformer_forward.4} parent=35 // pred_region
        _
      $region40: #{transformer_forward.4} parent=35 // pred_fallthru
        _
    $region36: #{transformer_forward.4} parent=5 // pred_fallthru
      _
    %p237 = scmp.le.s32.totalorder 2, %s10
    // Predicated region
    $region41: #{transformer_forward.4} parent=5 // pred_check
      %p238 = pneg %p237
    $region42: #{transformer_forward.4} parent=5 // pred_check_branch
      %240 = sbr.rel (%p238) target = $region44
    $region43: #{transformer_forward.4} parent=5 // pred_region
      %s241 = ssub.s32 %s10, 2
      // Predicated region
      $region45: #{transformer_forward.4} parent=43 // pred_check
        %p242 = pneg %p128
      $region46: #{transformer_forward.4} parent=43 // pred_check_branch
        %244 = sbr.rel (%p242) target = $region48
      $region47: #{transformer_forward.4} parent=43 // pred_region
        %p245 = scmp.lt.s32.totalorder %s16, 1
        %s246 = scalar_select %p245, %s16, 1
        %s247 = smul.addr %s246, 4
        %s248 = scalar_lea.vmem %s4, %s247
      $region48: #{transformer_forward.4} parent=43 // pred_fallthru
        _
    $region44: #{transformer_forward.4} parent=5 // pred_fallthru
      _
  $region6: #{transformer_forward.4} parent=0 // loop_footer
    %s14 = sadd.s32 1, %s10
  $region7: #{transformer_forward.4} parent=0 // loop_footer_branch
    %9 = sbr.rel target = $region3
  $region8: #{transformer_forward.4} parent=0 // loop_exit
    _

// kernel: transformer_forward.7
$region0: #{transformer_forward.7}
  #allocation0 [shape = 'u32[]', space=smem, size = 0x4, offset = 0x4, fixed_abs, tag = 'smem constant byte address 0x4 - core index']
  #allocation1 [shape = 'u32[144,128]{1,0:T(1,128)}', space=vmem, size = 0x12000, scoped, tag = 'internal scratch']
  %s0 = inlined_call_operand.vmem [shape: bf16[16,32], index: 0, kind: input, shape index: {}]
  %s1 = inlined_call_operand.vmem [shape: bf16[32,16], index: 1, kind: input, shape index: {}]
  %s2 = inlined_call_operand.hbm [shape: f32[16,16], index: 2, kind: output, shape index: {}]
  %s3 = sld [smem:[#allocation0]]
  $region41: #{transformer_forward.7} parent=0
    _
  %s5 = ssub.s32 1, %s3
  %s6 = scalar_select 0, %s5, %s3
  $region1: #{transformer_forward.7} parent=0
    #allocation2 [shape = 'u8[8192]{0}', space=vmem, size = 0x2000, scoped, tag = 'output window, operand 0']
    #allocation3 [shape = 's32[2]{0}', space=sflag, size = 0x8, scoped, tag = 'scoped memory for transformer_forward.7']
    %7 = vsyncpa [#allocation3], 0
    %s8 = scalar_lea.sflag [#allocation3], 1
    %9 = vsyncpa %s8, 0
    loop: start=0, step=1, limit=4
    $region2: #{transformer_forward.7} parent=1 // loop_pre_header
      _
    $region3: #{transformer_forward.7} parent=1 // loop_header
      %s11 = sphi 0, %s15
      %p12 = scmp.ge.s32.totalorder %s11, 4
      %s21 = sphi 0, %s23
      %s24 = sphi 0, %s21
      %s25 = sphi 0, %s24
      %s41 = sphi 0, %s25
      %s45 = sphi 0, %s45
      %s47 = sphi 0, %s45
      %s48 = sphi 0, %s47
      %s62 = sphi 0, %s48
      %s68 = sphi 0, %s70
      %s71 = sphi 0, %s68
      %s72 = sphi 0, %s71
      %s88 = sphi 0, %s72
    $region4: #{transformer_forward.7} parent=1 // loop_header_branch
      %14 = sbr.rel (%p12) target = $region8
    $region5: #{transformer_forward.7} parent=1 // loop_body
      %s16 = ssub.s32 %s11, 1
      %s17 = ssub.s32 %s11, 2
      %s18 = sadd.s32 %s11, 1
      %s19 = ssub.s32 %s11, %s18
      %p20 = scmp.eq.s32.totalorder %s19, 0
      %s22 = sadd.s32 %s21, 1
      %s23 = scalar_select %p20, %s21, %s22
      %p26 = pneg %p20
      %p27 = scmp.eq.s32.totalorder %s11, 1
      %p28 = por %p26, %p27
      %p29 = scmp.ne.s32.totalorder %s21, %s24
      %p30 = scmp.eq.s32.totalorder %s11, 0
      %p31 = por %p29, %p30
      %p32 = scmp.ne.s32.totalorder %s21, %s24
      %p33 = scmp.eq.s32.totalorder %s16, 1
      %p34 = por %p32, %p33
      %p35 = scmp.ne.s32.totalorder %s24, %s25
      %p36 = scmp.eq.s32.totalorder %s16, 0
      %p37 = por %p35, %p36
      %p38 = scmp.ne.s32.totalorder %s24, %s25
      %p39 = scmp.eq.s32.totalorder %s17, 1
      %p40 = por %p38, %p39
      %p42 = scmp.ne.s32.totalorder %s25, %s41
      %p43 = scmp.eq.s32.totalorder %s17, 0
      %p44 = por %p42, %p43
      %s46 = sadd.s32 %s45, 1
      %p49 = scmp.eq.s32.totalorder %s11, 1
      %p50 = scmp.ne.s32.totalorder %s45, %s47
      %p51 = scmp.eq.s32.totalorder %s11, 0
      %p52 = por %p50, %p51
      %p53 = scmp.ne.s32.totalorder %s45, %s47
      %p54 = scmp.eq.s32.totalorder %s16, 1
      %p55 = por %p53, %p54
      %p56 = scmp.ne.s32.totalorder %s47, %s48
      %p57 = scmp.eq.s32.totalorder %s16, 0
      %p58 = por %p56, %p57
      %p59 = scmp.ne.s32.totalorder %s47, %s48
      %p60 = scmp.eq.s32.totalorder %s17, 1
      %p61 = por %p59, %p60
      %p63 = scmp.ne.s32.totalorder %s48, %s62
      %p64 = scmp.eq.s32.totalorder %s17, 0
      %p65 = por %p63, %p64
      %s66 = ssub.s32 %s11, %s18
      %p67 = scmp.eq.s32.totalorder %s66, 0
      %s69 = sadd.s32 %s68, 1
      %s70 = scalar_select %p67, %s68, %s69
      %p73 = pneg %p67
      %p74 = scmp.eq.s32.totalorder %s11, 1
      %p75 = por %p73, %p74
      %p76 = scmp.ne.s32.totalorder %s68, %s71
      %p77 = scmp.eq.s32.totalorder %s11, 0
      %p78 = por %p76, %p77
      %p79 = scmp.ne.s32.totalorder %s68, %s71
      %p80 = scmp.eq.s32.totalorder %s16, 1
      %p81 = por %p79, %p80
      %p82 = scmp.ne.s32.totalorder %s71, %s72
      %p83 = scmp.eq.s32.totalorder %s16, 0
      %p84 = por %p82, %p83
      %p85 = scmp.ne.s32.totalorder %s71, %s72
      %p86 = scmp.eq.s32.totalorder %s17, 1
      %p87 = por %p85, %p86
      %p89 = scmp.ne.s32.totalorder %s72, %s88
      %p90 = scmp.eq.s32.totalorder %s17, 0
      %p91 = por %p89, %p90
      %p92 = scmp.le.s32.totalorder 1, %s11
      %p93 = scmp.lt.s32.totalorder %s11, 3
      %p94 = pnand %p92, %p93
      %p95 = pneg %p94
      // Predicated region
      $region9: #{transformer_forward.7} parent=5 // pred_check
        _
      $region10: #{transformer_forward.7} parent=5 // pred_check_branch
        %97 = sbr.rel (%p94) target = $region12
      $region11: #{transformer_forward.7} parent=5 // pred_region
        %s98 = ssub.s32 %s11, 1
        // Predicated region
        $region13: #{transformer_forward.7} parent=11 // pred_check
          %p99 = pneg %p58
        $region14: #{transformer_forward.7} parent=11 // pred_check_branch
          %101 = sbr.rel (%p99) target = $region16
        $region15: #{transformer_forward.7} parent=11 // pred_region
          _
        $region16: #{transformer_forward.7} parent=11 // pred_fallthru
          _
      $region12: #{transformer_forward.7} parent=5 // pred_fallthru
        _
      %p102 = scmp.lt.s32.totalorder %s11, 2
      // Predicated region
      $region17: #{transformer_forward.7} parent=5 // pred_check
        %p103 = pneg %p102
      $region18: #{transformer_forward.7} parent=5 // pred_check_branch
        %105 = sbr.rel (%p103) target = $region20
      $region19: #{transformer_forward.7} parent=5 // pred_region
        // Predicated region
        $region21: #{transformer_forward.7} parent=19 // pred_check
          %p106 = pneg %p31
        $region22: #{transformer_forward.7} parent=19 // pred_check_branch
          %108 = sbr.rel (%p106) target = $region24
        $region23: #{transformer_forward.7} parent=19 // pred_region
          %p109 = scmp.lt.s32.totalorder %s11, 1
          %s110 = scalar_select %p109, %s11, 1
          %s111 = smul.addr %s110, 4
          %s112 = scalar_lea.vmem %s0, %s111
        $region24: #{transformer_forward.7} parent=19 // pred_fallthru
          _
      $region20: #{transformer_forward.7} parent=5 // pred_fallthru
        _
      %p113 = scmp.le.s32.totalorder 1, %s11
      %p114 = scmp.lt.s32.totalorder %s11, 3
      %p115 = pnand %p113, %p114
      %p116 = pneg %p115
      // Predicated region
      $region25: #{transformer_forward.7} parent=5 // pred_check
        _
      $region26: #{transformer_forward.7} parent=5 // pred_check_branch
        %118 = sbr.rel (%p115) target = $region28
      $region27: #{transformer_forward.7} parent=5 // pred_region
        %s119 = ssub.s32 %s11, 1
        %p120 = scmp.lt.s32.totalorder %s16, 1
        %s121 = scalar_select %p120, %s16, 1
        %s122 = smul.addr %s121, 4
        %s123 = scalar_lea.vmem %s0, %s122
        %p124 = pneg %p37
        %p125 = pneg %p34
        %p126 = pneg %p58
        %p127 = pneg %p55
        %p128 = pneg %p84
        %p129 = pneg %p81
        %s130 = sand.u32 %s71, 1
        %s131 = scalar_lea.sflag [#allocation3], %s130
        %s132 = sand.u32 %s71, 1
        %s133 = smul.addr %s132, 8
        %s134 = scalar_lea.vmem [#allocation2], %s133
        %p135 = scmp.lt.s32.totalorder %s16, 1
        %s136 = scalar_select %p135, %s16, 1
        %s137 = smul.addr %s136, 4
        %s138 = scalar_lea.vmem %s0, %s137
        %v140 = vld [vmem:[%s138] sm:$0xf]
        %v141 = vld [vmem:[%s1] sm:$0xf]
        %v142 = vld [vmem:[%s1 + $0x4] sm:$0xf]
        %v143 = vld [vmem:[%s1 + $0x8] sm:$0xf]
        %v144 = vld [vmem:[%s1 + $0xc] sm:$0xf]
        %v149 = vunpack.c.l.b16 %v141
        %v150 = vunpack.c.l.b16 %v142
        %v151 = vunpack.c.l.b16 %v143
        %v152 = vunpack.c.l.b16 %v144
        %v153 = vpack.c.b16 %v150, %v149
        %v154 = vpack.c.b16 %v152, %v151
        %vm157 = vcmask 261120
        %v159 = vsel %vm157, %v140, 0
        %161 = vmatprep.subr.bf16.mxu0 0
        %162 = vmatpush1.bf16.msra.mxu0 %v153
        %163 = vmatprep.subr.bf16.mxu0 0
        %164 = vmatpush1.bf16.msra.mxu0 %v154
        %165 = vmatprep.subr.bf16.mxu0 0
        %166 = vmatpush1.bf16.msra.mxu0 0
        %167 = vmatprep.subr.bf16.mxu0 0
        %168 = vmatpush1.bf16.msra.mxu0 0
        %169 = vmatprep.subr.bf16.mxu0 0
        %170 = vmatpush1.bf16.msra.mxu0 0
        %171 = vmatprep.subr.bf16.mxu0 0
        %172 = vmatpush1.bf16.msra.mxu0 0
        %173 = vmatprep.subr.bf16.mxu0 0
        %174 = vmatpush1.bf16.msra.mxu0 0
        %175 = vmatprep.subr.bf16.mxu0 0
        %176 = vmatpush1.bf16.msra.mxu0 0
        %177 = vmatprep.subr.bf16.mxu0 0
        %178 = vmatpush1.bf16.msra.mxu0 0
        %179 = vmatprep.subr.bf16.mxu0 0
        %180 = vmatpush1.bf16.msra.mxu0 0
        %181 = vmatprep.subr.bf16.mxu0 0
        %182 = vmatpush1.bf16.msra.mxu0 0
        %183 = vmatprep.subr.bf16.mxu0 0
        %184 = vmatpush1.bf16.msra.mxu0 0
        %185 = vmatprep.subr.bf16.mxu0 0
        %186 = vmatpush1.bf16.msra.mxu0 0
        %187 = vmatprep.subr.bf16.mxu0 0
        %188 = vmatpush1.bf16.msra.mxu0 0
        %189 = vmatprep.subr.bf16.mxu0 0
        %190 = vmatpush1.bf16.msra.mxu0 0
        %191 = vmatprep.subr.bf16.mxu0 0
        %192 = vmatpush1.bf16.msra.mxu0 0
        %193 = vmatprep.mubr.bf16.mxu0 0
        %194 = vmatmul.mubr.bf16.gmra.mrb[0].mxu0 %v159
        %v195 = vpop.f32.mrb[0].mxu0
        %v196 = vadd.f32 0.0, %v195
        %v197 = vpop.f32.mrb[0].mxu0
        %v198 = vpop.f32.mrb[0].mxu0
        %v199 = vpop.f32.mrb[0].mxu0
        %200 = vdwg.mxu0
        %v201 = vmul.f32 %v196, 0.17677669
        %vm202 = vcmask 130048
        %v203 = vsel %vm202, %v201, -inf
        %204 = vmax.xlane.f32.xlu0 %v203
        %v205 = vpop.xlane.xlu0 %204
        %v206 = vsub.f32 %v201, %v205
        %v207 = vmul.f32 %v206, 1.442695
        %v208 = vpow.pop %v207
        %v209 = vsel %vm202, %v208, 0.0
        %210 = vadd.xlane.f32.xlu0 %v209
        %v211 = vpop.xlane.xlu0 %210
        %v212 = vrcp.pop %v211
        %v213 = vmul.f32 %v208, %v212
        %214 = vst.msk [vmem:[%s134] sm:$0xff] %vm202, %v213
        %s215 = sand.u32 %s71, 1
        %s216 = scalar_lea.sflag [#allocation3], %s215
        %s217 = sand.u32 %s71, 1
        %s218 = smul.addr %s217, 8
        %s219 = scalar_lea.vmem [#allocation2], %s218
        // Predicated region
        $region29: #{transformer_forward.7} parent=27 // pred_check
          %p220 = pneg %p81
        $region30: #{transformer_forward.7} parent=27 // pred_check_branch
          %222 = sbr.rel (%p220) target = $region32
        $region31: #{transformer_forward.7} parent=27 // pred_region
          %s224 = ssub.s32 128, 128
          %225 = vsyncadd %s216, %s224
          %s226 = smul.addr %s16, 128
          %s227 = scalar_lea.hbm %s2, %s226
          %s229 = sshll.u32 %s219, 4
          %s230 = int_to_ptr.vmem [resolvable:$true] %s229
          %232 = dma.vmem_to_hbm [thread:$0]  %s230, 128, %s227, %s216
        $region32: #{transformer_forward.7} parent=27 // pred_fallthru
          _
      $region28: #{transformer_forward.7} parent=5 // pred_fallthru
        _
      %p233 = scmp.le.s32.totalorder 2, %s11
      // Predicated region
      $region33: #{transformer_forward.7} parent=5 // pred_check
        %p234 = pneg %p233
      $region34: #{transformer_forward.7} parent=5 // pred_check_branch
        %236 = sbr.rel (%p234) target = $region36
      $region35: #{transformer_forward.7} parent=5 // pred_region
        %s237 = ssub.s32 %s11, 2
        // Predicated region
        $region37: #{transformer_forward.7} parent=35 // pred_check
          %p238 = pneg %p87
        $region38: #{transformer_forward.7} parent=35 // pred_check_branch
          %240 = sbr.rel (%p238) target = $region40
        $region39: #{transformer_forward.7} parent=35 // pred_region
          %s241 = sand.u32 %s72, 1
          %s242 = scalar_lea.sflag [#allocation3], %s241
          %s243 = sand.u32 %s72, 1
          %s244 = smul.addr %s243, 8
          %s245 = scalar_lea.vmem [#allocation2], %s244
          %246 = dma.done %s242, 128
        $region40: #{transformer_forward.7} parent=35 // pred_fallthru
          _
      $region36: #{transformer_forward.7} parent=5 // pred_fallthru
        _
    $region6: #{transformer_forward.7} parent=1 // loop_footer
      %s15 = sadd.s32 1, %s11
    $region7: #{transformer_forward.7} parent=1 // loop_footer_branch
      %10 = sbr.rel target = $region3
    $region8: #{transformer_forward.7} parent=1 // loop_exit
      _
    %247 = vsyncpa [#allocation3], 1
    %s248 = scalar_lea.sflag [#allocation3], 1
    %249 = vsyncpa %s248, 1

// kernel: transformer_forward.5
$region0: #{transformer_forward.5}
  #allocation0 [shape = 'u32[]', space=smem, size = 0x4, offset = 0x4, fixed_abs, tag = 'smem constant byte address 0x4 - core index']
  #allocation1 [shape = 'u32[144,128]{1,0:T(1,128)}', space=vmem, size = 0x12000, scoped, tag = 'internal scratch']
  %s0 = inlined_call_operand.vmem [shape: bf16[2,8,32], index: 0, kind: input, shape index: {}]
  %s1 = inlined_call_operand.vmem [shape: bf16[2,8,32], index: 1, kind: input, shape index: {}]
  %s2 = inlined_call_operand.vmem [shape: f32[2,8,8], index: 2, kind: input, shape index: {}]
  %s3 = inlined_call_operand.vmem [shape: bf16[32,384], index: 3, kind: input, shape index: {}]
  %s4 = inlined_call_operand.vmem [shape: bf16[128,32], index: 4, kind: input, shape index: {}]
  %s5 = inlined_call_operand.vmem [shape: f32[1,32], index: 5, kind: input, shape index: {}]
  %s6 = inlined_call_operand.vmem [shape: f32[1,32], index: 6, kind: input, shape index: {}]
  %s7 = inlined_call_operand.vmem [shape: bf16[32,128], index: 7, kind: input, shape index: {}]
  %s8 = inlined_call_operand.vmem [shape: bf16[32,256], index: 8, kind: input, shape index: {}]
  %s9 = inlined_call_operand.vmem [shape: bf16[128,32], index: 9, kind: input, shape index: {}]
  %s10 = inlined_call_operand.vmem [shape: f32[1,32], index: 10, kind: input, shape index: {}]
  %s11 = inlined_call_operand.vmem [shape: f32[1,32], index: 11, kind: input, shape index: {}]
  %s12 = inlined_call_operand.vmem [shape: bf16[32,2048], index: 12, kind: input, shape index: {}]
  %s13 = inlined_call_operand.vmem [shape: f32[1,2048], index: 13, kind: input, shape index: {}]
  %s14 = inlined_call_operand.vmem [shape: bf16[2048,32], index: 14, kind: input, shape index: {}]
  %s15 = inlined_call_operand.vmem [shape: f32[1,32], index: 15, kind: input, shape index: {}]
  %s16 = inlined_call_operand.vmem [shape: f32[1,32], index: 16, kind: input, shape index: {}]
  %s17 = inlined_call_operand.vmem [shape: f32[1,32], index: 17, kind: input, shape index: {}]
  %s18 = inlined_call_operand.vmem [shape: bf16[2,8,32], index: 18, kind: output, shape index: {0}]
  %s19 = inlined_call_operand.hbm [shape: f32[2,2,8,8], index: 19, kind: output, shape index: {1}]
  %20 = xla_tuple %s18, %s19
  %s21 = sld [smem:[#allocation0]]
  $region113: #{transformer_forward.5} parent=0
    _
  %s23 = ssub.s32 1, %s21
  %s24 = scalar_select 0, %s23, %s21
  $region1: #{transformer_forward.5} parent=0
    #allocation2 [shape = 'u8[16384]{0}', space=vmem, size = 0x4000, scoped, tag = 'output window, operand 1']
    #allocation3 [shape = 's32[2]{0}', space=sflag, size = 0x8, scoped, tag = 'scoped memory for transformer_forward.5']
    %25 = vsyncpa [#allocation3], 0
    %s26 = scalar_lea.sflag [#allocation3], 1
    %27 = vsyncpa %s26, 0
    loop: start=0, step=1, limit=4
    $region2: #{transformer_forward.5} parent=1 // loop_pre_header
      _
    $region3: #{transformer_forward.5} parent=1 // loop_header
      %s29 = sphi 0, %s33
      %p30 = scmp.ge.s32.totalorder %s29, 4
      %s39 = sphi 0, %s41
      %s42 = sphi 0, %s39
      %s43 = sphi 0, %s42
      %s59 = sphi 0, %s43
      %s65 = sphi 0, %s67
      %s68 = sphi 0, %s65
      %s69 = sphi 0, %s68
      %s85 = sphi 0, %s69
      %s91 = sphi 0, %s93
      %s94 = sphi 0, %s91
      %s95 = sphi 0, %s94
      %s111 = sphi 0, %s95
      %s115 = sphi 0, %s115
      %s117 = sphi 0, %s115
      %s118 = sphi 0, %s117
      %s132 = sphi 0, %s118
      %s136 = sphi 0, %s136
      %s138 = sphi 0, %s136
      %s139 = sphi 0, %s138
      %s153 = sphi 0, %s139
      %s157 = sphi 0, %s157
      %s159 = sphi 0, %s157
      %s160 = sphi 0, %s159
      %s174 = sphi 0, %s160
      %s178 = sphi 0, %s178
      %s180 = sphi 0, %s178
      %s181 = sphi 0, %s180
      %s195 = sphi 0, %s181
      %s199 = sphi 0, %s199
      %s201 = sphi 0, %s199
      %s202 = sphi 0, %s201
      %s216 = sphi 0, %s202
      %s220 = sphi 0, %s220
      %s222 = sphi 0, %s220
      %s223 = sphi 0, %s222
      %s237 = sphi 0, %s223
      %s241 = sphi 0, %s241
      %s243 = sphi 0, %s241
      %s244 = sphi 0, %s243
      %s258 = sphi 0, %s244
      %s262 = sphi 0, %s262
      %s264 = sphi 0, %s262
      %s265 = sphi 0, %s264
      %s279 = sphi 0, %s265
      %s283 = sphi 0, %s283
      %s285 = sphi 0, %s283
      %s286 = sphi 0, %s285
      %s300 = sphi 0, %s286
      %s304 = sphi 0, %s304
      %s306 = sphi 0, %s304
      %s307 = sphi 0, %s306
      %s321 = sphi 0, %s307
      %s325 = sphi 0, %s325
      %s327 = sphi 0, %s325
      %s328 = sphi 0, %s327
      %s342 = sphi 0, %s328
      %s346 = sphi 0, %s346
      %s348 = sphi 0, %s346
      %s349 = sphi 0, %s348
      %s363 = sphi 0, %s349
      %s367 = sphi 0, %s367
      %s369 = sphi 0, %s367
      %s370 = sphi 0, %s369
      %s384 = sphi 0, %s370
      %s388 = sphi 0, %s388
      %s390 = sphi 0, %s388
      %s391 = sphi 0, %s390
      %s405 = sphi 0, %s391
      %s409 = sphi 0, %s409
      %s411 = sphi 0, %s409
      %s412 = sphi 0, %s411
      %s426 = sphi 0, %s412
      %s432 = sphi 0, %s434
      %s435 = sphi 0, %s432
      %s436 = sphi 0, %s435
      %s452 = sphi 0, %s436
      %s458 = sphi 0, %s460
      %s461 = sphi 0, %s458
      %s462 = sphi 0, %s461
      %s478 = sphi 0, %s462
    $region4: #{transformer_forward.5} parent=1 // loop_header_branch
      %32 = sbr.rel (%p30) target = $region8
    $region5: #{transformer_forward.5} parent=1 // loop_body
      %s34 = ssub.s32 %s29, 1
      %s35 = ssub.s32 %s29, 2
      %s36 = sadd.s32 %s29, 1
      %s37 = ssub.s32 %s29, %s36
      %p38 = scmp.eq.s32.totalorder %s37, 0
      %s40 = sadd.s32 %s39, 1
      %s41 = scalar_select %p38, %s39, %s40
      %p44 = pneg %p38
      %p45 = scmp.eq.s32.totalorder %s29, 1
      %p46 = por %p44, %p45
      %p47 = scmp.ne.s32.totalorder %s39, %s42
      %p48 = scmp.eq.s32.totalorder %s29, 0
      %p49 = por %p47, %p48
      %p50 = scmp.ne.s32.totalorder %s39, %s42
      %p51 = scmp.eq.s32.totalorder %s34, 1
      %p52 = por %p50, %p51
      %p53 = scmp.ne.s32.totalorder %s42, %s43
      %p54 = scmp.eq.s32.totalorder %s34, 0
      %p55 = por %p53, %p54
      %p56 = scmp.ne.s32.totalorder %s42, %s43
      %p57 = scmp.eq.s32.totalorder %s35, 1
      %p58 = por %p56, %p57
      %p60 = scmp.ne.s32.totalorder %s43, %s59
      %p61 = scmp.eq.s32.totalorder %s35, 0
      %p62 = por %p60, %p61
      %s63 = ssub.s32 %s29, %s36
      %p64 = scmp.eq.s32.totalorder %s63, 0
      %s66 = sadd.s32 %s65, 1
      %s67 = scalar_select %p64, %s65, %s66
      %p70 = pneg %p64
      %p71 = scmp.eq.s32.totalorder %s29, 1
      %p72 = por %p70, %p71
      %p73 = scmp.ne.s32.totalorder %s65, %s68
      %p74 = scmp.eq.s32.totalorder %s29, 0
      %p75 = por %p73, %p74
      %p76 = scmp.ne.s32.totalorder %s65, %s68
      %p77 = scmp.eq.s32.totalorder %s34, 1
      %p78 = por %p76, %p77
      %p79 = scmp.ne.s32.totalorder %s68, %s69
      %p80 = scmp.eq.s32.totalorder %s34, 0
      %p81 = por %p79, %p80
      %p82 = scmp.ne.s32.totalorder %s68, %s69
      %p83 = scmp.eq.s32.totalorder %s35, 1
      %p84 = por %p82, %p83
      %p86 = scmp.ne.s32.totalorder %s69, %s85
      %p87 = scmp.eq.s32.totalorder %s35, 0
      %p88 = por %p86, %p87
      %s89 = ssub.s32 %s29, %s36
      %p90 = scmp.eq.s32.totalorder %s89, 0
      %s92 = sadd.s32 %s91, 1
      %s93 = scalar_select %p90, %s91, %s92
      %p96 = pneg %p90
      %p97 = scmp.eq.s32.totalorder %s29, 1
      %p98 = por %p96, %p97
      %p99 = scmp.ne.s32.totalorder %s91, %s94
      %p100 = scmp.eq.s32.totalorder %s29, 0
      %p101 = por %p99, %p100
      %p102 = scmp.ne.s32.totalorder %s91, %s94
      %p103 = scmp.eq.s32.totalorder %s34, 1
      %p104 = por %p102, %p103
      %p105 = scmp.ne.s32.totalorder %s94, %s95
      %p106 = scmp.eq.s32.totalorder %s34, 0
      %p107 = por %p105, %p106
      %p108 = scmp.ne.s32.totalorder %s94, %s95
      %p109 = scmp.eq.s32.totalorder %s35, 1
      %p110 = por %p108, %p109
      %p112 = scmp.ne.s32.totalorder %s95, %s111
      %p113 = scmp.eq.s32.totalorder %s35, 0
      %p114 = por %p112, %p113
      %s116 = sadd.s32 %s115, 1
      %p119 = scmp.eq.s32.totalorder %s29, 1
      %p120 = scmp.ne.s32.totalorder %s115, %s117
      %p121 = scmp.eq.s32.totalorder %s29, 0
      %p122 = por %p120, %p121
      %p123 = scmp.ne.s32.totalorder %s115, %s117
      %p124 = scmp.eq.s32.totalorder %s34, 1
      %p125 = por %p123, %p124
      %p126 = scmp.ne.s32.totalorder %s117, %s118
      %p127 = scmp.eq.s32.totalorder %s34, 0
      %p128 = por %p126, %p127
      %p129 = scmp.ne.s32.totalorder %s117, %s118
      %p130 = scmp.eq.s32.totalorder %s35, 1
      %p131 = por %p129, %p130
      %p133 = scmp.ne.s32.totalorder %s118, %s132
      %p134 = scmp.eq.s32.totalorder %s35, 0
      %p135 = por %p133, %p134
      %s137 = sadd.s32 %s136, 1
      %p140 = scmp.eq.s32.totalorder %s29, 1
      %p141 = scmp.ne.s32.totalorder %s136, %s138
      %p142 = scmp.eq.s32.totalorder %s29, 0
      %p143 = por %p141, %p142
      %p144 = scmp.ne.s32.totalorder %s136, %s138
      %p145 = scmp.eq.s32.totalorder %s34, 1
      %p146 = por %p144, %p145
      %p147 = scmp.ne.s32.totalorder %s138, %s139
      %p148 = scmp.eq.s32.totalorder %s34, 0
      %p149 = por %p147, %p148
      %p150 = scmp.ne.s32.totalorder %s138, %s139
      %p151 = scmp.eq.s32.totalorder %s35, 1
      %p152 = por %p150, %p151
      %p154 = scmp.ne.s32.totalorder %s139, %s153
      %p155 = scmp.eq.s32.totalorder %s35, 0
      %p156 = por %p154, %p155
      %s158 = sadd.s32 %s157, 1
      %p161 = scmp.eq.s32.totalorder %s29, 1
      %p162 = scmp.ne.s32.totalorder %s157, %s159
      %p163 = scmp.eq.s32.totalorder %s29, 0
      %p164 = por %p162, %p163
      %p165 = scmp.ne.s32.totalorder %s157, %s159
      %p166 = scmp.eq.s32.totalorder %s34, 1
      %p167 = por %p165, %p166
      %p168 = scmp.ne.s32.totalorder %s159, %s160
      %p169 = scmp.eq.s32.totalorder %s34, 0
      %p170 = por %p168, %p169
      %p171 = scmp.ne.s32.totalorder %s159, %s160
      %p172 = scmp.eq.s32.totalorder %s35, 1
      %p173 = por %p171, %p172
      %p175 = scmp.ne.s32.totalorder %s160, %s174
      %p176 = scmp.eq.s32.totalorder %s35, 0
      %p177 = por %p175, %p176
      %s179 = sadd.s32 %s178, 1
      %p182 = scmp.eq.s32.totalorder %s29, 1
      %p183 = scmp.ne.s32.totalorder %s178, %s180
      %p184 = scmp.eq.s32.totalorder %s29, 0
      %p185 = por %p183, %p184
      %p186 = scmp.ne.s32.totalorder %s178, %s180
      %p187 = scmp.eq.s32.totalorder %s34, 1
      %p188 = por %p186, %p187
      %p189 = scmp.ne.s32.totalorder %s180, %s181
      %p190 = scmp.eq.s32.totalorder %s34, 0
      %p191 = por %p189, %p190
      %p192 = scmp.ne.s32.totalorder %s180, %s181
      %p193 = scmp.eq.s32.totalorder %s35, 1
      %p194 = por %p192, %p193
      %p196 = scmp.ne.s32.totalorder %s181, %s195
      %p197 = scmp.eq.s32.totalorder %s35, 0
      %p198 = por %p196, %p197
      %s200 = sadd.s32 %s199, 1
      %p203 = scmp.eq.s32.totalorder %s29, 1
      %p204 = scmp.ne.s32.totalorder %s199, %s201
      %p205 = scmp.eq.s32.totalorder %s29, 0
      %p206 = por %p204, %p205
      %p207 = scmp.ne.s32.totalorder %s199, %s201
      %p208 = scmp.eq.s32.totalorder %s34, 1
      %p209 = por %p207, %p208
      %p210 = scmp.ne.s32.totalorder %s201, %s202
      %p211 = scmp.eq.s32.totalorder %s34, 0
      %p212 = por %p210, %p211
      %p213 = scmp.ne.s32.totalorder %s201, %s202
      %p214 = scmp.eq.s32.totalorder %s35, 1
      %p215 = por %p213, %p214
      %p217 = scmp.ne.s32.totalorder %s202, %s216
      %p218 = scmp.eq.s32.totalorder %s35, 0
      %p219 = por %p217, %p218
      %s221 = sadd.s32 %s220, 1
      %p224 = scmp.eq.s32.totalorder %s29, 1
      %p225 = scmp.ne.s32.totalorder %s220, %s222
      %p226 = scmp.eq.s32.totalorder %s29, 0
      %p227 = por %p225, %p226
      %p228 = scmp.ne.s32.totalorder %s220, %s222
      %p229 = scmp.eq.s32.totalorder %s34, 1
      %p230 = por %p228, %p229
      %p231 = scmp.ne.s32.totalorder %s222, %s223
      %p232 = scmp.eq.s32.totalorder %s34, 0
      %p233 = por %p231, %p232
      %p234 = scmp.ne.s32.totalorder %s222, %s223
      %p235 = scmp.eq.s32.totalorder %s35, 1
      %p236 = por %p234, %p235
      %p238 = scmp.ne.s32.totalorder %s223, %s237
      %p239 = scmp.eq.s32.totalorder %s35, 0
      %p240 = por %p238, %p239
      %s242 = sadd.s32 %s241, 1
      %p245 = scmp.eq.s32.totalorder %s29, 1
      %p246 = scmp.ne.s32.totalorder %s241, %s243
      %p247 = scmp.eq.s32.totalorder %s29, 0
      %p248 = por %p246, %p247
      %p249 = scmp.ne.s32.totalorder %s241, %s243
      %p250 = scmp.eq.s32.totalorder %s34, 1
      %p251 = por %p249, %p250
      %p252 = scmp.ne.s32.totalorder %s243, %s244
      %p253 = scmp.eq.s32.totalorder %s34, 0
      %p254 = por %p252, %p253
      %p255 = scmp.ne.s32.totalorder %s243, %s244
      %p256 = scmp.eq.s32.totalorder %s35, 1
      %p257 = por %p255, %p256
      %p259 = scmp.ne.s32.totalorder %s244, %s258
      %p260 = scmp.eq.s32.totalorder %s35, 0
      %p261 = por %p259, %p260
      %s263 = sadd.s32 %s262, 1
      %p266 = scmp.eq.s32.totalorder %s29, 1
      %p267 = scmp.ne.s32.totalorder %s262, %s264
      %p268 = scmp.eq.s32.totalorder %s29, 0
      %p269 = por %p267, %p268
      %p270 = scmp.ne.s32.totalorder %s262, %s264
      %p271 = scmp.eq.s32.totalorder %s34, 1
      %p272 = por %p270, %p271
      %p273 = scmp.ne.s32.totalorder %s264, %s265
      %p274 = scmp.eq.s32.totalorder %s34, 0
      %p275 = por %p273, %p274
      %p276 = scmp.ne.s32.totalorder %s264, %s265
      %p277 = scmp.eq.s32.totalorder %s35, 1
      %p278 = por %p276, %p277
      %p280 = scmp.ne.s32.totalorder %s265, %s279
      %p281 = scmp.eq.s32.totalorder %s35, 0
      %p282 = por %p280, %p281
      %s284 = sadd.s32 %s283, 1
      %p287 = scmp.eq.s32.totalorder %s29, 1
      %p288 = scmp.ne.s32.totalorder %s283, %s285
      %p289 = scmp.eq.s32.totalorder %s29, 0
      %p290 = por %p288, %p289
      %p291 = scmp.ne.s32.totalorder %s283, %s285
      %p292 = scmp.eq.s32.totalorder %s34, 1
      %p293 = por %p291, %p292
      %p294 = scmp.ne.s32.totalorder %s285, %s286
      %p295 = scmp.eq.s32.totalorder %s34, 0
      %p296 = por %p294, %p295
      %p297 = scmp.ne.s32.totalorder %s285, %s286
      %p298 = scmp.eq.s32.totalorder %s35, 1
      %p299 = por %p297, %p298
      %p301 = scmp.ne.s32.totalorder %s286, %s300
      %p302 = scmp.eq.s32.totalorder %s35, 0
      %p303 = por %p301, %p302
      %s305 = sadd.s32 %s304, 1
      %p308 = scmp.eq.s32.totalorder %s29, 1
      %p309 = scmp.ne.s32.totalorder %s304, %s306
      %p310 = scmp.eq.s32.totalorder %s29, 0
      %p311 = por %p309, %p310
      %p312 = scmp.ne.s32.totalorder %s304, %s306
      %p313 = scmp.eq.s32.totalorder %s34, 1
      %p314 = por %p312, %p313
      %p315 = scmp.ne.s32.totalorder %s306, %s307
      %p316 = scmp.eq.s32.totalorder %s34, 0
      %p317 = por %p315, %p316
      %p318 = scmp.ne.s32.totalorder %s306, %s307
      %p319 = scmp.eq.s32.totalorder %s35, 1
      %p320 = por %p318, %p319
      %p322 = scmp.ne.s32.totalorder %s307, %s321
      %p323 = scmp.eq.s32.totalorder %s35, 0
      %p324 = por %p322, %p323
      %s326 = sadd.s32 %s325, 1
      %p329 = scmp.eq.s32.totalorder %s29, 1
      %p330 = scmp.ne.s32.totalorder %s325, %s327
      %p331 = scmp.eq.s32.totalorder %s29, 0
      %p332 = por %p330, %p331
      %p333 = scmp.ne.s32.totalorder %s325, %s327
      %p334 = scmp.eq.s32.totalorder %s34, 1
      %p335 = por %p333, %p334
      %p336 = scmp.ne.s32.totalorder %s327, %s328
      %p337 = scmp.eq.s32.totalorder %s34, 0
      %p338 = por %p336, %p337
      %p339 = scmp.ne.s32.totalorder %s327, %s328
      %p340 = scmp.eq.s32.totalorder %s35, 1
      %p341 = por %p339, %p340
      %p343 = scmp.ne.s32.totalorder %s328, %s342
      %p344 = scmp.eq.s32.totalorder %s35, 0
      %p345 = por %p343, %p344
      %s347 = sadd.s32 %s346, 1
      %p350 = scmp.eq.s32.totalorder %s29, 1
      %p351 = scmp.ne.s32.totalorder %s346, %s348
      %p352 = scmp.eq.s32.totalorder %s29, 0
      %p353 = por %p351, %p352
      %p354 = scmp.ne.s32.totalorder %s346, %s348
      %p355 = scmp.eq.s32.totalorder %s34, 1
      %p356 = por %p354, %p355
      %p357 = scmp.ne.s32.totalorder %s348, %s349
      %p358 = scmp.eq.s32.totalorder %s34, 0
      %p359 = por %p357, %p358
      %p360 = scmp.ne.s32.totalorder %s348, %s349
      %p361 = scmp.eq.s32.totalorder %s35, 1
      %p362 = por %p360, %p361
      %p364 = scmp.ne.s32.totalorder %s349, %s363
      %p365 = scmp.eq.s32.totalorder %s35, 0
      %p366 = por %p364, %p365
      %s368 = sadd.s32 %s367, 1
      %p371 = scmp.eq.s32.totalorder %s29, 1
      %p372 = scmp.ne.s32.totalorder %s367, %s369
      %p373 = scmp.eq.s32.totalorder %s29, 0
      %p374 = por %p372, %p373
      %p375 = scmp.ne.s32.totalorder %s367, %s369
      %p376 = scmp.eq.s32.totalorder %s34, 1
      %p377 = por %p375, %p376
      %p378 = scmp.ne.s32.totalorder %s369, %s370
      %p379 = scmp.eq.s32.totalorder %s34, 0
      %p380 = por %p378, %p379
      %p381 = scmp.ne.s32.totalorder %s369, %s370
      %p382 = scmp.eq.s32.totalorder %s35, 1
      %p383 = por %p381, %p382
      %p385 = scmp.ne.s32.totalorder %s370, %s384
      %p386 = scmp.eq.s32.totalorder %s35, 0
      %p387 = por %p385, %p386
      %s389 = sadd.s32 %s388, 1
      %p392 = scmp.eq.s32.totalorder %s29, 1
      %p393 = scmp.ne.s32.totalorder %s388, %s390
      %p394 = scmp.eq.s32.totalorder %s29, 0
      %p395 = por %p393, %p394
      %p396 = scmp.ne.s32.totalorder %s388, %s390
      %p397 = scmp.eq.s32.totalorder %s34, 1
      %p398 = por %p396, %p397
      %p399 = scmp.ne.s32.totalorder %s390, %s391
      %p400 = scmp.eq.s32.totalorder %s34, 0
      %p401 = por %p399, %p400
      %p402 = scmp.ne.s32.totalorder %s390, %s391
      %p403 = scmp.eq.s32.totalorder %s35, 1
      %p404 = por %p402, %p403
      %p406 = scmp.ne.s32.totalorder %s391, %s405
      %p407 = scmp.eq.s32.totalorder %s35, 0
      %p408 = por %p406, %p407
      %s410 = sadd.s32 %s409, 1
      %p413 = scmp.eq.s32.totalorder %s29, 1
      %p414 = scmp.ne.s32.totalorder %s409, %s411
      %p415 = scmp.eq.s32.totalorder %s29, 0
      %p416 = por %p414, %p415
      %p417 = scmp.ne.s32.totalorder %s409, %s411
      %p418 = scmp.eq.s32.totalorder %s34, 1
      %p419 = por %p417, %p418
      %p420 = scmp.ne.s32.totalorder %s411, %s412
      %p421 = scmp.eq.s32.totalorder %s34, 0
      %p422 = por %p420, %p421
      %p423 = scmp.ne.s32.totalorder %s411, %s412
      %p424 = scmp.eq.s32.totalorder %s35, 1
      %p425 = por %p423, %p424
      %p427 = scmp.ne.s32.totalorder %s412, %s426
      %p428 = scmp.eq.s32.totalorder %s35, 0
      %p429 = por %p427, %p428
      %s430 = ssub.s32 %s29, %s36
      %p431 = scmp.eq.s32.totalorder %s430, 0
      %s433 = sadd.s32 %s432, 1
      %s434 = scalar_select %p431, %s432, %s433
      %p437 = pneg %p431
      %p438 = scmp.eq.s32.totalorder %s29, 1
      %p439 = por %p437, %p438
      %p440 = scmp.ne.s32.totalorder %s432, %s435
      %p441 = scmp.eq.s32.totalorder %s29, 0
      %p442 = por %p440, %p441
      %p443 = scmp.ne.s32.totalorder %s432, %s435
      %p444 = scmp.eq.s32.totalorder %s34, 1
      %p445 = por %p443, %p444
      %p446 = scmp.ne.s32.totalorder %s435, %s436
      %p447 = scmp.eq.s32.totalorder %s34, 0
      %p448 = por %p446, %p447
      %p449 = scmp.ne.s32.totalorder %s435, %s436
      %p450 = scmp.eq.s32.totalorder %s35, 1
      %p451 = por %p449, %p450
      %p453 = scmp.ne.s32.totalorder %s436, %s452
      %p454 = scmp.eq.s32.totalorder %s35, 0
      %p455 = por %p453, %p454
      %s456 = ssub.s32 %s29, %s36
      %p457 = scmp.eq.s32.totalorder %s456, 0
      %s459 = sadd.s32 %s458, 1
      %s460 = scalar_select %p457, %s458, %s459
      %p463 = pneg %p457
      %p464 = scmp.eq.s32.totalorder %s29, 1
      %p465 = por %p463, %p464
      %p466 = scmp.ne.s32.totalorder %s458, %s461
      %p467 = scmp.eq.s32.totalorder %s29, 0
      %p468 = por %p466, %p467
      %p469 = scmp.ne.s32.totalorder %s458, %s461
      %p470 = scmp.eq.s32.totalorder %s34, 1
      %p471 = por %p469, %p470
      %p472 = scmp.ne.s32.totalorder %s461, %s462
      %p473 = scmp.eq.s32.totalorder %s34, 0
      %p474 = por %p472, %p473
      %p475 = scmp.ne.s32.totalorder %s461, %s462
      %p476 = scmp.eq.s32.totalorder %s35, 1
      %p477 = por %p475, %p476
      %p479 = scmp.ne.s32.totalorder %s462, %s478
      %p480 = scmp.eq.s32.totalorder %s35, 0
      %p481 = por %p479, %p480
      %p482 = scmp.le.s32.totalorder 1, %s29
      %p483 = scmp.lt.s32.totalorder %s29, 3
      %p484 = pnand %p482, %p483
      %p485 = pneg %p484
      // Predicated region
      $region9: #{transformer_forward.5} parent=5 // pred_check
        _
      $region10: #{transformer_forward.5} parent=5 // pred_check_branch
        %487 = sbr.rel (%p484) target = $region12
      $region11: #{transformer_forward.5} parent=5 // pred_region
        %s488 = ssub.s32 %s29, 1
        // Predicated region
        $region13: #{transformer_forward.5} parent=11 // pred_check
          %p489 = pneg %p128
        $region14: #{transformer_forward.5} parent=11 // pred_check_branch
          %491 = sbr.rel (%p489) target = $region16
        $region15: #{transformer_forward.5} parent=11 // pred_region
          _
        $region16: #{transformer_forward.5} parent=11 // pred_fallthru
          _
        // Predicated region
        $region17: #{transformer_forward.5} parent=11 // pred_check
          %p492 = pneg %p149
        $region18: #{transformer_forward.5} parent=11 // pred_check_branch
          %494 = sbr.rel (%p492) target = $region20
        $region19: #{transformer_forward.5} parent=11 // pred_region
          _
        $region20: #{transformer_forward.5} parent=11 // pred_fallthru
          _
        // Predicated region
        $region21: #{transformer_forward.5} parent=11 // pred_check
          %p495 = pneg %p170
        $region22: #{transformer_forward.5} parent=11 // pred_check_branch
          %497 = sbr.rel (%p495) target = $region24
        $region23: #{transformer_forward.5} parent=11 // pred_region
          _
        $region24: #{transformer_forward.5} parent=11 // pred_fallthru
          _
        // Predicated region
        $region25: #{transformer_forward.5} parent=11 // pred_check
          %p498 = pneg %p191
        $region26: #{transformer_forward.5} parent=11 // pred_check_branch
          %500 = sbr.rel (%p498) target = $region28
        $region27: #{transformer_forward.5} parent=11 // pred_region
          _
        $region28: #{transformer_forward.5} parent=11 // pred_fallthru
          _
        // Predicated region
        $region29: #{transformer_forward.5} parent=11 // pred_check
          %p501 = pneg %p212
        $region30: #{transformer_forward.5} parent=11 // pred_check_branch
          %503 = sbr.rel (%p501) target = $region32
        $region31: #{transformer_forward.5} parent=11 // pred_region
          _
        $region32: #{transformer_forward.5} parent=11 // pred_fallthru
          _
        // Predicated region
        $region33: #{transformer_forward.5} parent=11 // pred_check
          %p504 = pneg %p233
        $region34: #{transformer_forward.5} parent=11 // pred_check_branch
          %506 = sbr.rel (%p504) target = $region36
        $region35: #{transformer_forward.5} parent=11 // pred_region
          _
        $region36: #{transformer_forward.5} parent=11 // pred_fallthru
          _
        // Predicated region
        $region37: #{transformer_forward.5} parent=11 // pred_check
          %p507 = pneg %p254
        $region38: #{transformer_forward.5} parent=11 // pred_check_branch
          %509 = sbr.rel (%p507) target = $region40
        $region39: #{transformer_forward.5} parent=11 // pred_region
          _
        $region40: #{transformer_forward.5} parent=11 // pred_fallthru
          _
        // Predicated region
        $region41: #{transformer_forward.5} parent=11 // pred_check
          %p510 = pneg %p275
        $region42: #{transformer_forward.5} parent=11 // pred_check_branch
          %512 = sbr.rel (%p510) target = $region44
        $region43: #{transformer_forward.5} parent=11 // pred_region
          _
        $region44: #{transformer_forward.5} parent=11 // pred_fallthru
          _
        // Predicated region
        $region45: #{transformer_forward.5} parent=11 // pred_check
          %p513 = pneg %p296
        $region46: #{transformer_forward.5} parent=11 // pred_check_branch
          %515 = sbr.rel (%p513) target = $region48
        $region47: #{transformer_forward.5} parent=11 // pred_region
          _
        $region48: #{transformer_forward.5} parent=11 // pred_fallthru
          _
        // Predicated region
        $region49: #{transformer_forward.5} parent=11 // pred_check
          %p516 = pneg %p317
        $region50: #{transformer_forward.5} parent=11 // pred_check_branch
          %518 = sbr.rel (%p516) target = $region52
        $region51: #{transformer_forward.5} parent=11 // pred_region
          _
        $region52: #{transformer_forward.5} parent=11 // pred_fallthru
          _
        // Predicated region
        $region53: #{transformer_forward.5} parent=11 // pred_check
          %p519 = pneg %p338
        $region54: #{transformer_forward.5} parent=11 // pred_check_branch
          %521 = sbr.rel (%p519) target = $region56
        $region55: #{transformer_forward.5} parent=11 // pred_region
          _
        $region56: #{transformer_forward.5} parent=11 // pred_fallthru
          _
        // Predicated region
        $region57: #{transformer_forward.5} parent=11 // pred_check
          %p522 = pneg %p359
        $region58: #{transformer_forward.5} parent=11 // pred_check_branch
          %524 = sbr.rel (%p522) target = $region60
        $region59: #{transformer_forward.5} parent=11 // pred_region
          _
        $region60: #{transformer_forward.5} parent=11 // pred_fallthru
          _
        // Predicated region
        $region61: #{transformer_forward.5} parent=11 // pred_check
          %p525 = pneg %p380
        $region62: #{transformer_forward.5} parent=11 // pred_check_branch
          %527 = sbr.rel (%p525) target = $region64
        $region63: #{transformer_forward.5} parent=11 // pred_region
          _
        $region64: #{transformer_forward.5} parent=11 // pred_fallthru
          _
        // Predicated region
        $region65: #{transformer_forward.5} parent=11 // pred_check
          %p528 = pneg %p401
        $region66: #{transformer_forward.5} parent=11 // pred_check_branch
          %530 = sbr.rel (%p528) target = $region68
        $region67: #{transformer_forward.5} parent=11 // pred_region
          _
        $region68: #{transformer_forward.5} parent=11 // pred_fallthru
          _
        // Predicated region
        $region69: #{transformer_forward.5} parent=11 // pred_check
          %p531 = pneg %p422
        $region70: #{transformer_forward.5} parent=11 // pred_check_branch
          %533 = sbr.rel (%p531) target = $region72
        $region71: #{transformer_forward.5} parent=11 // pred_region
          _
        $region72: #{transformer_forward.5} parent=11 // pred_fallthru
          _
      $region12: #{transformer_forward.5} parent=5 // pred_fallthru
        _
      %p534 = scmp.lt.s32.totalorder %s29, 2
      // Predicated region
      $region73: #{transformer_forward.5} parent=5 // pred_check
        %p535 = pneg %p534
      $region74: #{transformer_forward.5} parent=5 // pred_check_branch
        %537 = sbr.rel (%p535) target = $region76
      $region75: #{transformer_forward.5} parent=5 // pred_region
        // Predicated region
        $region77: #{transformer_forward.5} parent=75 // pred_check
          %p538 = pneg %p49
        $region78: #{transformer_forward.5} parent=75 // pred_check_branch
          %540 = sbr.rel (%p538) target = $region80
        $region79: #{transformer_forward.5} parent=75 // pred_region
          %p541 = scmp.lt.s32.totalorder %s29, 1
          %s542 = scalar_select %p541, %s29, 1
          %s543 = smul.addr %s542, 4
          %s544 = scalar_lea.vmem %s0, %s543
        $region80: #{transformer_forward.5} parent=75 // pred_fallthru
          _
        // Predicated region
        $region81: #{transformer_forward.5} parent=75 // pred_check
          %p545 = pneg %p75
        $region82: #{transformer_forward.5} parent=75 // pred_check_branch
          %547 = sbr.rel (%p545) target = $region84
        $region83: #{transformer_forward.5} parent=75 // pred_region
          %p548 = scmp.lt.s32.totalorder %s29, 1
          %s549 = scalar_select %p548, %s29, 1
          %s550 = smul.addr %s549, 4
          %s551 = scalar_lea.vmem %s1, %s550
        $region84: #{transformer_forward.5} parent=75 // pred_fallthru
          _
        // Predicated region
        $region85: #{transformer_forward.5} parent=75 // pred_check
          %p552 = pneg %p101
        $region86: #{transformer_forward.5} parent=75 // pred_check_branch
          %554 = sbr.rel (%p552) target = $region88
        $region87: #{transformer_forward.5} parent=75 // pred_region
          %p555 = scmp.lt.s32.totalorder %s29, 1
          %s556 = scalar_select %p555, %s29, 1
          %s557 = smul.addr %s556, 8
          %s558 = scalar_lea.vmem %s2, %s557
        $region88: #{transformer_forward.5} parent=75 // pred_fallthru
          _
      $region76: #{transformer_forward.5} parent=5 // pred_fallthru
        _
      %p559 = scmp.le.s32.totalorder 1, %s29
      %p560 = scmp.lt.s32.totalorder %s29, 3
      %p561 = pnand %p559, %p560
      %p562 = pneg %p561
      // Predicated region
      $region89: #{transformer_forward.5} parent=5 // pred_check
        _
      $region90: #{transformer_forward.5} parent=5 // pred_check_branch
        %564 = sbr.rel (%p561) target = $region92
      $region91: #{transformer_forward.5} parent=5 // pred_region
        %s565 = ssub.s32 %s29, 1
        %p566 = scmp.lt.s32.totalorder %s34, 1
        %s567 = scalar_select %p566, %s34, 1
        %s568 = smul.addr %s567, 4
        %s569 = scalar_lea.vmem %s0, %s568
        %p570 = pneg %p55
        %p571 = pneg %p52
        %p572 = scmp.lt.s32.totalorder %s34, 1
        %s573 = scalar_select %p572, %s34, 1
        %s574 = smul.addr %s573, 4
        %s575 = scalar_lea.vmem %s1, %s574
        %p576 = pneg %p81
        %p577 = pneg %p78
        %p578 = scmp.lt.s32.totalorder %s34, 1
        %s579 = scalar_select %p578, %s34, 1
        %s580 = smul.addr %s579, 8
        %s581 = scalar_lea.vmem %s2, %s580
        %p582 = pneg %p107
        %p583 = pneg %p104
        %p584 = pneg %p128
        %p585 = pneg %p125
        %p586 = pneg %p149
        %p587 = pneg %p146
        %p588 = pneg %p170
        %p589 = pneg %p167
        %p590 = pneg %p191
        %p591 = pneg %p188
        %p592 = pneg %p212
        %p593 = pneg %p209
        %p594 = pneg %p233
        %p595 = pneg %p230
        %p596 = pneg %p254
        %p597 = pneg %p251
        %p598 = pneg %p275
        %p599 = pneg %p272
        %p600 = pneg %p296
        %p601 = pneg %p293
        %p602 = pneg %p317
        %p603 = pneg %p314
        %p604 = pneg %p338
        %p605 = pneg %p335
        %p606 = pneg %p359
        %p607 = pneg %p356
        %p608 = pneg %p380
        %p609 = pneg %p377
        %p610 = pneg %p401
        %p611 = pneg %p398
        %p612 = pneg %p422
        %p613 = pneg %p419
        %p614 = pneg %p448
        %p615 = pneg %p445
        %p616 = scmp.lt.s32.totalorder %s34, 1
        %s617 = scalar_select %p616, %s34, 1
        %s618 = smul.addr %s617, 4
        %s619 = scalar_lea.vmem %s18, %s618
        %p620 = pneg %p474
        %p621 = pneg %p471
        %s622 = sand.u32 %s461, 1
        %s623 = scalar_lea.sflag [#allocation3], %s622
        %s624 = sand.u32 %s461, 1
        %s625 = smul.addr %s624, 16
        %s626 = scalar_lea.vmem [#allocation2], %s625
        %p627 = scmp.lt.s32.totalorder %s34, 1
        %s628 = scalar_select %p627, %s34, 1
        %s629 = smul.addr %s628, 4
        %s630 = scalar_lea.vmem %s0, %s629
        %p631 = scmp.lt.s32.totalorder %s34, 1
        %s632 = scalar_select %p631, %s34, 1
        %s633 = smul.addr %s632, 4
        %s634 = scalar_lea.vmem %s1, %s633
        %p635 = scmp.lt.s32.totalorder %s34, 1
        %s636 = scalar_select %p635, %s34, 1
        %s637 = smul.addr %s636, 8
        %s638 = scalar_lea.vmem %s2, %s637
        %p639 = scmp.lt.s32.totalorder %s34, 1
        %s640 = scalar_select %p639, %s34, 1
        %s641 = smul.addr %s640, 4
        %s642 = scalar_lea.vmem %s18, %s641
        %v644 = vld [vmem:[%s630] sm:$0xf]
        %v645 = vld [vmem:[%s638] sm:$0xff]
        %v646 = vld [vmem:[%s3] sm:$0xff]
        %v647 = vld [vmem:[%s3 + $0x8] sm:$0xf]
        %v648 = vld [vmem:[%s3 + $0xc] sm:$0xff]
        %v649 = vld [vmem:[%s3 + $0x14] sm:$0xf]
        %v650 = vld [vmem:[%s3 + $0x18] sm:$0xff]
        %v651 = vld [vmem:[%s3 + $0x20] sm:$0xf]
        %v652 = vld [vmem:[%s3 + $0x24] sm:$0xff]
        %v653 = vld [vmem:[%s3 + $0x2c] sm:$0xf]
        %v662 = vunpack.c.l.b16 %v646
        %v663 = vunpack.c.h.b16 %v646
        %v664 = vunpack.c.l.b16 %v647
        %v665 = vunpack.c.l.b16 %v648
        %v666 = vunpack.c.h.b16 %v648
        %v667 = vunpack.c.l.b16 %v649
        %v668 = vunpack.c.l.b16 %v650
        %v669 = vunpack.c.h.b16 %v650
        %v670 = vunpack.c.l.b16 %v651
        %v671 = vunpack.c.l.b16 %v652
        %v672 = vunpack.c.h.b16 %v652
        %v673 = vunpack.c.l.b16 %v653
        %v674 = vpack.c.b16 %v665, %v662
        %v675 = vpack.c.b16 %v666, %v663
        %v676 = vpack.c.b16 %v667, %v664
        %v677 = vpack.c.b16 %v671, %v668
        %v678 = vpack.c.b16 %v672, %v669
        %v679 = vpack.c.b16 %v673, %v670
        %vm686 = vcmask 261120
        %v688 = vsel %vm686, %v644, 0
        %690 = vmatprep.subr.bf16.mxu0 %v675
        %691 = vmatpush1.bf16.msra.mxu0 %v674
        %692 = vmatprep.subr.bf16.mxu0 %v678
        %693 = vmatpush1.bf16.msra.mxu0 %v677
        %694 = vmatprep.subr.bf16.mxu0 0
        %695 = vmatpush1.bf16.msra.mxu0 0
        %696 = vmatprep.subr.bf16.mxu0 0
        %697 = vmatpush1.bf16.msra.mxu0 0
        %698 = vmatprep.subr.bf16.mxu0 0
        %699 = vmatpush1.bf16.msra.mxu0 0
        %700 = vmatprep.subr.bf16.mxu0 0
        %701 = vmatpush1.bf16.msra.mxu0 0
        %702 = vmatprep.subr.bf16.mxu0 0
        %703 = vmatpush1.bf16.msra.mxu0 0
        %704 = vmatprep.subr.bf16.mxu0 0
        %705 = vmatpush1.bf16.msra.mxu0 0
        %706 = vmatprep.subr.bf16.mxu0 0
        %707 = vmatpush1.bf16.msra.mxu0 0
        %708 = vmatprep.subr.bf16.mxu0 0
        %709 = vmatpush1.bf16.msra.mxu0 0
        %710 = vmatprep.subr.bf16.mxu0 0
        %711 = vmatpush1.bf16.msra.mxu0 0
        %712 = vmatprep.subr.bf16.mxu0 0
        %713 = vmatpush1.bf16.msra.mxu0 0
        %714 = vmatprep.subr.bf16.mxu0 0
        %715 = vmatpush1.bf16.msra.mxu0 0
        %716 = vmatprep.subr.bf16.mxu0 0
        %717 = vmatpush1.bf16.msra.mxu0 0
        %718 = vmatprep.subr.bf16.mxu0 0
        %719 = vmatpush1.bf16.msra.mxu0 0
        %720 = vmatprep.subr.bf16.mxu0 0
        %721 = vmatpush1.bf16.msra.mxu0 0
        %722 = vmatprep.mubr.bf16.mxu0 0
        %723 = vmatmul.mubr.bf16.gmra.mrb[0].mxu0 %v688
        %v724 = vpop.f32.mrb[0].mxu0
        %v725 = vadd.f32 0.0, %v724
        %v726 = vpop.f32.mrb[0].mxu0
        %v727 = vadd.f32 0.0, %v726
        %v728 = vpop.f32.mrb[0].mxu0
        %v729 = vpop.f32.mrb[0].mxu0
        %730 = vdwg.mxu0
        %731 = vmatprep.subr.bf16.mxu0 0
        %732 = vmatpush1.bf16.msra.mxu0 %v676
        %733 = vmatprep.subr.bf16.mxu0 0
        %734 = vmatpush1.bf16.msra.mxu0 %v679
        %735 = vmatprep.subr.bf16.mxu0 0
        %736 = vmatpush1.bf16.msra.mxu0 0
        %737 = vmatprep.subr.bf16.mxu0 0
        %738 = vmatpush1.bf16.msra.mxu0 0
        %739 = vmatprep.subr.bf16.mxu0 0
        %740 = vmatpush1.bf16.msra.mxu0 0
        %741 = vmatprep.subr.bf16.mxu0 0
        %742 = vmatpush1.bf16.msra.mxu0 0
        %743 = vmatprep.subr.bf16.mxu0 0
        %744 = vmatpush1.bf16.msra.mxu0 0
        %745 = vmatprep.subr.bf16.mxu0 0
        %746 = vmatpush1.bf16.msra.mxu0 0
        %747 = vmatprep.subr.bf16.mxu0 0
        %748 = vmatpush1.bf16.msra.mxu0 0
        %749 = vmatprep.subr.bf16.mxu0 0
        %750 = vmatpush1.bf16.msra.mxu0 0
        %751 = vmatprep.subr.bf16.mxu0 0
        %752 = vmatpush1.bf16.msra.mxu0 0
        %753 = vmatprep.subr.bf16.mxu0 0
        %754 = vmatpush1.bf16.msra.mxu0 0
        %755 = vmatprep.subr.bf16.mxu0 0
        %756 = vmatpush1.bf16.msra.mxu0 0
        %757 = vmatprep.subr.bf16.mxu0 0
        %758 = vmatpush1.bf16.msra.mxu0 0
        %759 = vmatprep.subr.bf16.mxu0 0
        %760 = vmatpush1.bf16.msra.mxu0 0
        %761 = vmatprep.subr.bf16.mxu0 0
        %762 = vmatpush1.bf16.msra.mxu0 0
        %763 = vmatprep.mubr.bf16.mxu0 0
        %764 = vmatmul.mubr.bf16.gmra.mrb[0].mxu0 %v688
        %v765 = vpop.f32.mrb[0].mxu0
        %v766 = vadd.f32 0.0, %v765
        %v767 = vpop.f32.mrb[0].mxu0
        %v768 = vpop.f32.mrb[0].mxu0
        %v769 = vpop.f32.mrb[0].mxu0
        %770 = vdwg.mxu0
        %v771 = vmul.f32 %v725, 0.125
        %v772 = vpack.c.bf16 %v771, %v771
        %v773 = vpack.c.bf16 %v727, %v727
        %v774 = vpack.c.bf16 %v766, %v766
        %vm775 = vcmask 523264
        %v777 = vsel %vm775, %v772, 0
        %v780 = vsel %vm775, %v773, 0
        %782 = vmatprep.subr.bf16.mxu0 0
        %783 = vmatpush1.bf16.xpose.msra.mxu0 %v780
        %784 = vmatprep.subr.bf16.mxu0 0
        %785 = vmatpush1.bf16.xpose.msra.mxu0 0
        %786 = vmatprep.subr.bf16.mxu0 0
        %787 = vmatpush1.bf16.xpose.msra.mxu0 0
        %788 = vmatprep.subr.bf16.mxu0 0
        %789 = vmatpush1.bf16.xpose.msra.mxu0 0
        %790 = vmatprep.subr.bf16.mxu0 0
        %791 = vmatpush1.bf16.xpose.msra.mxu0 0
        %792 = vmatprep.subr.bf16.mxu0 0
        %793 = vmatpush1.bf16.xpose.msra.mxu0 0
        %794 = vmatprep.subr.bf16.mxu0 0
        %795 = vmatpush1.bf16.xpose.msra.mxu0 0
        %796 = vmatprep.subr.bf16.mxu0 0
        %797 = vmatpush1.bf16.xpose.msra.mxu0 0
        %798 = vmatprep.subr.bf16.mxu0 0
        %799 = vmatpush1.bf16.xpose.msra.mxu0 0
        %800 = vmatprep.subr.bf16.mxu0 0
        %801 = vmatpush1.bf16.xpose.msra.mxu0 0
        %802 = vmatprep.subr.bf16.mxu0 0
        %803 = vmatpush1.bf16.xpose.msra.mxu0 0
        %804 = vmatprep.subr.bf16.mxu0 0
        %805 = vmatpush1.bf16.xpose.msra.mxu0 0
        %806 = vmatprep.subr.bf16.mxu0 0
        %807 = vmatpush1.bf16.xpose.msra.mxu0 0
        %808 = vmatprep.subr.bf16.mxu0 0
        %809 = vmatpush1.bf16.xpose.msra.mxu0 0
        %810 = vmatprep.subr.bf16.mxu0 0
        %811 = vmatpush1.bf16.xpose.msra.mxu0 0
        %812 = vmatprep.subr.bf16.mxu0 0
        %813 = vmatpush1.bf16.xpose.msra.mxu0 0
        %814 = vmatprep.mubr.bf16.mxu0 0
        %815 = vmatmul.mubr.bf16.gmra.mrb[0].mxu0 %v777
        %v816 = vpop.f32.mrb[0].mxu0
        %v817 = vadd.f32 0.0, %v816
        %v818 = vpop.f32.mrb[0].mxu0
        %v819 = vpop.f32.mrb[0].mxu0
        %v820 = vpop.f32.mrb[0].mxu0
        %821 = vdwg.mxu0
        %vm822 = vcmp.gt.f32.partialorder %v645, 0.0
        %v823 = vsel %vm822, %v817, -1e+09
        %vm824 = vcmask 64512
        %v825 = vsel %vm824, %v823, -inf
        %826 = vmax.xlane.f32.xlu0 %v825
        %v827 = vpop.xlane.xlu0 %826
        %v828 = vsub.f32 %v823, %v827
        %v829 = vmul.f32 %v828, 1.442695
        %v830 = vpow.pop %v829
        %v831 = vsel %vm824, %v830, 0.0
        %832 = vadd.xlane.f32.xlu0 %v831
        %v833 = vpop.xlane.xlu0 %832
        %v834 = vrcp.pop %v833
        %v835 = vmul.f32 %v830, %v834
        %v836 = vpack.c.bf16 %v835, %v835
        %v838 = vsel %vm824, %v836, 0
        %vm840 = vcmask 1043456
        %v842 = vsel %vm840, %v774, 0
        %844 = vmatprep.subr.bf16.mxu0 0
        %845 = vmatpush1.bf16.msra.mxu0 %v842
        %846 = vmatprep.subr.bf16.mxu0 0
        %847 = vmatpush1.bf16.msra.mxu0 0
        %848 = vmatprep.subr.bf16.mxu0 0
        %849 = vmatpush1.bf16.msra.mxu0 0
        %850 = vmatprep.subr.bf16.mxu0 0
        %851 = vmatpush1.bf16.msra.mxu0 0
        %852 = vmatprep.subr.bf16.mxu0 0
        %853 = vmatpush1.bf16.msra.mxu0 0
        %854 = vmatprep.subr.bf16.mxu0 0
        %855 = vmatpush1.bf16.msra.mxu0 0
        %856 = vmatprep.subr.bf16.mxu0 0
        %857 = vmatpush1.bf16.msra.mxu0 0
        %858 = vmatprep.subr.bf16.mxu0 0
        %859 = vmatpush1.bf16.msra.mxu0 0
        %860 = vmatprep.subr.bf16.mxu0 0
        %861 = vmatpush1.bf16.msra.mxu0 0
        %862 = vmatprep.subr.bf16.mxu0 0
        %863 = vmatpush1.bf16.msra.mxu0 0
        %864 = vmatprep.subr.bf16.mxu0 0
        %865 = vmatpush1.bf16.msra.mxu0 0
        %866 = vmatprep.subr.bf16.mxu0 0
        %867 = vmatpush1.bf16.msra.mxu0 0
        %868 = vmatprep.subr.bf16.mxu0 0
        %869 = vmatpush1.bf16.msra.mxu0 0
        %870 = vmatprep.subr.bf16.mxu0 0
        %871 = vmatpush1.bf16.msra.mxu0 0
        %872 = vmatprep.subr.bf16.mxu0 0
        %873 = vmatpush1.bf16.msra.mxu0 0
        %874 = vmatprep.subr.bf16.mxu0 0
        %875 = vmatpush1.bf16.msra.mxu0 0
        %876 = vmatprep.mubr.bf16.mxu0 0
        %877 = vmatmul.mubr.bf16.gmra.mrb[0].mxu0 %v838
        %v878 = vpop.f32.mrb[0].mxu0
        %v879 = vadd.f32 0.0, %v878
        %v880 = vpop.f32.mrb[0].mxu0
        %v881 = vpop.f32.mrb[0].mxu0
        %v882 = vpop.f32.mrb[0].mxu0
        %883 = vdwg.mxu0
        %885 = vrot.lane.b32.xlu0 %v772, 64
        %v886 = vpop.permute.xlu0 %885
        %888 = vrot.lane.b32.xlu0 %v773, 64
        %v889 = vpop.permute.xlu0 %888
        %v891 = vsel %vm775, %v886, 0
        %v894 = vsel %vm775, %v889, 0
        %896 = vmatprep.subr.bf16.mxu0 0
        %897 = vmatpush1.bf16.xpose.msra.mxu0 %v894
        %898 = vmatprep.subr.bf16.mxu0 0
        %899 = vmatpush1.bf16.xpose.msra.mxu0 0
        %900 = vmatprep.subr.bf16.mxu0 0
        %901 = vmatpush1.bf16.xpose.msra.mxu0 0
        %902 = vmatprep.subr.bf16.mxu0 0
        %903 = vmatpush1.bf16.xpose.msra.mxu0 0
        %904 = vmatprep.subr.bf16.mxu0 0
        %905 = vmatpush1.bf16.xpose.msra.mxu0 0
        %906 = vmatprep.subr.bf16.mxu0 0
        %907 = vmatpush1.bf16.xpose.msra.mxu0 0
        %908 = vmatprep.subr.bf16.mxu0 0
        %909 = vmatpush1.bf16.xpose.msra.mxu0 0
        %910 = vmatprep.subr.bf16.mxu0 0
        %911 = vmatpush1.bf16.xpose.msra.mxu0 0
        %912 = vmatprep.subr.bf16.mxu0 0
        %913 = vmatpush1.bf16.xpose.msra.mxu0 0
        %914 = vmatprep.subr.bf16.mxu0 0
        %915 = vmatpush1.bf16.xpose.msra.mxu0 0
        %916 = vmatprep.subr.bf16.mxu0 0
        %917 = vmatpush1.bf16.xpose.msra.mxu0 0
        %918 = vmatprep.subr.bf16.mxu0 0
        %919 = vmatpush1.bf16.xpose.msra.mxu0 0
        %920 = vmatprep.subr.bf16.mxu0 0
        %921 = vmatpush1.bf16.xpose.msra.mxu0 0
        %922 = vmatprep.subr.bf16.mxu0 0
        %923 = vmatpush1.bf16.xpose.msra.mxu0 0
        %924 = vmatprep.subr.bf16.mxu0 0
        %925 = vmatpush1.bf16.xpose.msra.mxu0 0
        %926 = vmatprep.subr.bf16.mxu0 0
        %927 = vmatpush1.bf16.xpose.msra.mxu0 0
        %928 = vmatprep.mubr.bf16.mxu0 0
        %929 = vmatmul.mubr.bf16.gmra.mrb[0].mxu0 %v891
        %v930 = vpop.f32.mrb[0].mxu0
        %v931 = vadd.f32 0.0, %v930
        %v932 = vpop.f32.mrb[0].mxu0
        %v933 = vpop.f32.mrb[0].mxu0
        %v934 = vpop.f32.mrb[0].mxu0
        %935 = vdwg.mxu0
        %v936 = vsel %vm822, %v931, -1e+09
        %v937 = vsel %vm824, %v936, -inf
        %938 = vmax.xlane.f32.xlu0 %v937
        %v939 = vpop.xlane.xlu0 %938
        %v940 = vsub.f32 %v936, %v939
        %v941 = vmul.f32 %v940, 1.442695
        %v942 = vpow.pop %v941
        %v943 = vsel %vm824, %v942, 0.0
        %944 = vadd.xlane.f32.xlu0 %v943
        %v945 = vpop.xlane.xlu0 %944
        %v946 = vrcp.pop %v945
        %v947 = vmul.f32 %v942, %v946
        %v948 = vpack.c.bf16 %v947, %v947
        %950 = vrot.lane.b32.xlu0 %v774, 64
        %v951 = vpop.permute.xlu0 %950
        %v953 = vsel %vm824, %v948, 0
        %v956 = vsel %vm840, %v951, 0
        %958 = vmatprep.subr.bf16.mxu0 0
        %959 = vmatpush1.bf16.msra.mxu0 %v956
        %960 = vmatprep.subr.bf16.mxu0 0
        %961 = vmatpush1.bf16.msra.mxu0 0
        %962 = vmatprep.subr.bf16.mxu0 0
        %963 = vmatpush1.bf16.msra.mxu0 0
        %964 = vmatprep.subr.bf16.mxu0 0
        %965 = vmatpush1.bf16.msra.mxu0 0
        %966 = vmatprep.subr.bf16.mxu0 0
        %967 = vmatpush1.bf16.msra.mxu0 0
        %968 = vmatprep.subr.bf16.mxu0 0
        %969 = vmatpush1.bf16.msra.mxu0 0
        %970 = vmatprep.subr.bf16.mxu0 0
        %971 = vmatpush1.bf16.msra.mxu0 0
        %972 = vmatprep.subr.bf16.mxu0 0
        %973 = vmatpush1.bf16.msra.mxu0 0
        %974 = vmatprep.subr.bf16.mxu0 0
        %975 = vmatpush1.bf16.msra.mxu0 0
        %976 = vmatprep.subr.bf16.mxu0 0
        %977 = vmatpush1.bf16.msra.mxu0 0
        %978 = vmatprep.subr.bf16.mxu0 0
        %979 = vmatpush1.bf16.msra.mxu0 0
        %980 = vmatprep.subr.bf16.mxu0 0
        %981 = vmatpush1.bf16.msra.mxu0 0
        %982 = vmatprep.subr.bf16.mxu0 0
        %983 = vmatpush1.bf16.msra.mxu0 0
        %984 = vmatprep.subr.bf16.mxu0 0
        %985 = vmatpush1.bf16.msra.mxu0 0
        %986 = vmatprep.subr.bf16.mxu0 0
        %987 = vmatpush1.bf16.msra.mxu0 0
        %988 = vmatprep.subr.bf16.mxu0 0
        %989 = vmatpush1.bf16.msra.mxu0 0
        %990 = vmatprep.mubr.bf16.mxu0 0
        %991 = vmatmul.mubr.bf16.gmra.mrb[0].mxu0 %v953
        %v992 = vpop.f32.mrb[0].mxu0
        %v993 = vadd.f32 0.0, %v992
        %v994 = vpop.f32.mrb[0].mxu0
        %v995 = vpop.f32.mrb[0].mxu0
        %v996 = vpop.f32.mrb[0].mxu0
        %997 = vdwg.mxu0
        %999 = vrot.lane.b32.xlu0 %v993, 64
        %v1000 = vpop.permute.xlu0 %999
        %v1002 = vsel %vm775, %v879, %v1000
        %v1003 = vpack.c.bf16 %v1002, %v1002
        %v1004 = vld [vmem:[%s4] sm:$0xf]
        %v1005 = vld [vmem:[%s4 + $0x4] sm:$0xf]
        %v1006 = vld [vmem:[%s4 + $0x8] sm:$0xf]
        %v1007 = vld [vmem:[%s4 + $0xc] sm:$0xf]
        %v1008 = vld [vmem:[%s4 + $0x10] sm:$0xf]
        %v1009 = vld [vmem:[%s4 + $0x14] sm:$0xf]
        %v1010 = vld [vmem:[%s4 + $0x18] sm:$0xf]
        %v1011 = vld [vmem:[%s4 + $0x1c] sm:$0xf]
        %v1012 = vld [vmem:[%s4 + $0x20] sm:$0xf]
        %v1013 = vld [vmem:[%s4 + $0x24] sm:$0xf]
        %v1014 = vld [vmem:[%s4 + $0x28] sm:$0xf]
        %v1015 = vld [vmem:[%s4 + $0x2c] sm:$0xf]
        %v1016 = vld [vmem:[%s4 + $0x30] sm:$0xf]
        %v1017 = vld [vmem:[%s4 + $0x34] sm:$0xf]
        %v1018 = vld [vmem:[%s4 + $0x38] sm:$0xf]
        %v1019 = vld [vmem:[%s4 + $0x3c] sm:$0xf]
        %v1020 = vunpack.c.l.bf16 %v644
        %v1037 = vunpack.c.l.b16 %v1004
        %v1038 = vunpack.c.l.b16 %v1005
        %v1039 = vunpack.c.l.b16 %v1006
        %v1040 = vunpack.c.l.b16 %v1007
        %v1041 = vunpack.c.l.b16 %v1008
        %v1042 = vunpack.c.l.b16 %v1009
        %v1043 = vunpack.c.l.b16 %v1010
        %v1044 = vunpack.c.l.b16 %v1011
        %v1045 = vunpack.c.l.b16 %v1012
        %v1046 = vunpack.c.l.b16 %v1013
        %v1047 = vunpack.c.l.b16 %v1014
        %v1048 = vunpack.c.l.b16 %v1015
        %v1049 = vunpack.c.l.b16 %v1016
        %v1050 = vunpack.c.l.b16 %v1017
        %v1051 = vunpack.c.l.b16 %v1018
        %v1052 = vunpack.c.l.b16 %v1019
        %v1053 = vpack.c.b16 %v1038, %v1037
        %v1054 = vpack.c.b16 %v1040, %v1039
        %v1055 = vpack.c.b16 %v1042, %v1041
        %v1056 = vpack.c.b16 %v1044, %v1043
        %v1057 = vpack.c.b16 %v1046, %v1045
        %v1058 = vpack.c.b16 %v1048, %v1047
        %v1059 = vpack.c.b16 %v1050, %v1049
        %v1060 = vpack.c.b16 %v1052, %v1051
        %1069 = vmatprep.subr.bf16.mxu0 0
        %1070 = vmatpush1.bf16.msra.mxu0 %v1053
        %1071 = vmatprep.subr.bf16.mxu0 0
        %1072 = vmatpush1.bf16.msra.mxu0 %v1054
        %1073 = vmatprep.subr.bf16.mxu0 0
        %1074 = vmatpush1.bf16.msra.mxu0 %v1055
        %1075 = vmatprep.subr.bf16.mxu0 0
        %1076 = vmatpush1.bf16.msra.mxu0 %v1056
        %1077 = vmatprep.subr.bf16.mxu0 0
        %1078 = vmatpush1.bf16.msra.mxu0 %v1057
        %1079 = vmatprep.subr.bf16.mxu0 0
        %1080 = vmatpush1.bf16.msra.mxu0 %v1058
        %1081 = vmatprep.subr.bf16.mxu0 0
        %1082 = vmatpush1.bf16.msra.mxu0 %v1059
        %1083 = vmatprep.subr.bf16.mxu0 0
        %1084 = vmatpush1.bf16.msra.mxu0 %v1060
        %1085 = vmatprep.subr.bf16.mxu0 0
        %1086 = vmatpush1.bf16.msra.mxu0 0
        %1087 = vmatprep.subr.bf16.mxu0 0
        %1088 = vmatpush1.bf16.msra.mxu0 0
        %1089 = vmatprep.subr.bf16.mxu0 0
        %1090 = vmatpush1.bf16.msra.mxu0 0
        %1091 = vmatprep.subr.bf16.mxu0 0
        %1092 = vmatpush1.bf16.msra.mxu0 0
        %1093 = vmatprep.subr.bf16.mxu0 0
        %1094 = vmatpush1.bf16.msra.mxu0 0
        %1095 = vmatprep.subr.bf16.mxu0 0
        %1096 = vmatpush1.bf16.msra.mxu0 0
        %1097 = vmatprep.subr.bf16.mxu0 0
        %1098 = vmatpush1.bf16.msra.mxu0 0
        %1099 = vmatprep.subr.bf16.mxu0 0
        %1100 = vmatpush1.bf16.msra.mxu0 0
        %1101 = vmatprep.mubr.bf16.mxu0 0
        %1102 = vmatmul.mubr.bf16.gmra.mrb[0].mxu0 %v1003
        %v1103 = vpop.f32.mrb[0].mxu0
        %v1104 = vadd.f32 %v1020, %v1103
        %v1105 = vpop.f32.mrb[0].mxu0
        %v1106 = vpop.f32.mrb[0].mxu0
        %v1107 = vpop.f32.mrb[0].mxu0
        %1108 = vdwg.mxu0
        %v1109 = vsel %vm686, %v1104, 0.0
        %1110 = vadd.xlane.f32.xlu0 %v1109
        %v1111 = vpop.xlane.xlu0 %1110
        %v1112 = vrcp.pop 32.0
        %v1113 = vmul.f32 %v1111, %v1112
        %v1114 = vsub.f32 %v1104, %v1113
        %v1115 = vmul.f32 %v1114, %v1114
        %v1116 = vsel %vm686, %v1115, 0.0
        %1117 = vadd.xlane.f32.xlu0 %v1116
        %v1118 = vpop.xlane.xlu0 %1117
        %v1119 = vmul.f32 %v1118, %v1112
        %v1120 = vadd.f32 %v1119, 1e-06
        %v1121 = vrsqrt.pop %v1120
        %v1122 = vmul.f32 %v1114, %v1121
        %v1123 = vld [vmem:[%s5] sm:$0x1]
        %v1125 = vlaneseq
        %v1126 = vshrl.u32 %v1125, 7
        %v1127 = vsub.s32 0, %v1126
        %v1128 = vrot.slane %v1123, %v1127
        %v1130 = vmul.f32 %v1122, %v1128
        %v1131 = vld [vmem:[%s6] sm:$0x1]
        %v1133 = vlaneseq
        %v1134 = vshrl.u32 %v1133, 7
        %v1135 = vsub.s32 0, %v1134
        %v1136 = vrot.slane %v1131, %v1135
        %v1138 = vadd.f32 %v1130, %v1136
        %v1139 = vld [vmem:[%s634] sm:$0xf]
        %v1140 = vpack.c.bf16 %v1138, %v1138
        %v1141 = vld [vmem:[%s7] sm:$0xf]
        %v1142 = vld [vmem:[%s7 + $0x4] sm:$0xf]
        %v1143 = vld [vmem:[%s7 + $0x8] sm:$0xf]
        %v1144 = vld [vmem:[%s7 + $0xc] sm:$0xf]
        %v1149 = vunpack.c.l.b16 %v1141
        %v1150 = vunpack.c.l.b16 %v1142
        %v1151 = vunpack.c.l.b16 %v1143
        %v1152 = vunpack.c.l.b16 %v1144
        %v1153 = vpack.c.b16 %v1150, %v1149
        %v1154 = vpack.c.b16 %v1152, %v1151
        %v1158 = vsel %vm686, %v1140, 0
        %1160 = vmatprep.subr.bf16.mxu0 0
        %1161 = vmatpush1.bf16.msra.mxu0 %v1153
        %1162 = vmatprep.subr.bf16.mxu0 0
        %1163 = vmatpush1.bf16.msra.mxu0 %v1154
        %1164 = vmatprep.subr.bf16.mxu0 0
        %1165 = vmatpush1.bf16.msra.mxu0 0
        %1166 = vmatprep.subr.bf16.mxu0 0
        %1167 = vmatpush1.bf16.msra.mxu0 0
        %1168 = vmatprep.subr.bf16.mxu0 0
        %1169 = vmatpush1.bf16.msra.mxu0 0
        %1170 = vmatprep.subr.bf16.mxu0 0
        %1171 = vmatpush1.bf16.msra.mxu0 0
        %1172 = vmatprep.subr.bf16.mxu0 0
        %1173 = vmatpush1.bf16.msra.mxu0 0
        %1174 = vmatprep.subr.bf16.mxu0 0
        %1175 = vmatpush1.bf16.msra.mxu0 0
        %1176 = vmatprep.subr.bf16.mxu0 0
        %1177 = vmatpush1.bf16.msra.mxu0 0
        %1178 = vmatprep.subr.bf16.mxu0 0
        %1179 = vmatpush1.bf16.msra.mxu0 0
        %1180 = vmatprep.subr.bf16.mxu0 0
        %1181 = vmatpush1.bf16.msra.mxu0 0
        %1182 = vmatprep.subr.bf16.mxu0 0
        %1183 = vmatpush1.bf16.msra.mxu0 0
        %1184 = vmatprep.subr.bf16.mxu0 0
        %1185 = vmatpush1.bf16.msra.mxu0 0
        %1186 = vmatprep.subr.bf16.mxu0 0
        %1187 = vmatpush1.bf16.msra.mxu0 0
        %1188 = vmatprep.subr.bf16.mxu0 0
        %1189 = vmatpush1.bf16.msra.mxu0 0
        %1190 = vmatprep.subr.bf16.mxu0 0
        %1191 = vmatpush1.bf16.msra.mxu0 0
        %1192 = vmatprep.mubr.bf16.mxu0 0
        %1193 = vmatmul.mubr.bf16.gmra.mrb[0].mxu0 %v1158
        %v1194 = vpop.f32.mrb[0].mxu0
        %v1195 = vadd.f32 0.0, %v1194
        %v1196 = vpop.f32.mrb[0].mxu0
        %v1197 = vpop.f32.mrb[0].mxu0
        %v1198 = vpop.f32.mrb[0].mxu0
        %1199 = vdwg.mxu0
        %v1200 = vld [vmem:[%s8] sm:$0xff]
        %v1201 = vld [vmem:[%s8 + $0x8] sm:$0xff]
        %v1202 = vld [vmem:[%s8 + $0x10] sm:$0xff]
        %v1203 = vld [vmem:[%s8 + $0x18] sm:$0xff]
        %v1208 = vunpack.c.l.b16 %v1200
        %v1209 = vunpack.c.h.b16 %v1200
        %v1210 = vunpack.c.l.b16 %v1201
        %v1211 = vunpack.c.h.b16 %v1201
        %v1212 = vunpack.c.l.b16 %v1202
        %v1213 = vunpack.c.h.b16 %v1202
        %v1214 = vunpack.c.l.b16 %v1203
        %v1215 = vunpack.c.h.b16 %v1203
        %v1216 = vpack.c.b16 %v1210, %v1208
        %v1217 = vpack.c.b16 %v1211, %v1209
        %v1218 = vpack.c.b16 %v1214, %v1212
        %v1219 = vpack.c.b16 %v1215, %v1213
        %v1225 = vsel %vm686, %v1139, 0
        %1227 = vmatprep.subr.bf16.mxu0 %v1217
        %1228 = vmatpush1.bf16.msra.mxu0 %v1216
        %1229 = vmatprep.subr.bf16.mxu0 %v1219
        %1230 = vmatpush1.bf16.msra.mxu0 %v1218
        %1231 = vmatprep.subr.bf16.mxu0 0
        %1232 = vmatpush1.bf16.msra.mxu0 0
        %1233 = vmatprep.subr.bf16.mxu0 0
        %1234 = vmatpush1.bf16.msra.mxu0 0
        %1235 = vmatprep.subr.bf16.mxu0 0
        %1236 = vmatpush1.bf16.msra.mxu0 0
        %1237 = vmatprep.subr.bf16.mxu0 0
        %1238 = vmatpush1.bf16.msra.mxu0 0
        %1239 = vmatprep.subr.bf16.mxu0 0
        %1240 = vmatpush1.bf16.msra.mxu0 0
        %1241 = vmatprep.subr.bf16.mxu0 0
        %1242 = vmatpush1.bf16.msra.mxu0 0
        %1243 = vmatprep.subr.bf16.mxu0 0
        %1244 = vmatpush1.bf16.msra.mxu0 0
        %1245 = vmatprep.subr.bf16.mxu0 0
        %1246 = vmatpush1.bf16.msra.mxu0 0
        %1247 = vmatprep.subr.bf16.mxu0 0
        %1248 = vmatpush1.bf16.msra.mxu0 0
        %1249 = vmatprep.subr.bf16.mxu0 0
        %1250 = vmatpush1.bf16.msra.mxu0 0
        %1251 = vmatprep.subr.bf16.mxu0 0
        %1252 = vmatpush1.bf16.msra.mxu0 0
        %1253 = vmatprep.subr.bf16.mxu0 0
        %1254 = vmatpush1.bf16.msra.mxu0 0
        %1255 = vmatprep.subr.bf16.mxu0 0
        %1256 = vmatpush1.bf16.msra.mxu0 0
        %1257 = vmatprep.subr.bf16.mxu0 0
        %1258 = vmatpush1.bf16.msra.mxu0 0
        %1259 = vmatprep.mubr.bf16.mxu0 0
        %1260 = vmatmul.mubr.bf16.gmra.mrb[0].mxu0 %v1225
        %v1261 = vpop.f32.mrb[0].mxu0
        %v1262 = vadd.f32 0.0, %v1261
        %v1263 = vpop.f32.mrb[0].mxu0
        %v1264 = vadd.f32 0.0, %v1263
        %v1265 = vpop.f32.mrb[0].mxu0
        %v1266 = vpop.f32.mrb[0].mxu0
        %1267 = vdwg.mxu0
        %v1268 = vmul.f32 %v1195, 0.125
        %v1269 = vpack.c.bf16 %v1268, %v1268
        %v1270 = vpack.c.bf16 %v1262, %v1262
        %v1271 = vpack.c.bf16 %v1264, %v1264
        %v1273 = vsel %vm775, %v1269, 0
        %v1276 = vsel %vm775, %v1270, 0
        %1278 = vmatprep.subr.bf16.mxu0 0
        %1279 = vmatpush1.bf16.xpose.msra.mxu0 %v1276
        %1280 = vmatprep.subr.bf16.mxu0 0
        %1281 = vmatpush1.bf16.xpose.msra.mxu0 0
        %1282 = vmatprep.subr.bf16.mxu0 0
        %1283 = vmatpush1.bf16.xpose.msra.mxu0 0
        %1284 = vmatprep.subr.bf16.mxu0 0
        %1285 = vmatpush1.bf16.xpose.msra.mxu0 0
        %1286 = vmatprep.subr.bf16.mxu0 0
        %1287 = vmatpush1.bf16.xpose.msra.mxu0 0
        %1288 = vmatprep.subr.bf16.mxu0 0
        %1289 = vmatpush1.bf16.xpose.msra.mxu0 0
        %1290 = vmatprep.subr.bf16.mxu0 0
        %1291 = vmatpush1.bf16.xpose.msra.mxu0 0
        %1292 = vmatprep.subr.bf16.mxu0 0
        %1293 = vmatpush1.bf16.xpose.msra.mxu0 0
        %1294 = vmatprep.subr.bf16.mxu0 0
        %1295 = vmatpush1.bf16.xpose.msra.mxu0 0
        %1296 = vmatprep.subr.bf16.mxu0 0
        %1297 = vmatpush1.bf16.xpose.msra.mxu0 0
        %1298 = vmatprep.subr.bf16.mxu0 0
        %1299 = vmatpush1.bf16.xpose.msra.mxu0 0
        %1300 = vmatprep.subr.bf16.mxu0 0
        %1301 = vmatpush1.bf16.xpose.msra.mxu0 0
        %1302 = vmatprep.subr.bf16.mxu0 0
        %1303 = vmatpush1.bf16.xpose.msra.mxu0 0
        %1304 = vmatprep.subr.bf16.mxu0 0
        %1305 = vmatpush1.bf16.xpose.msra.mxu0 0
        %1306 = vmatprep.subr.bf16.mxu0 0
        %1307 = vmatpush1.bf16.xpose.msra.mxu0 0
        %1308 = vmatprep.subr.bf16.mxu0 0
        %1309 = vmatpush1.bf16.xpose.msra.mxu0 0
        %1310 = vmatprep.mubr.bf16.mxu0 0
        %1311 = vmatmul.mubr.bf16.gmra.mrb[0].mxu0 %v1273
        %v1312 = vpop.f32.mrb[0].mxu0
        %v1313 = vadd.f32 0.0, %v1312
        %v1314 = vpop.f32.mrb[0].mxu0
        %v1315 = vpop.f32.mrb[0].mxu0
        %v1316 = vpop.f32.mrb[0].mxu0
        %1317 = vdwg.mxu0
        %v1318 = vsel %vm824, %v1313, -inf
        %1319 = vmax.xlane.f32.xlu0 %v1318
        %v1320 = vpop.xlane.xlu0 %1319
        %v1321 = vsub.f32 %v1313, %v1320
        %v1322 = vmul.f32 %v1321, 1.442695
        %v1323 = vpow.pop %v1322
        %v1324 = vsel %vm824, %v1323, 0.0
        %1325 = vadd.xlane.f32.xlu0 %v1324
        %v1326 = vpop.xlane.xlu0 %1325
        %v1327 = vrcp.pop %v1326
        %v1328 = vmul.f32 %v1323, %v1327
        %1329 = vst.msk [vmem:[%s626] sm:$0xff] %vm824, %v1328
        %v1330 = vpack.c.bf16 %v1328, %v1328
        %v1332 = vsel %vm824, %v1330, 0
        %v1335 = vsel %vm840, %v1271, 0
        %1337 = vmatprep.subr.bf16.mxu0 0
        %1338 = vmatpush1.bf16.msra.mxu0 %v1335
        %1339 = vmatprep.subr.bf16.mxu0 0
        %1340 = vmatpush1.bf16.msra.mxu0 0
        %1341 = vmatprep.subr.bf16.mxu0 0
        %1342 = vmatpush1.bf16.msra.mxu0 0
        %1343 = vmatprep.subr.bf16.mxu0 0
        %1344 = vmatpush1.bf16.msra.mxu0 0
        %1345 = vmatprep.subr.bf16.mxu0 0
        %1346 = vmatpush1.bf16.msra.mxu0 0
        %1347 = vmatprep.subr.bf16.mxu0 0
        %1348 = vmatpush1.bf16.msra.mxu0 0
        %1349 = vmatprep.subr.bf16.mxu0 0
        %1350 = vmatpush1.bf16.msra.mxu0 0
        %1351 = vmatprep.subr.bf16.mxu0 0
        %1352 = vmatpush1.bf16.msra.mxu0 0
        %1353 = vmatprep.subr.bf16.mxu0 0
        %1354 = vmatpush1.bf16.msra.mxu0 0
        %1355 = vmatprep.subr.bf16.mxu0 0
        %1356 = vmatpush1.bf16.msra.mxu0 0
        %1357 = vmatprep.subr.bf16.mxu0 0
        %1358 = vmatpush1.bf16.msra.mxu0 0
        %1359 = vmatprep.subr.bf16.mxu0 0
        %1360 = vmatpush1.bf16.msra.mxu0 0
        %1361 = vmatprep.subr.bf16.mxu0 0
        %1362 = vmatpush1.bf16.msra.mxu0 0
        %1363 = vmatprep.subr.bf16.mxu0 0
        %1364 = vmatpush1.bf16.msra.mxu0 0
        %1365 = vmatprep.subr.bf16.mxu0 0
        %1366 = vmatpush1.bf16.msra.mxu0 0
        %1367 = vmatprep.subr.bf16.mxu0 0
        %1368 = vmatpush1.bf16.msra.mxu0 0
        %1369 = vmatprep.mubr.bf16.mxu0 0
        %1370 = vmatmul.mubr.bf16.gmra.mrb[0].mxu0 %v1332
        %v1371 = vpop.f32.mrb[0].mxu0
        %v1372 = vadd.f32 0.0, %v1371
        %v1373 = vpop.f32.mrb[0].mxu0
        %v1374 = vpop.f32.mrb[0].mxu0
        %v1375 = vpop.f32.mrb[0].mxu0
        %1376 = vdwg.mxu0
        %1378 = vrot.lane.b32.xlu0 %v1269, 64
        %v1379 = vpop.permute.xlu0 %1378
        %1381 = vrot.lane.b32.xlu0 %v1270, 64
        %v1382 = vpop.permute.xlu0 %1381
        %v1384 = vsel %vm775, %v1379, 0
        %v1387 = vsel %vm775, %v1382, 0
        %1389 = vmatprep.subr.bf16.mxu0 0
        %1390 = vmatpush1.bf16.xpose.msra.mxu0 %v1387
        %1391 = vmatprep.subr.bf16.mxu0 0
        %1392 = vmatpush1.bf16.xpose.msra.mxu0 0
        %1393 = vmatprep.subr.bf16.mxu0 0
        %1394 = vmatpush1.bf16.xpose.msra.mxu0 0
        %1395 = vmatprep.subr.bf16.mxu0 0
        %1396 = vmatpush1.bf16.xpose.msra.mxu0 0
        %1397 = vmatprep.subr.bf16.mxu0 0
        %1398 = vmatpush1.bf16.xpose.msra.mxu0 0
        %1399 = vmatprep.subr.bf16.mxu0 0
        %1400 = vmatpush1.bf16.xpose.msra.mxu0 0
        %1401 = vmatprep.subr.bf16.mxu0 0
        %1402 = vmatpush1.bf16.xpose.msra.mxu0 0
        %1403 = vmatprep.subr.bf16.mxu0 0
        %1404 = vmatpush1.bf16.xpose.msra.mxu0 0
        %1405 = vmatprep.subr.bf16.mxu0 0
        %1406 = vmatpush1.bf16.xpose.msra.mxu0 0
        %1407 = vmatprep.subr.bf16.mxu0 0
        %1408 = vmatpush1.bf16.xpose.msra.mxu0 0
        %1409 = vmatprep.subr.bf16.mxu0 0
        %1410 = vmatpush1.bf16.xpose.msra.mxu0 0
        %1411 = vmatprep.subr.bf16.mxu0 0
        %1412 = vmatpush1.bf16.xpose.msra.mxu0 0
        %1413 = vmatprep.subr.bf16.mxu0 0
        %1414 = vmatpush1.bf16.xpose.msra.mxu0 0
        %1415 = vmatprep.subr.bf16.mxu0 0
        %1416 = vmatpush1.bf16.xpose.msra.mxu0 0
        %1417 = vmatprep.subr.bf16.mxu0 0
        %1418 = vmatpush1.bf16.xpose.msra.mxu0 0
        %1419 = vmatprep.subr.bf16.mxu0 0
        %1420 = vmatpush1.bf16.xpose.msra.mxu0 0
        %1421 = vmatprep.mubr.bf16.mxu0 0
        %1422 = vmatmul.mubr.bf16.gmra.mrb[0].mxu0 %v1384
        %v1423 = vpop.f32.mrb[0].mxu0
        %v1424 = vadd.f32 0.0, %v1423
        %v1425 = vpop.f32.mrb[0].mxu0
        %v1426 = vpop.f32.mrb[0].mxu0
        %v1427 = vpop.f32.mrb[0].mxu0
        %1428 = vdwg.mxu0
        %v1429 = vsel %vm824, %v1424, -inf
        %1430 = vmax.xlane.f32.xlu0 %v1429
        %v1431 = vpop.xlane.xlu0 %1430
        %v1432 = vsub.f32 %v1424, %v1431
        %v1433 = vmul.f32 %v1432, 1.442695
        %v1434 = vpow.pop %v1433
        %v1435 = vsel %vm824, %v1434, 0.0
        %1436 = vadd.xlane.f32.xlu0 %v1435
        %v1437 = vpop.xlane.xlu0 %1436
        %v1438 = vrcp.pop %v1437
        %v1439 = vmul.f32 %v1434, %v1438
        %s1440 = scalar_lea.vmem %s626, 8 [#allocation2]
        %1441 = vst.msk [vmem:[%s1440] sm:$0xff] %vm824, %v1439
        %v1442 = vpack.c.bf16 %v1439, %v1439
        %1444 = vrot.lane.b32.xlu0 %v1271, 64
        %v1445 = vpop.permute.xlu0 %1444
        %v1447 = vsel %vm824, %v1442, 0
        %v1450 = vsel %vm840, %v1445, 0
        %1452 = vmatprep.subr.bf16.mxu0 0
        %1453 = vmatpush1.bf16.msra.mxu0 %v1450
        %1454 = vmatprep.subr.bf16.mxu0 0
        %1455 = vmatpush1.bf16.msra.mxu0 0
        %1456 = vmatprep.subr.bf16.mxu0 0
        %1457 = vmatpush1.bf16.msra.mxu0 0
        %1458 = vmatprep.subr.bf16.mxu0 0
        %1459 = vmatpush1.bf16.msra.mxu0 0
        %1460 = vmatprep.subr.bf16.mxu0 0
        %1461 = vmatpush1.bf16.msra.mxu0 0
        %1462 = vmatprep.subr.bf16.mxu0 0
        %1463 = vmatpush1.bf16.msra.mxu0 0
        %1464 = vmatprep.subr.bf16.mxu0 0
        %1465 = vmatpush1.bf16.msra.mxu0 0
        %1466 = vmatprep.subr.bf16.mxu0 0
        %1467 = vmatpush1.bf16.msra.mxu0 0
        %1468 = vmatprep.subr.bf16.mxu0 0
        %1469 = vmatpush1.bf16.msra.mxu0 0
        %1470 = vmatprep.subr.bf16.mxu0 0
        %1471 = vmatpush1.bf16.msra.mxu0 0
        %1472 = vmatprep.subr.bf16.mxu0 0
        %1473 = vmatpush1.bf16.msra.mxu0 0
        %1474 = vmatprep.subr.bf16.mxu0 0
        %1475 = vmatpush1.bf16.msra.mxu0 0
        %1476 = vmatprep.subr.bf16.mxu0 0
        %1477 = vmatpush1.bf16.msra.mxu0 0
        %1478 = vmatprep.subr.bf16.mxu0 0
        %1479 = vmatpush1.bf16.msra.mxu0 0
        %1480 = vmatprep.subr.bf16.mxu0 0
        %1481 = vmatpush1.bf16.msra.mxu0 0
        %1482 = vmatprep.subr.bf16.mxu0 0
        %1483 = vmatpush1.bf16.msra.mxu0 0
        %1484 = vmatprep.mubr.bf16.mxu0 0
        %1485 = vmatmul.mubr.bf16.gmra.mrb[0].mxu0 %v1447
        %v1486 = vpop.f32.mrb[0].mxu0
        %v1487 = vadd.f32 0.0, %v1486
        %v1488 = vpop.f32.mrb[0].mxu0
        %v1489 = vpop.f32.mrb[0].mxu0
        %v1490 = vpop.f32.mrb[0].mxu0
        %1491 = vdwg.mxu0
        %1493 = vrot.lane.b32.xlu0 %v1487, 64
        %v1494 = vpop.permute.xlu0 %1493
        %v1496 = vsel %vm775, %v1372, %v1494
        %v1497 = vpack.c.bf16 %v1496, %v1496
        %v1498 = vld [vmem:[%s9] sm:$0xf]
        %v1499 = vld [vmem:[%s9 + $0x4] sm:$0xf]
        %v1500 = vld [vmem:[%s9 + $0x8] sm:$0xf]
        %v1501 = vld [vmem:[%s9 + $0xc] sm:$0xf]
        %v1502 = vld [vmem:[%s9 + $0x10] sm:$0xf]
        %v1503 = vld [vmem:[%s9 + $0x14] sm:$0xf]
        %v1504 = vld [vmem:[%s9 + $0x18] sm:$0xf]
        %v1505 = vld [vmem:[%s9 + $0x1c] sm:$0xf]
        %v1506 = vld [vmem:[%s9 + $0x20] sm:$0xf]
        %v1507 = vld [vmem:[%s9 + $0x24] sm:$0xf]
        %v1508 = vld [vmem:[%s9 + $0x28] sm:$0xf]
        %v1509 = vld [vmem:[%s9 + $0x2c] sm:$0xf]
        %v1510 = vld [vmem:[%s9 + $0x30] sm:$0xf]
        %v1511 = vld [vmem:[%s9 + $0x34] sm:$0xf]
        %v1512 = vld [vmem:[%s9 + $0x38] sm:$0xf]
        %v1513 = vld [vmem:[%s9 + $0x3c] sm:$0xf]
        %v1530 = vunpack.c.l.b16 %v1498
        %v1531 = vunpack.c.l.b16 %v1499
        %v1532 = vunpack.c.l.b16 %v1500
        %v1533 = vunpack.c.l.b16 %v1501
        %v1534 = vunpack.c.l.b16 %v1502
        %v1535 = vunpack.c.l.b16 %v1503
        %v1536 = vunpack.c.l.b16 %v1504
        %v1537 = vunpack.c.l.b16 %v1505
        %v1538 = vunpack.c.l.b16 %v1506
        %v1539 = vunpack.c.l.b16 %v1507
        %v1540 = vunpack.c.l.b16 %v1508
        %v1541 = vunpack.c.l.b16 %v1509
        %v1542 = vunpack.c.l.b16 %v1510
        %v1543 = vunpack.c.l.b16 %v1511
        %v1544 = vunpack.c.l.b16 %v1512
        %v1545 = vunpack.c.l.b16 %v1513
        %v1546 = vpack.c.b16 %v1531, %v1530
        %v1547 = vpack.c.b16 %v1533, %v1532
        %v1548 = vpack.c.b16 %v1535, %v1534
        %v1549 = vpack.c.b16 %v1537, %v1536
        %v1550 = vpack.c.b16 %v1539, %v1538
        %v1551 = vpack.c.b16 %v1541, %v1540
        %v1552 = vpack.c.b16 %v1543, %v1542
        %v1553 = vpack.c.b16 %v1545, %v1544
        %1562 = vmatprep.subr.bf16.mxu0 0
        %1563 = vmatpush1.bf16.msra.mxu0 %v1546
        %1564 = vmatprep.subr.bf16.mxu0 0
        %1565 = vmatpush1.bf16.msra.mxu0 %v1547
        %1566 = vmatprep.subr.bf16.mxu0 0
        %1567 = vmatpush1.bf16.msra.mxu0 %v1548
        %1568 = vmatprep.subr.bf16.mxu0 0
        %1569 = vmatpush1.bf16.msra.mxu0 %v1549
        %1570 = vmatprep.subr.bf16.mxu0 0
        %1571 = vmatpush1.bf16.msra.mxu0 %v1550
        %1572 = vmatprep.subr.bf16.mxu0 0
        %1573 = vmatpush1.bf16.msra.mxu0 %v1551
        %1574 = vmatprep.subr.bf16.mxu0 0
        %1575 = vmatpush1.bf16.msra.mxu0 %v1552
        %1576 = vmatprep.subr.bf16.mxu0 0
        %1577 = vmatpush1.bf16.msra.mxu0 %v1553
        %1578 = vmatprep.subr.bf16.mxu0 0
        %1579 = vmatpush1.bf16.msra.mxu0 0
        %1580 = vmatprep.subr.bf16.mxu0 0
        %1581 = vmatpush1.bf16.msra.mxu0 0
        %1582 = vmatprep.subr.bf16.mxu0 0
        %1583 = vmatpush1.bf16.msra.mxu0 0
        %1584 = vmatprep.subr.bf16.mxu0 0
        %1585 = vmatpush1.bf16.msra.mxu0 0
        %1586 = vmatprep.subr.bf16.mxu0 0
        %1587 = vmatpush1.bf16.msra.mxu0 0
        %1588 = vmatprep.subr.bf16.mxu0 0
        %1589 = vmatpush1.bf16.msra.mxu0 0
        %1590 = vmatprep.subr.bf16.mxu0 0
        %1591 = vmatpush1.bf16.msra.mxu0 0
        %1592 = vmatprep.subr.bf16.mxu0 0
        %1593 = vmatpush1.bf16.msra.mxu0 0
        %1594 = vmatprep.mubr.bf16.mxu0 0
        %1595 = vmatmul.mubr.bf16.gmra.mrb[0].mxu0 %v1497
        %v1596 = vpop.f32.mrb[0].mxu0
        %v1597 = vadd.f32 %v1138, %v1596
        %v1598 = vpop.f32.mrb[0].mxu0
        %v1599 = vpop.f32.mrb[0].mxu0
        %v1600 = vpop.f32.mrb[0].mxu0
        %1601 = vdwg.mxu0
        %v1602 = vsel %vm686, %v1597, 0.0
        %1603 = vadd.xlane.f32.xlu0 %v1602
        %v1604 = vpop.xlane.xlu0 %1603
        %v1605 = vmul.f32 %v1604, %v1112
        %v1606 = vsub.f32 %v1597, %v1605
        %v1607 = vmul.f32 %v1606, %v1606
        %v1608 = vsel %vm686, %v1607, 0.0
        %1609 = vadd.xlane.f32.xlu0 %v1608
        %v1610 = vpop.xlane.xlu0 %1609
        %v1611 = vmul.f32 %v1610, %v1112
        %v1612 = vadd.f32 %v1611, 1e-06
        %v1613 = vrsqrt.pop %v1612
        %v1614 = vmul.f32 %v1606, %v1613
        %v1615 = vld [vmem:[%s10] sm:$0x1]
        %v1617 = vlaneseq
        %v1618 = vshrl.u32 %v1617, 7
        %v1619 = vsub.s32 0, %v1618
        %v1620 = vrot.slane %v1615, %v1619
        %v1622 = vmul.f32 %v1614, %v1620
        %v1623 = vld [vmem:[%s11] sm:$0x1]
        %v1625 = vlaneseq
        %v1626 = vshrl.u32 %v1625, 7
        %v1627 = vsub.s32 0, %v1626
        %v1628 = vrot.slane %v1623, %v1627
        %v1630 = vadd.f32 %v1622, %v1628
        %v1631 = vpack.c.bf16 %v1630, %v1630
        %v1632 = vld [vmem:[%s12] sm:$0xff]
        %v1633 = vld [vmem:[%s12 + $0x8] sm:$0xff]
        %v1634 = vld [vmem:[%s12 + $0x10] sm:$0xff]
        %v1635 = vld [vmem:[%s12 + $0x18] sm:$0xff]
        %v1636 = vld [vmem:[%s12 + $0x20] sm:$0xff]
        %v1637 = vld [vmem:[%s12 + $0x28] sm:$0xff]
        %v1638 = vld [vmem:[%s12 + $0x30] sm:$0xff]
        %v1639 = vld [vmem:[%s12 + $0x38] sm:$0xff]
        %v1640 = vld [vmem:[%s12 + $0x40] sm:$0xff]
        %v1641 = vld [vmem:[%s12 + $0x48] sm:$0xff]
        %v1642 = vld [vmem:[%s12 + $0x50] sm:$0xff]
        %v1643 = vld [vmem:[%s12 + $0x58] sm:$0xff]
        %v1644 = vld [vmem:[%s12 + $0x60] sm:$0xff]
        %v1645 = vld [vmem:[%s12 + $0x68] sm:$0xff]
        %v1646 = vld [vmem:[%s12 + $0x70] sm:$0xff]
        %v1647 = vld [vmem:[%s12 + $0x78] sm:$0xff]
        %v1648 = vld [vmem:[%s12 + $0x80] sm:$0xff]
        %v1649 = vld [vmem:[%s12 + $0x88] sm:$0xff]
        %v1650 = vld [vmem:[%s12 + $0x90] sm:$0xff]
        %v1651 = vld [vmem:[%s12 + $0x98] sm:$0xff]
        %v1652 = vld [vmem:[%s12 + $0xa0] sm:$0xff]
        %v1653 = vld [vmem:[%s12 + $0xa8] sm:$0xff]
        %v1654 = vld [vmem:[%s12 + $0xb0] sm:$0xff]
        %v1655 = vld [vmem:[%s12 + $0xb8] sm:$0xff]
        %v1656 = vld [vmem:[%s12 + $0xc0] sm:$0xff]
        %v1657 = vld [vmem:[%s12 + $0xc8] sm:$0xff]
        %v1658 = vld [vmem:[%s12 + $0xd0] sm:$0xff]
        %v1659 = vld [vmem:[%s12 + $0xd8] sm:$0xff]
        %v1660 = vld [vmem:[%s12 + $0xe0] sm:$0xff]
        %v1661 = vld [vmem:[%s12 + $0xe8] sm:$0xff]
        %v1662 = vld [vmem:[%s12 + $0xf0] sm:$0xff]
        %v1663 = vld [vmem:[%s12 + $0xf8] sm:$0xff]
        %v1664 = vld [vmem:[%s13] sm:$0xff]
        %v1665 = vld [vmem:[%s13 + $0x8] sm:$0xff]
        %v1668 = vlaneseq
        %v1669 = vshrl.u32 %v1668, 7
        %v1670 = vsub.s32 0, %v1669
        %v1671 = vrot.slane %v1664, %v1670
        %v1672 = vlaneseq
        %v1673 = vshrl.u32 %v1672, 7
        %v1674 = vsub.s32 1, %v1673
        %v1675 = vrot.slane %v1664, %v1674
        %v1676 = vlaneseq
        %v1677 = vshrl.u32 %v1676, 7
        %v1678 = vsub.s32 2, %v1677
        %v1679 = vrot.slane %v1664, %v1678
        %v1680 = vlaneseq
        %v1681 = vshrl.u32 %v1680, 7
        %v1682 = vsub.s32 3, %v1681
        %v1683 = vrot.slane %v1664, %v1682
        %v1684 = vlaneseq
        %v1685 = vshrl.u32 %v1684, 7
        %v1686 = vsub.s32 4, %v1685
        %v1687 = vrot.slane %v1664, %v1686
        %v1688 = vlaneseq
        %v1689 = vshrl.u32 %v1688, 7
        %v1690 = vsub.s32 5, %v1689
        %v1691 = vrot.slane %v1664, %v1690
        %v1692 = vlaneseq
        %v1693 = vshrl.u32 %v1692, 7
        %v1694 = vsub.s32 6, %v1693
        %v1695 = vrot.slane %v1664, %v1694
        %v1696 = vlaneseq
        %v1697 = vshrl.u32 %v1696, 7
        %v1698 = vsub.s32 7, %v1697
        %v1699 = vrot.slane %v1664, %v1698
        %v1700 = vlaneseq
        %v1701 = vshrl.u32 %v1700, 7
        %v1702 = vsub.s32 0, %v1701
        %v1703 = vrot.slane %v1665, %v1702
        %v1704 = vlaneseq
        %v1705 = vshrl.u32 %v1704, 7
        %v1706 = vsub.s32 1, %v1705
        %v1707 = vrot.slane %v1665, %v1706
        %v1708 = vlaneseq
        %v1709 = vshrl.u32 %v1708, 7
        %v1710 = vsub.s32 2, %v1709
        %v1711 = vrot.slane %v1665, %v1710
        %v1712 = vlaneseq
        %v1713 = vshrl.u32 %v1712, 7
        %v1714 = vsub.s32 3, %v1713
        %v1715 = vrot.slane %v1665, %v1714
        %v1716 = vlaneseq
        %v1717 = vshrl.u32 %v1716, 7
        %v1718 = vsub.s32 4, %v1717
        %v1719 = vrot.slane %v1665, %v1718
        %v1720 = vlaneseq
        %v1721 = vshrl.u32 %v1720, 7
        %v1722 = vsub.s32 5, %v1721
        %v1723 = vrot.slane %v1665, %v1722
        %v1724 = vlaneseq
        %v1725 = vshrl.u32 %v1724, 7
        %v1726 = vsub.s32 6, %v1725
        %v1727 = vrot.slane %v1665, %v1726
        %v1728 = vlaneseq
        %v1729 = vshrl.u32 %v1728, 7
        %v1730 = vsub.s32 7, %v1729
        %v1731 = vrot.slane %v1665, %v1730
        %v1780 = vunpack.c.l.b16 %v1632
        %v1781 = vunpack.c.h.b16 %v1632
        %v1782 = vunpack.c.l.b16 %v1633
        %v1783 = vunpack.c.h.b16 %v1633
        %v1784 = vunpack.c.l.b16 %v1634
        %v1785 = vunpack.c.h.b16 %v1634
        %v1786 = vunpack.c.l.b16 %v1635
        %v1787 = vunpack.c.h.b16 %v1635
        %v1788 = vunpack.c.l.b16 %v1636
        %v1789 = vunpack.c.h.b16 %v1636
        %v1790 = vunpack.c.l.b16 %v1637
        %v1791 = vunpack.c.h.b16 %v1637
        %v1792 = vunpack.c.l.b16 %v1638
        %v1793 = vunpack.c.h.b16 %v1638
        %v1794 = vunpack.c.l.b16 %v1639
        %v1795 = vunpack.c.h.b16 %v1639
        %v1796 = vunpack.c.l.b16 %v1640
        %v1797 = vunpack.c.h.b16 %v1640
        %v1798 = vunpack.c.l.b16 %v1641
        %v1799 = vunpack.c.h.b16 %v1641
        %v1800 = vunpack.c.l.b16 %v1642
        %v1801 = vunpack.c.h.b16 %v1642
        %v1802 = vunpack.c.l.b16 %v1643
        %v1803 = vunpack.c.h.b16 %v1643
        %v1804 = vunpack.c.l.b16 %v1644
        %v1805 = vunpack.c.h.b16 %v1644
        %v1806 = vunpack.c.l.b16 %v1645
        %v1807 = vunpack.c.h.b16 %v1645
        %v1808 = vunpack.c.l.b16 %v1646
        %v1809 = vunpack.c.h.b16 %v1646
        %v1810 = vunpack.c.l.b16 %v1647
        %v1811 = vunpack.c.h.b16 %v1647
        %v1812 = vunpack.c.l.b16 %v1648
        %v1813 = vunpack.c.h.b16 %v1648
        %v1814 = vunpack.c.l.b16 %v1649
        %v1815 = vunpack.c.h.b16 %v1649
        %v1816 = vunpack.c.l.b16 %v1650
        %v1817 = vunpack.c.h.b16 %v1650
        %v1818 = vunpack.c.l.b16 %v1651
        %v1819 = vunpack.c.h.b16 %v1651
        %v1820 = vunpack.c.l.b16 %v1652
        %v1821 = vunpack.c.h.b16 %v1652
        %v1822 = vunpack.c.l.b16 %v1653
        %v1823 = vunpack.c.h.b16 %v1653
        %v1824 = vunpack.c.l.b16 %v1654
        %v1825 = vunpack.c.h.b16 %v1654
        %v1826 = vunpack.c.l.b16 %v1655
        %v1827 = vunpack.c.h.b16 %v1655
        %v1828 = vunpack.c.l.b16 %v1656
        %v1829 = vunpack.c.h.b16 %v1656
        %v1830 = vunpack.c.l.b16 %v1657
        %v1831 = vunpack.c.h.b16 %v1657
        %v1832 = vunpack.c.l.b16 %v1658
        %v1833 = vunpack.c.h.b16 %v1658
        %v1834 = vunpack.c.l.b16 %v1659
        %v1835 = vunpack.c.h.b16 %v1659
        %v1836 = vunpack.c.l.b16 %v1660
        %v1837 = vunpack.c.h.b16 %v1660
        %v1838 = vunpack.c.l.b16 %v1661
        %v1839 = vunpack.c.h.b16 %v1661
        %v1840 = vunpack.c.l.b16 %v1662
        %v1841 = vunpack.c.h.b16 %v1662
        %v1842 = vunpack.c.l.b16 %v1663
        %v1843 = vunpack.c.h.b16 %v1663
        %v1844 = vpack.c.b16 %v1796, %v1780
        %v1845 = vpack.c.b16 %v1797, %v1781
        %v1846 = vpack.c.b16 %v1798, %v1782
        %v1847 = vpack.c.b16 %v1799, %v1783
        %v1848 = vpack.c.b16 %v1800, %v1784
        %v1849 = vpack.c.b16 %v1801, %v1785
        %v1850 = vpack.c.b16 %v1802, %v1786
        %v1851 = vpack.c.b16 %v1803, %v1787
        %v1852 = vpack.c.b16 %v1804, %v1788
        %v1853 = vpack.c.b16 %v1805, %v1789
        %v1854 = vpack.c.b16 %v1806, %v1790
        %v1855 = vpack.c.b16 %v1807, %v1791
        %v1856 = vpack.c.b16 %v1808, %v1792
        %v1857 = vpack.c.b16 %v1809, %v1793
        %v1858 = vpack.c.b16 %v1810, %v1794
        %v1859 = vpack.c.b16 %v1811, %v1795
        %v1860 = vpack.c.b16 %v1828, %v1812
        %v1861 = vpack.c.b16 %v1829, %v1813
        %v1862 = vpack.c.b16 %v1830, %v1814
        %v1863 = vpack.c.b16 %v1831, %v1815
        %v1864 = vpack.c.b16 %v1832, %v1816
        %v1865 = vpack.c.b16 %v1833, %v1817
        %v1866 = vpack.c.b16 %v1834, %v1818
        %v1867 = vpack.c.b16 %v1835, %v1819
        %v1868 = vpack.c.b16 %v1836, %v1820
        %v1869 = vpack.c.b16 %v1837, %v1821
        %v1870 = vpack.c.b16 %v1838, %v1822
        %v1871 = vpack.c.b16 %v1839, %v1823
        %v1872 = vpack.c.b16 %v1840, %v1824
        %v1873 = vpack.c.b16 %v1841, %v1825
        %v1874 = vpack.c.b16 %v1842, %v1826
        %v1875 = vpack.c.b16 %v1843, %v1827
        %v1909 = vsel %vm686, %v1631, 0
        %1911 = vmatprep.subr.bf16.mxu0 %v1845
        %1912 = vmatpush1.bf16.msra.mxu0 %v1844
        %1913 = vmatprep.subr.bf16.mxu0 %v1861
        %1914 = vmatpush1.bf16.msra.mxu0 %v1860
        %1915 = vmatprep.subr.bf16.mxu0 0
        %1916 = vmatpush1.bf16.msra.mxu0 0
        %1917 = vmatprep.subr.bf16.mxu0 0
        %1918 = vmatpush1.bf16.msra.mxu0 0
        %1919 = vmatprep.subr.bf16.mxu0 0
        %1920 = vmatpush1.bf16.msra.mxu0 0
        %1921 = vmatprep.subr.bf16.mxu0 0
        %1922 = vmatpush1.bf16.msra.mxu0 0
        %1923 = vmatprep.subr.bf16.mxu0 0
        %1924 = vmatpush1.bf16.msra.mxu0 0
        %1925 = vmatprep.subr.bf16.mxu0 0
        %1926 = vmatpush1.bf16.msra.mxu0 0
        %1927 = vmatprep.subr.bf16.mxu0 0
        %1928 = vmatpush1.bf16.msra.mxu0 0
        %1929 = vmatprep.subr.bf16.mxu0 0
        %1930 = vmatpush1.bf16.msra.mxu0 0
        %1931 = vmatprep.subr.bf16.mxu0 0
        %1932 = vmatpush1.bf16.msra.mxu0 0
        %1933 = vmatprep.subr.bf16.mxu0 0
        %1934 = vmatpush1.bf16.msra.mxu0 0
        %1935 = vmatprep.subr.bf16.mxu0 0
        %1936 = vmatpush1.bf16.msra.mxu0 0
        %1937 = vmatprep.subr.bf16.mxu0 0
        %1938 = vmatpush1.bf16.msra.mxu0 0
        %1939 = vmatprep.subr.bf16.mxu0 0
        %1940 = vmatpush1.bf16.msra.mxu0 0
        %1941 = vmatprep.subr.bf16.mxu0 0
        %1942 = vmatpush1.bf16.msra.mxu0 0
        %1943 = vmatprep.mubr.bf16.mxu0 0
        %1944 = vmatmul.mubr.bf16.gmra.mrb[0].mxu0 %v1909
        %v1945 = vpop.f32.mrb[0].mxu0
        %v1946 = vadd.f32 %v1671, %v1945
        %v1947 = vpop.f32.mrb[0].mxu0
        %v1948 = vadd.f32 %v1675, %v1947
        %v1949 = vpop.f32.mrb[0].mxu0
        %v1950 = vpop.f32.mrb[0].mxu0
        %1951 = vdwg.mxu0
        %1952 = vmatprep.subr.bf16.mxu0 %v1847
        %1953 = vmatpush1.bf16.msra.mxu0 %v1846
        %1954 = vmatprep.subr.bf16.mxu0 %v1863
        %1955 = vmatpush1.bf16.msra.mxu0 %v1862
        %1956 = vmatprep.subr.bf16.mxu0 0
        %1957 = vmatpush1.bf16.msra.mxu0 0
        %1958 = vmatprep.subr.bf16.mxu0 0
        %1959 = vmatpush1.bf16.msra.mxu0 0
        %1960 = vmatprep.subr.bf16.mxu0 0
        %1961 = vmatpush1.bf16.msra.mxu0 0
        %1962 = vmatprep.subr.bf16.mxu0 0
        %1963 = vmatpush1.bf16.msra.mxu0 0
        %1964 = vmatprep.subr.bf16.mxu0 0
        %1965 = vmatpush1.bf16.msra.mxu0 0
        %1966 = vmatprep.subr.bf16.mxu0 0
        %1967 = vmatpush1.bf16.msra.mxu0 0
        %1968 = vmatprep.subr.bf16.mxu0 0
        %1969 = vmatpush1.bf16.msra.mxu0 0
        %1970 = vmatprep.subr.bf16.mxu0 0
        %1971 = vmatpush1.bf16.msra.mxu0 0
        %1972 = vmatprep.subr.bf16.mxu0 0
        %1973 = vmatpush1.bf16.msra.mxu0 0
        %1974 = vmatprep.subr.bf16.mxu0 0
        %1975 = vmatpush1.bf16.msra.mxu0 0
        %1976 = vmatprep.subr.bf16.mxu0 0
        %1977 = vmatpush1.bf16.msra.mxu0 0
        %1978 = vmatprep.subr.bf16.mxu0 0
        %1979 = vmatpush1.bf16.msra.mxu0 0
        %1980 = vmatprep.subr.bf16.mxu0 0
        %1981 = vmatpush1.bf16.msra.mxu0 0
        %1982 = vmatprep.subr.bf16.mxu0 0
        %1983 = vmatpush1.bf16.msra.mxu0 0
        %1984 = vmatprep.mubr.bf16.mxu0 0
        %1985 = vmatmul.mubr.bf16.gmra.mrb[0].mxu0 %v1909
        %v1986 = vpop.f32.mrb[0].mxu0
        %v1987 = vadd.f32 %v1679, %v1986
        %v1988 = vpop.f32.mrb[0].mxu0
        %v1989 = vadd.f32 %v1683, %v1988
        %v1990 = vpop.f32.mrb[0].mxu0
        %v1991 = vpop.f32.mrb[0].mxu0
        %1992 = vdwg.mxu0
        %1993 = vmatprep.subr.bf16.mxu0 %v1849
        %1994 = vmatpush1.bf16.msra.mxu0 %v1848
        %1995 = vmatprep.subr.bf16.mxu0 %v1865
        %1996 = vmatpush1.bf16.msra.mxu0 %v1864
        %1997 = vmatprep.subr.bf16.mxu0 0
        %1998 = vmatpush1.bf16.msra.mxu0 0
        %1999 = vmatprep.subr.bf16.mxu0 0
        %2000 = vmatpush1.bf16.msra.mxu0 0
        %2001 = vmatprep.subr.bf16.mxu0 0
        %2002 = vmatpush1.bf16.msra.mxu0 0
        %2003 = vmatprep.subr.bf16.mxu0 0
        %2004 = vmatpush1.bf16.msra.mxu0 0
        %2005 = vmatprep.subr.bf16.mxu0 0
        %2006 = vmatpush1.bf16.msra.mxu0 0
        %2007 = vmatprep.subr.bf16.mxu0 0
        %2008 = vmatpush1.bf16.msra.mxu0 0
        %2009 = vmatprep.subr.bf16.mxu0 0
        %2010 = vmatpush1.bf16.msra.mxu0 0
        %2011 = vmatprep.subr.bf16.mxu0 0
        %2012 = vmatpush1.bf16.msra.mxu0 0
        %2013 = vmatprep.subr.bf16.mxu0 0
        %2014 = vmatpush1.bf16.msra.mxu0 0
        %2015 = vmatprep.subr.bf16.mxu0 0
        %2016 = vmatpush1.bf16.msra.mxu0 0
        %2017 = vmatprep.subr.bf16.mxu0 0
        %2018 = vmatpush1.bf16.msra.mxu0 0
        %2019 = vmatprep.subr.bf16.mxu0 0
        %2020 = vmatpush1.bf16.msra.mxu0 0
        %2021 = vmatprep.subr.bf16.mxu0 0
        %2022 = vmatpush1.bf16.msra.mxu0 0
        %2023 = vmatprep.subr.bf16.mxu0 0
        %2024 = vmatpush1.bf16.msra.mxu0 0
        %2025 = vmatprep.mubr.bf16.mxu0 0
        %2026 = vmatmul.mubr.bf16.gmra.mrb[0].mxu0 %v1909
        %v2027 = vpop.f32.mrb[0].mxu0
        %v2028 = vadd.f32 %v1687, %v2027
        %v2029 = vpop.f32.mrb[0].mxu0
        %v2030 = vadd.f32 %v1691, %v2029
        %v2031 = vpop.f32.mrb[0].mxu0
        %v2032 = vpop.f32.mrb[0].mxu0
        %2033 = vdwg.mxu0
        %2034 = vmatprep.subr.bf16.mxu0 %v1851
        %2035 = vmatpush1.bf16.msra.mxu0 %v1850
        %2036 = vmatprep.subr.bf16.mxu0 %v1867
        %2037 = vmatpush1.bf16.msra.mxu0 %v1866
        %2038 = vmatprep.subr.bf16.mxu0 0
        %2039 = vmatpush1.bf16.msra.mxu0 0
        %2040 = vmatprep.subr.bf16.mxu0 0
        %2041 = vmatpush1.bf16.msra.mxu0 0
        %2042 = vmatprep.subr.bf16.mxu0 0
        %2043 = vmatpush1.bf16.msra.mxu0 0
        %2044 = vmatprep.subr.bf16.mxu0 0
        %2045 = vmatpush1.bf16.msra.mxu0 0
        %2046 = vmatprep.subr.bf16.mxu0 0
        %2047 = vmatpush1.bf16.msra.mxu0 0
        %2048 = vmatprep.subr.bf16.mxu0 0
        %2049 = vmatpush1.bf16.msra.mxu0 0
        %2050 = vmatprep.subr.bf16.mxu0 0
        %2051 = vmatpush1.bf16.msra.mxu0 0
        %2052 = vmatprep.subr.bf16.mxu0 0
        %2053 = vmatpush1.bf16.msra.mxu0 0
        %2054 = vmatprep.subr.bf16.mxu0 0
        %2055 = vmatpush1.bf16.msra.mxu0 0
        %2056 = vmatprep.subr.bf16.mxu0 0
        %2057 = vmatpush1.bf16.msra.mxu0 0
        %2058 = vmatprep.subr.bf16.mxu0 0
        %2059 = vmatpush1.bf16.msra.mxu0 0
        %2060 = vmatprep.subr.bf16.mxu0 0
        %2061 = vmatpush1.bf16.msra.mxu0 0
        %2062 = vmatprep.subr.bf16.mxu0 0
        %2063 = vmatpush1.bf16.msra.mxu0 0
        %2064 = vmatprep.subr.bf16.mxu0 0
        %2065 = vmatpush1.bf16.msra.mxu0 0
        %2066 = vmatprep.mubr.bf16.mxu0 0
        %2067 = vmatmul.mubr.bf16.gmra.mrb[0].mxu0 %v1909
        %v2068 = vpop.f32.mrb[0].mxu0
        %v2069 = vadd.f32 %v1695, %v2068
        %v2070 = vpop.f32.mrb[0].mxu0
        %v2071 = vadd.f32 %v1699, %v2070
        %v2072 = vpop.f32.mrb[0].mxu0
        %v2073 = vpop.f32.mrb[0].mxu0
        %2074 = vdwg.mxu0
        %2075 = vmatprep.subr.bf16.mxu0 %v1853
        %2076 = vmatpush1.bf16.msra.mxu0 %v1852
        %2077 = vmatprep.subr.bf16.mxu0 %v1869
        %2078 = vmatpush1.bf16.msra.mxu0 %v1868
        %2079 = vmatprep.subr.bf16.mxu0 0
        %2080 = vmatpush1.bf16.msra.mxu0 0
        %2081 = vmatprep.subr.bf16.mxu0 0
        %2082 = vmatpush1.bf16.msra.mxu0 0
        %2083 = vmatprep.subr.bf16.mxu0 0
        %2084 = vmatpush1.bf16.msra.mxu0 0
        %2085 = vmatprep.subr.bf16.mxu0 0
        %2086 = vmatpush1.bf16.msra.mxu0 0
        %2087 = vmatprep.subr.bf16.mxu0 0
        %2088 = vmatpush1.bf16.msra.mxu0 0
        %2089 = vmatprep.subr.bf16.mxu0 0
        %2090 = vmatpush1.bf16.msra.mxu0 0
        %2091 = vmatprep.subr.bf16.mxu0 0
        %2092 = vmatpush1.bf16.msra.mxu0 0
        %2093 = vmatprep.subr.bf16.mxu0 0
        %2094 = vmatpush1.bf16.msra.mxu0 0
        %2095 = vmatprep.subr.bf16.mxu0 0
        %2096 = vmatpush1.bf16.msra.mxu0 0
        %2097 = vmatprep.subr.bf16.mxu0 0
        %2098 = vmatpush1.bf16.msra.mxu0 0
        %2099 = vmatprep.subr.bf16.mxu0 0
        %2100 = vmatpush1.bf16.msra.mxu0 0
        %2101 = vmatprep.subr.bf16.mxu0 0
        %2102 = vmatpush1.bf16.msra.mxu0 0
        %2103 = vmatprep.subr.bf16.mxu0 0
        %2104 = vmatpush1.bf16.msra.mxu0 0
        %2105 = vmatprep.subr.bf16.mxu0 0
        %2106 = vmatpush1.bf16.msra.mxu0 0
        %2107 = vmatprep.mubr.bf16.mxu0 0
        %2108 = vmatmul.mubr.bf16.gmra.mrb[0].mxu0 %v1909
        %v2109 = vpop.f32.mrb[0].mxu0
        %v2110 = vadd.f32 %v1703, %v2109
        %v2111 = vpop.f32.mrb[0].mxu0
        %v2112 = vadd.f32 %v1707, %v2111
        %v2113 = vpop.f32.mrb[0].mxu0
        %v2114 = vpop.f32.mrb[0].mxu0
        %2115 = vdwg.mxu0
        %2116 = vmatprep.subr.bf16.mxu0 %v1855
        %2117 = vmatpush1.bf16.msra.mxu0 %v1854
        %2118 = vmatprep.subr.bf16.mxu0 %v1871
        %2119 = vmatpush1.bf16.msra.mxu0 %v1870
        %2120 = vmatprep.subr.bf16.mxu0 0
        %2121 = vmatpush1.bf16.msra.mxu0 0
        %2122 = vmatprep.subr.bf16.mxu0 0
        %2123 = vmatpush1.bf16.msra.mxu0 0
        %2124 = vmatprep.subr.bf16.mxu0 0
        %2125 = vmatpush1.bf16.msra.mxu0 0
        %2126 = vmatprep.subr.bf16.mxu0 0
        %2127 = vmatpush1.bf16.msra.mxu0 0
        %2128 = vmatprep.subr.bf16.mxu0 0
        %2129 = vmatpush1.bf16.msra.mxu0 0
        %2130 = vmatprep.subr.bf16.mxu0 0
        %2131 = vmatpush1.bf16.msra.mxu0 0
        %2132 = vmatprep.subr.bf16.mxu0 0
        %2133 = vmatpush1.bf16.msra.mxu0 0
        %2134 = vmatprep.subr.bf16.mxu0 0
        %2135 = vmatpush1.bf16.msra.mxu0 0
        %2136 = vmatprep.subr.bf16.mxu0 0
        %2137 = vmatpush1.bf16.msra.mxu0 0
        %2138 = vmatprep.subr.bf16.mxu0 0
        %2139 = vmatpush1.bf16.msra.mxu0 0
        %2140 = vmatprep.subr.bf16.mxu0 0
        %2141 = vmatpush1.bf16.msra.mxu0 0
        %2142 = vmatprep.subr.bf16.mxu0 0
        %2143 = vmatpush1.bf16.msra.mxu0 0
        %2144 = vmatprep.subr.bf16.mxu0 0
        %2145 = vmatpush1.bf16.msra.mxu0 0
        %2146 = vmatprep.subr.bf16.mxu0 0
        %2147 = vmatpush1.bf16.msra.mxu0 0
        %2148 = vmatprep.mubr.bf16.mxu0 0
        %2149 = vmatmul.mubr.bf16.gmra.mrb[0].mxu0 %v1909
        %v2150 = vpop.f32.mrb[0].mxu0
        %v2151 = vadd.f32 %v1711, %v2150
        %v2152 = vpop.f32.mrb[0].mxu0
        %v2153 = vadd.f32 %v1715, %v2152
        %v2154 = vpop.f32.mrb[0].mxu0
        %v2155 = vpop.f32.mrb[0].mxu0
        %2156 = vdwg.mxu0
        %2157 = vmatprep.subr.bf16.mxu0 %v1857
        %2158 = vmatpush1.bf16.msra.mxu0 %v1856
        %2159 = vmatprep.subr.bf16.mxu0 %v1873
        %2160 = vmatpush1.bf16.msra.mxu0 %v1872
        %2161 = vmatprep.subr.bf16.mxu0 0
        %2162 = vmatpush1.bf16.msra.mxu0 0
        %2163 = vmatprep.subr.bf16.mxu0 0
        %2164 = vmatpush1.bf16.msra.mxu0 0
        %2165 = vmatprep.subr.bf16.mxu0 0
        %2166 = vmatpush1.bf16.msra.mxu0 0
        %2167 = vmatprep.subr.bf16.mxu0 0
        %2168 = vmatpush1.bf16.msra.mxu0 0
        %2169 = vmatprep.subr.bf16.mxu0 0
        %2170 = vmatpush1.bf16.msra.mxu0 0
        %2171 = vmatprep.subr.bf16.mxu0 0
        %2172 = vmatpush1.bf16.msra.mxu0 0
        %2173 = vmatprep.subr.bf16.mxu0 0
        %2174 = vmatpush1.bf16.msra.mxu0 0
        %2175 = vmatprep.subr.bf16.mxu0 0
        %2176 = vmatpush1.bf16.msra.mxu0 0
        %2177 = vmatprep.subr.bf16.mxu0 0
        %2178 = vmatpush1.bf16.msra.mxu0 0
        %2179 = vmatprep.subr.bf16.mxu0 0
        %2180 = vmatpush1.bf16.msra.mxu0 0
        %2181 = vmatprep.subr.bf16.mxu0 0
        %2182 = vmatpush1.bf16.msra.mxu0 0
        %2183 = vmatprep.subr.bf16.mxu0 0
        %2184 = vmatpush1.bf16.msra.mxu0 0
        %2185 = vmatprep.subr.bf16.mxu0 0
        %2186 = vmatpush1.bf16.msra.mxu0 0
        %2187 = vmatprep.subr.bf16.mxu0 0
        %2188 = vmatpush1.bf16.msra.mxu0 0
        %2189 = vmatprep.mubr.bf16.mxu0 0
        %2190 = vmatmul.mubr.bf16.gmra.mrb[0].mxu0 %v1909
        %v2191 = vpop.f32.mrb[0].mxu0
        %v2192 = vadd.f32 %v1719, %v2191
        %v2193 = vpop.f32.mrb[0].mxu0
        %v2194 = vadd.f32 %v1723, %v2193
        %v2195 = vpop.f32.mrb[0].mxu0
        %v2196 = vpop.f32.mrb[0].mxu0
        %2197 = vdwg.mxu0
        %2198 = vmatprep.subr.bf16.mxu0 %v1859
        %2199 = vmatpush1.bf16.msra.mxu0 %v1858
        %2200 = vmatprep.subr.bf16.mxu0 %v1875
        %2201 = vmatpush1.bf16.msra.mxu0 %v1874
        %2202 = vmatprep.subr.bf16.mxu0 0
        %2203 = vmatpush1.bf16.msra.mxu0 0
        %2204 = vmatprep.subr.bf16.mxu0 0
        %2205 = vmatpush1.bf16.msra.mxu0 0
        %2206 = vmatprep.subr.bf16.mxu0 0
        %2207 = vmatpush1.bf16.msra.mxu0 0
        %2208 = vmatprep.subr.bf16.mxu0 0
        %2209 = vmatpush1.bf16.msra.mxu0 0
        %2210 = vmatprep.subr.bf16.mxu0 0
        %2211 = vmatpush1.bf16.msra.mxu0 0
        %2212 = vmatprep.subr.bf16.mxu0 0
        %2213 = vmatpush1.bf16.msra.mxu0 0
        %2214 = vmatprep.subr.bf16.mxu0 0
        %2215 = vmatpush1.bf16.msra.mxu0 0
        %2216 = vmatprep.subr.bf16.mxu0 0
        %2217 = vmatpush1.bf16.msra.mxu0 0
        %2218 = vmatprep.subr.bf16.mxu0 0
        %2219 = vmatpush1.bf16.msra.mxu0 0
        %2220 = vmatprep.subr.bf16.mxu0 0
        %2221 = vmatpush1.bf16.msra.mxu0 0
        %2222 = vmatprep.subr.bf16.mxu0 0
        %2223 = vmatpush1.bf16.msra.mxu0 0
        %2224 = vmatprep.subr.bf16.mxu0 0
        %2225 = vmatpush1.bf16.msra.mxu0 0
        %2226 = vmatprep.subr.bf16.mxu0 0
        %2227 = vmatpush1.bf16.msra.mxu0 0
        %2228 = vmatprep.subr.bf16.mxu0 0
        %2229 = vmatpush1.bf16.msra.mxu0 0
        %2230 = vmatprep.mubr.bf16.mxu0 0
        %2231 = vmatmul.mubr.bf16.gmra.mrb[0].mxu0 %v1909
        %v2232 = vpop.f32.mrb[0].mxu0
        %v2233 = vadd.f32 %v1727, %v2232
        %v2234 = vpop.f32.mrb[0].mxu0
        %v2235 = vadd.f32 %v1731, %v2234
        %v2236 = vpop.f32.mrb[0].mxu0
        %v2237 = vpop.f32.mrb[0].mxu0
        %2238 = vdwg.mxu0
        %v2239 = vmax.f32 %v1946, 0.0
        %v2240 = vmax.f32 %v1948, 0.0
        %v2241 = vmax.f32 %v1987, 0.0
        %v2242 = vmax.f32 %v1989, 0.0
        %v2243 = vmax.f32 %v2028, 0.0
        %v2244 = vmax.f32 %v2030, 0.0
        %v2245 = vmax.f32 %v2069, 0.0
        %v2246 = vmax.f32 %v2071, 0.0
        %v2247 = vmax.f32 %v2110, 0.0
        %v2248 = vmax.f32 %v2112, 0.0
        %v2249 = vmax.f32 %v2151, 0.0
        %v2250 = vmax.f32 %v2153, 0.0
        %v2251 = vmax.f32 %v2192, 0.0
        %v2252 = vmax.f32 %v2194, 0.0
        %v2253 = vmax.f32 %v2233, 0.0
        %v2254 = vmax.f32 %v2235, 0.0
        %v2255 = vpack.c.bf16 %v2239, %v2239
        %v2256 = vpack.c.bf16 %v2240, %v2240
        %v2257 = vpack.c.bf16 %v2241, %v2241
        %v2258 = vpack.c.bf16 %v2242, %v2242
        %v2259 = vpack.c.bf16 %v2243, %v2243
        %v2260 = vpack.c.bf16 %v2244, %v2244
        %v2261 = vpack.c.bf16 %v2245, %v2245
        %v2262 = vpack.c.bf16 %v2246, %v2246
        %v2263 = vpack.c.bf16 %v2247, %v2247
        %v2264 = vpack.c.bf16 %v2248, %v2248
        %v2265 = vpack.c.bf16 %v2249, %v2249
        %v2266 = vpack.c.bf16 %v2250, %v2250
        %v2267 = vpack.c.bf16 %v2251, %v2251
        %v2268 = vpack.c.bf16 %v2252, %v2252
        %v2269 = vpack.c.bf16 %v2253, %v2253
        %v2270 = vpack.c.bf16 %v2254, %v2254
        %v2271 = vld [vmem:[%s14] sm:$0xf]
        %v2272 = vld [vmem:[%s14 + $0x4] sm:$0xf]
        %v2273 = vld [vmem:[%s14 + $0x8] sm:$0xf]
        %v2274 = vld [vmem:[%s14 + $0xc] sm:$0xf]
        %v2275 = vld [vmem:[%s14 + $0x10] sm:$0xf]
        %v2276 = vld [vmem:[%s14 + $0x14] sm:$0xf]
        %v2277 = vld [vmem:[%s14 + $0x18] sm:$0xf]
        %v2278 = vld [vmem:[%s14 + $0x1c] sm:$0xf]
        %v2279 = vld [vmem:[%s14 + $0x20] sm:$0xf]
        %v2280 = vld [vmem:[%s14 + $0x24] sm:$0xf]
        %v2281 = vld [vmem:[%s14 + $0x28] sm:$0xf]
        %v2282 = vld [vmem:[%s14 + $0x2c] sm:$0xf]
        %v2283 = vld [vmem:[%s14 + $0x30] sm:$0xf]
        %v2284 = vld [vmem:[%s14 + $0x34] sm:$0xf]
        %v2285 = vld [vmem:[%s14 + $0x38] sm:$0xf]
        %v2286 = vld [vmem:[%s14 + $0x3c] sm:$0xf]
        %v2287 = vld [vmem:[%s14 + $0x40] sm:$0xf]
        %v2288 = vld [vmem:[%s14 + $0x44] sm:$0xf]
        %v2289 = vld [vmem:[%s14 + $0x48] sm:$0xf]
        %v2290 = vld [vmem:[%s14 + $0x4c] sm:$0xf]
        %v2291 = vld [vmem:[%s14 + $0x50] sm:$0xf]
        %v2292 = vld [vmem:[%s14 + $0x54] sm:$0xf]
        %v2293 = vld [vmem:[%s14 + $0x58] sm:$0xf]
        %v2294 = vld [vmem:[%s14 + $0x5c] sm:$0xf]
        %v2295 = vld [vmem:[%s14 + $0x60] sm:$0xf]
        %v2296 = vld [vmem:[%s14 + $0x64] sm:$0xf]
        %v2297 = vld [vmem:[%s14 + $0x68] sm:$0xf]
        %v2298 = vld [vmem:[%s14 + $0x6c] sm:$0xf]
        %v2299 = vld [vmem:[%s14 + $0x70] sm:$0xf]
        %v2300 = vld [vmem:[%s14 + $0x74] sm:$0xf]
        %v2301 = vld [vmem:[%s14 + $0x78] sm:$0xf]
        %v2302 = vld [vmem:[%s14 + $0x7c] sm:$0xf]
        %v2303 = vld [vmem:[%s14 + $0x80] sm:$0xf]
        %v2304 = vld [vmem:[%s14 + $0x84] sm:$0xf]
        %v2305 = vld [vmem:[%s14 + $0x88] sm:$0xf]
        %v2306 = vld [vmem:[%s14 + $0x8c] sm:$0xf]
        %v2307 = vld [vmem:[%s14 + $0x90] sm:$0xf]
        %v2308 = vld [vmem:[%s14 + $0x94] sm:$0xf]
        %v2309 = vld [vmem:[%s14 + $0x98] sm:$0xf]
        %v2310 = vld [vmem:[%s14 + $0x9c] sm:$0xf]
        %v2311 = vld [vmem:[%s14 + $0xa0] sm:$0xf]
        %v2312 = vld [vmem:[%s14 + $0xa4] sm:$0xf]
        %v2313 = vld [vmem:[%s14 + $0xa8] sm:$0xf]
        %v2314 = vld [vmem:[%s14 + $0xac] sm:$0xf]
        %v2315 = vld [vmem:[%s14 + $0xb0] sm:$0xf]
        %v2316 = vld [vmem:[%s14 + $0xb4] sm:$0xf]
        %v2317 = vld [vmem:[%s14 + $0xb8] sm:$0xf]
        %v2318 = vld [vmem:[%s14 + $0xbc] sm:$0xf]
        %v2319 = vld [vmem:[%s14 + $0xc0] sm:$0xf]
        %v2320 = vld [vmem:[%s14 + $0xc4] sm:$0xf]
        %v2321 = vld [vmem:[%s14 + $0xc8] sm:$0xf]
        %v2322 = vld [vmem:[%s14 + $0xcc] sm:$0xf]
        %v2323 = vld [vmem:[%s14 + $0xd0] sm:$0xf]
        %v2324 = vld [vmem:[%s14 + $0xd4] sm:$0xf]
        %v2325 = vld [vmem:[%s14 + $0xd8] sm:$0xf]
        %v2326 = vld [vmem:[%s14 + $0xdc] sm:$0xf]
        %v2327 = vld [vmem:[%s14 + $0xe0] sm:$0xf]
        %v2328 = vld [vmem:[%s14 + $0xe4] sm:$0xf]
        %v2329 = vld [vmem:[%s14 + $0xe8] sm:$0xf]
        %v2330 = vld [vmem:[%s14 + $0xec] sm:$0xf]
        %v2331 = vld [vmem:[%s14 + $0xf0] sm:$0xf]
        %v2332 = vld [vmem:[%s14 + $0xf4] sm:$0xf]
        %v2333 = vld [vmem:[%s14 + $0xf8] sm:$0xf]
        %v2334 = vld [vmem:[%s14 + $0xfc] sm:$0xf]
        %v2335 = vld [vmem:[%s14 + $0x100] sm:$0xf]
        %v2336 = vld [vmem:[%s14 + $0x104] sm:$0xf]
        %v2337 = vld [vmem:[%s14 + $0x108] sm:$0xf]
        %v2338 = vld [vmem:[%s14 + $0x10c] sm:$0xf]
        %v2339 = vld [vmem:[%s14 + $0x110] sm:$0xf]
        %v2340 = vld [vmem:[%s14 + $0x114] sm:$0xf]
        %v2341 = vld [vmem:[%s14 + $0x118] sm:$0xf]
        %v2342 = vld [vmem:[%s14 + $0x11c] sm:$0xf]
        %v2343 = vld [vmem:[%s14 + $0x120] sm:$0xf]
        %v2344 = vld [vmem:[%s14 + $0x124] sm:$0xf]
        %v2345 = vld [vmem:[%s14 + $0x128] sm:$0xf]
        %v2346 = vld [vmem:[%s14 + $0x12c] sm:$0xf]
        %v2347 = vld [vmem:[%s14 + $0x130] sm:$0xf]
        %v2348 = vld [vmem:[%s14 + $0x134] sm:$0xf]
        %v2349 = vld [vmem:[%s14 + $0x138] sm:$0xf]
        %v2350 = vld [vmem:[%s14 + $0x13c] sm:$0xf]
        %v2351 = vld [vmem:[%s14 + $0x140] sm:$0xf]
        %v2352 = vld [vmem:[%s14 + $0x144] sm:$0xf]
        %v2353 = vld [vmem:[%s14 + $0x148] sm:$0xf]
        %v2354 = vld [vmem:[%s14 + $0x14c] sm:$0xf]
        %v2355 = vld [vmem:[%s14 + $0x150] sm:$0xf]
        %v2356 = vld [vmem:[%s14 + $0x154] sm:$0xf]
        %v2357 = vld [vmem:[%s14 + $0x158] sm:$0xf]
        %v2358 = vld [vmem:[%s14 + $0x15c] sm:$0xf]
        %v2359 = vld [vmem:[%s14 + $0x160] sm:$0xf]
        %v2360 = vld [vmem:[%s14 + $0x164] sm:$0xf]
        %v2361 = vld [vmem:[%s14 + $0x168] sm:$0xf]
        %v2362 = vld [vmem:[%s14 + $0x16c] sm:$0xf]
        %v2363 = vld [vmem:[%s14 + $0x170] sm:$0xf]
        %v2364 = vld [vmem:[%s14 + $0x174] sm:$0xf]
        %v2365 = vld [vmem:[%s14 + $0x178] sm:$0xf]
        %v2366 = vld [vmem:[%s14 + $0x17c] sm:$0xf]
        %v2367 = vld [vmem:[%s14 + $0x180] sm:$0xf]
        %v2368 = vld [vmem:[%s14 + $0x184] sm:$0xf]
        %v2369 = vld [vmem:[%s14 + $0x188] sm:$0xf]
        %v2370 = vld [vmem:[%s14 + $0x18c] sm:$0xf]
        %v2371 = vld [vmem:[%s14 + $0x190] sm:$0xf]
        %v2372 = vld [vmem:[%s14 + $0x194] sm:$0xf]
        %v2373 = vld [vmem:[%s14 + $0x198] sm:$0xf]
        %v2374 = vld [vmem:[%s14 + $0x19c] sm:$0xf]
        %v2375 = vld [vmem:[%s14 + $0x1a0] sm:$0xf]
        %v2376 = vld [vmem:[%s14 + $0x1a4] sm:$0xf]
        %v2377 = vld [vmem:[%s14 + $0x1a8] sm:$0xf]
        %v2378 = vld [vmem:[%s14 + $0x1ac] sm:$0xf]
        %v2379 = vld [vmem:[%s14 + $0x1b0] sm:$0xf]
        %v2380 = vld [vmem:[%s14 + $0x1b4] sm:$0xf]
        %v2381 = vld [vmem:[%s14 + $0x1b8] sm:$0xf]
        %v2382 = vld [vmem:[%s14 + $0x1bc] sm:$0xf]
        %v2383 = vld [vmem:[%s14 + $0x1c0] sm:$0xf]
        %v2384 = vld [vmem:[%s14 + $0x1c4] sm:$0xf]
        %v2385 = vld [vmem:[%s14 + $0x1c8] sm:$0xf]
        %v2386 = vld [vmem:[%s14 + $0x1cc] sm:$0xf]
        %v2387 = vld [vmem:[%s14 + $0x1d0] sm:$0xf]
        %v2388 = vld [vmem:[%s14 + $0x1d4] sm:$0xf]
        %v2389 = vld [vmem:[%s14 + $0x1d8] sm:$0xf]
        %v2390 = vld [vmem:[%s14 + $0x1dc] sm:$0xf]
        %v2391 = vld [vmem:[%s14 + $0x1e0] sm:$0xf]
        %v2392 = vld [vmem:[%s14 + $0x1e4] sm:$0xf]
        %v2393 = vld [vmem:[%s14 + $0x1e8] sm:$0xf]
        %v2394 = vld [vmem:[%s14 + $0x1ec] sm:$0xf]
        %v2395 = vld [vmem:[%s14 + $0x1f0] sm:$0xf]
        %v2396 = vld [vmem:[%s14 + $0x1f4] sm:$0xf]
        %v2397 = vld [vmem:[%s14 + $0x1f8] sm:$0xf]
        %v2398 = vld [vmem:[%s14 + $0x1fc] sm:$0xf]
        %v2399 = vld [vmem:[%s14 + $0x200] sm:$0xf]
        %v2400 = vld [vmem:[%s14 + $0x204] sm:$0xf]
        %v2401 = vld [vmem:[%s14 + $0x208] sm:$0xf]
        %v2402 = vld [vmem:[%s14 + $0x20c] sm:$0xf]
        %v2403 = vld [vmem:[%s14 + $0x210] sm:$0xf]
        %v2404 = vld [vmem:[%s14 + $0x214] sm:$0xf]
        %v2405 = vld [vmem:[%s14 + $0x218] sm:$0xf]
        %v2406 = vld [vmem:[%s14 + $0x21c] sm:$0xf]
        %v2407 = vld [vmem:[%s14 + $0x220] sm:$0xf]
        %v2408 = vld [vmem:[%s14 + $0x224] sm:$0xf]
        %v2409 = vld [vmem:[%s14 + $0x228] sm:$0xf]
        %v2410 = vld [vmem:[%s14 + $0x22c] sm:$0xf]
        %v2411 = vld [vmem:[%s14 + $0x230] sm:$0xf]
        %v2412 = vld [vmem:[%s14 + $0x234] sm:$0xf]
        %v2413 = vld [vmem:[%s14 + $0x238] sm:$0xf]
        %v2414 = vld [vmem:[%s14 + $0x23c] sm:$0xf]
        %v2415 = vld [vmem:[%s14 + $0x240] sm:$0xf]
        %v2416 = vld [vmem:[%s14 + $0x244] sm:$0xf]
        %v2417 = vld [vmem:[%s14 + $0x248] sm:$0xf]
        %v2418 = vld [vmem:[%s14 + $0x24c] sm:$0xf]
        %v2419 = vld [vmem:[%s14 + $0x250] sm:$0xf]
        %v2420 = vld [vmem:[%s14 + $0x254] sm:$0xf]
        %v2421 = vld [vmem:[%s14 + $0x258] sm:$0xf]
        %v2422 = vld [vmem:[%s14 + $0x25c] sm:$0xf]
        %v2423 = vld [vmem:[%s14 + $0x260] sm:$0xf]
        %v2424 = vld [vmem:[%s14 + $0x264] sm:$0xf]
        %v2425 = vld [vmem:[%s14 + $0x268] sm:$0xf]
        %v2426 = vld [vmem:[%s14 + $0x26c] sm:$0xf]
        %v2427 = vld [vmem:[%s14 + $0x270] sm:$0xf]
        %v2428 = vld [vmem:[%s14 + $0x274] sm:$0xf]
        %v2429 = vld [vmem:[%s14 + $0x278] sm:$0xf]
        %v2430 = vld [vmem:[%s14 + $0x27c] sm:$0xf]
        %v2431 = vld [vmem:[%s14 + $0x280] sm:$0xf]
        %v2432 = vld [vmem:[%s14 + $0x284] sm:$0xf]
        %v2433 = vld [vmem:[%s14 + $0x288] sm:$0xf]
        %v2434 = vld [vmem:[%s14 + $0x28c] sm:$0xf]
        %v2435 = vld [vmem:[%s14 + $0x290] sm:$0xf]
        %v2436 = vld [vmem:[%s14 + $0x294] sm:$0xf]
        %v2437 = vld [vmem:[%s14 + $0x298] sm:$0xf]
        %v2438 = vld [vmem:[%s14 + $0x29c] sm:$0xf]
        %v2439 = vld [vmem:[%s14 + $0x2a0] sm:$0xf]
        %v2440 = vld [vmem:[%s14 + $0x2a4] sm:$0xf]
        %v2441 = vld [vmem:[%s14 + $0x2a8] sm:$0xf]
        %v2442 = vld [vmem:[%s14 + $0x2ac] sm:$0xf]
        %v2443 = vld [vmem:[%s14 + $0x2b0] sm:$0xf]
        %v2444 = vld [vmem:[%s14 + $0x2b4] sm:$0xf]
        %v2445 = vld [vmem:[%s14 + $0x2b8] sm:$0xf]
        %v2446 = vld [vmem:[%s14 + $0x2bc] sm:$0xf]
        %v2447 = vld [vmem:[%s14 + $0x2c0] sm:$0xf]
        %v2448 = vld [vmem:[%s14 + $0x2c4] sm:$0xf]
        %v2449 = vld [vmem:[%s14 + $0x2c8] sm:$0xf]
        %v2450 = vld [vmem:[%s14 + $0x2cc] sm:$0xf]
        %v2451 = vld [vmem:[%s14 + $0x2d0] sm:$0xf]
        %v2452 = vld [vmem:[%s14 + $0x2d4] sm:$0xf]
        %v2453 = vld [vmem:[%s14 + $0x2d8] sm:$0xf]
        %v2454 = vld [vmem:[%s14 + $0x2dc] sm:$0xf]
        %v2455 = vld [vmem:[%s14 + $0x2e0] sm:$0xf]
        %v2456 = vld [vmem:[%s14 + $0x2e4] sm:$0xf]
        %v2457 = vld [vmem:[%s14 + $0x2e8] sm:$0xf]
        %v2458 = vld [vmem:[%s14 + $0x2ec] sm:$0xf]
        %v2459 = vld [vmem:[%s14 + $0x2f0] sm:$0xf]
        %v2460 = vld [vmem:[%s14 + $0x2f4] sm:$0xf]
        %v2461 = vld [vmem:[%s14 + $0x2f8] sm:$0xf]
        %v2462 = vld [vmem:[%s14 + $0x2fc] sm:$0xf]
        %v2463 = vld [vmem:[%s14 + $0x300] sm:$0xf]
        %v2464 = vld [vmem:[%s14 + $0x304] sm:$0xf]
        %v2465 = vld [vmem:[%s14 + $0x308] sm:$0xf]
        %v2466 = vld [vmem:[%s14 + $0x30c] sm:$0xf]
        %v2467 = vld [vmem:[%s14 + $0x310] sm:$0xf]
        %v2468 = vld [vmem:[%s14 + $0x314] sm:$0xf]
        %v2469 = vld [vmem:[%s14 + $0x318] sm:$0xf]
        %v2470 = vld [vmem:[%s14 + $0x31c] sm:$0xf]
        %v2471 = vld [vmem:[%s14 + $0x320] sm:$0xf]
        %v2472 = vld [vmem:[%s14 + $0x324] sm:$0xf]
        %v2473 = vld [vmem:[%s14 + $0x328] sm:$0xf]
        %v2474 = vld [vmem:[%s14 + $0x32c] sm:$0xf]
        %v2475 = vld [vmem:[%s14 + $0x330] sm:$0xf]
        %v2476 = vld [vmem:[%s14 + $0x334] sm:$0xf]
        %v2477 = vld [vmem:[%s14 + $0x338] sm:$0xf]
        %v2478 = vld [vmem:[%s14 + $0x33c] sm:$0xf]
        %v2479 = vld [vmem:[%s14 + $0x340] sm:$0xf]
        %v2480 = vld [vmem:[%s14 + $0x344] sm:$0xf]
        %v2481 = vld [vmem:[%s14 + $0x348] sm:$0xf]
        %v2482 = vld [vmem:[%s14 + $0x34c] sm:$0xf]
        %v2483 = vld [vmem:[%s14 + $0x350] sm:$0xf]
        %v2484 = vld [vmem:[%s14 + $0x354] sm:$0xf]
        %v2485 = vld [vmem:[%s14 + $0x358] sm:$0xf]
        %v2486 = vld [vmem:[%s14 + $0x35c] sm:$0xf]
        %v2487 = vld [vmem:[%s14 + $0x360] sm:$0xf]
        %v2488 = vld [vmem:[%s14 + $0x364] sm:$0xf]
        %v2489 = vld [vmem:[%s14 + $0x368] sm:$0xf]
        %v2490 = vld [vmem:[%s14 + $0x36c] sm:$0xf]
        %v2491 = vld [vmem:[%s14 + $0x370] sm:$0xf]
        %v2492 = vld [vmem:[%s14 + $0x374] sm:$0xf]
        %v2493 = vld [vmem:[%s14 + $0x378] sm:$0xf]
        %v2494 = vld [vmem:[%s14 + $0x37c] sm:$0xf]
        %v2495 = vld [vmem:[%s14 + $0x380] sm:$0xf]
        %v2496 = vld [vmem:[%s14 + $0x384] sm:$0xf]
        %v2497 = vld [vmem:[%s14 + $0x388] sm:$0xf]
        %v2498 = vld [vmem:[%s14 + $0x38c] sm:$0xf]
        %v2499 = vld [vmem:[%s14 + $0x390] sm:$0xf]
        %v2500 = vld [vmem:[%s14 + $0x394] sm:$0xf]
        %v2501 = vld [vmem:[%s14 + $0x398] sm:$0xf]
        %v2502 = vld [vmem:[%s14 + $0x39c] sm:$0xf]
        %v2503 = vld [vmem:[%s14 + $0x3a0] sm:$0xf]
        %v2504 = vld [vmem:[%s14 + $0x3a4] sm:$0xf]
        %v2505 = vld [vmem:[%s14 + $0x3a8] sm:$0xf]
        %v2506 = vld [vmem:[%s14 + $0x3ac] sm:$0xf]
        %v2507 = vld [vmem:[%s14 + $0x3b0] sm:$0xf]
        %v2508 = vld [vmem:[%s14 + $0x3b4] sm:$0xf]
        %v2509 = vld [vmem:[%s14 + $0x3b8] sm:$0xf]
        %v2510 = vld [vmem:[%s14 + $0x3bc] sm:$0xf]
        %v2511 = vld [vmem:[%s14 + $0x3c0] sm:$0xf]
        %v2512 = vld [vmem:[%s14 + $0x3c4] sm:$0xf]
        %v2513 = vld [vmem:[%s14 + $0x3c8] sm:$0xf]
        %v2514 = vld [vmem:[%s14 + $0x3cc] sm:$0xf]
        %v2515 = vld [vmem:[%s14 + $0x3d0] sm:$0xf]
        %v2516 = vld [vmem:[%s14 + $0x3d4] sm:$0xf]
        %v2517 = vld [vmem:[%s14 + $0x3d8] sm:$0xf]
        %v2518 = vld [vmem:[%s14 + $0x3dc] sm:$0xf]
        %v2519 = vld [vmem:[%s14 + $0x3e0] sm:$0xf]
        %v2520 = vld [vmem:[%s14 + $0x3e4] sm:$0xf]
        %v2521 = vld [vmem:[%s14 + $0x3e8] sm:$0xf]
        %v2522 = vld [vmem:[%s14 + $0x3ec] sm:$0xf]
        %v2523 = vld [vmem:[%s14 + $0x3f0] sm:$0xf]
        %v2524 = vld [vmem:[%s14 + $0x3f4] sm:$0xf]
        %v2525 = vld [vmem:[%s14 + $0x3f8] sm:$0xf]
        %v2526 = vld [vmem:[%s14 + $0x3fc] sm:$0xf]
        %v2527 = vld [vmem:[%s15] sm:$0x1]
        %v2529 = vlaneseq
        %v2530 = vshrl.u32 %v2529, 7
        %v2531 = vsub.s32 0, %v2530
        %v2532 = vrot.slane %v2527, %v2531
        %v2790 = vunpack.c.l.b16 %v2271
        %v2791 = vunpack.c.l.b16 %v2272
        %v2792 = vunpack.c.l.b16 %v2273
        %v2793 = vunpack.c.l.b16 %v2274
        %v2794 = vunpack.c.l.b16 %v2275
        %v2795 = vunpack.c.l.b16 %v2276
        %v2796 = vunpack.c.l.b16 %v2277
        %v2797 = vunpack.c.l.b16 %v2278
        %v2798 = vunpack.c.l.b16 %v2279
        %v2799 = vunpack.c.l.b16 %v2280
        %v2800 = vunpack.c.l.b16 %v2281
        %v2801 = vunpack.c.l.b16 %v2282
        %v2802 = vunpack.c.l.b16 %v2283
        %v2803 = vunpack.c.l.b16 %v2284
        %v2804 = vunpack.c.l.b16 %v2285
        %v2805 = vunpack.c.l.b16 %v2286
        %v2806 = vunpack.c.l.b16 %v2287
        %v2807 = vunpack.c.l.b16 %v2288
        %v2808 = vunpack.c.l.b16 %v2289
        %v2809 = vunpack.c.l.b16 %v2290
        %v2810 = vunpack.c.l.b16 %v2291
        %v2811 = vunpack.c.l.b16 %v2292
        %v2812 = vunpack.c.l.b16 %v2293
        %v2813 = vunpack.c.l.b16 %v2294
        %v2814 = vunpack.c.l.b16 %v2295
        %v2815 = vunpack.c.l.b16 %v2296
        %v2816 = vunpack.c.l.b16 %v2297
        %v2817 = vunpack.c.l.b16 %v2298
        %v2818 = vunpack.c.l.b16 %v2299
        %v2819 = vunpack.c.l.b16 %v2300
        %v2820 = vunpack.c.l.b16 %v2301
        %v2821 = vunpack.c.l.b16 %v2302
        %v2822 = vunpack.c.l.b16 %v2303
        %v2823 = vunpack.c.l.b16 %v2304
        %v2824 = vunpack.c.l.b16 %v2305
        %v2825 = vunpack.c.l.b16 %v2306
        %v2826 = vunpack.c.l.b16 %v2307
        %v2827 = vunpack.c.l.b16 %v2308
        %v2828 = vunpack.c.l.b16 %v2309
        %v2829 = vunpack.c.l.b16 %v2310
        %v2830 = vunpack.c.l.b16 %v2311
        %v2831 = vunpack.c.l.b16 %v2312
        %v2832 = vunpack.c.l.b16 %v2313
        %v2833 = vunpack.c.l.b16 %v2314
        %v2834 = vunpack.c.l.b16 %v2315
        %v2835 = vunpack.c.l.b16 %v2316
        %v2836 = vunpack.c.l.b16 %v2317
        %v2837 = vunpack.c.l.b16 %v2318
        %v2838 = vunpack.c.l.b16 %v2319
        %v2839 = vunpack.c.l.b16 %v2320
        %v2840 = vunpack.c.l.b16 %v2321
        %v2841 = vunpack.c.l.b16 %v2322
        %v2842 = vunpack.c.l.b16 %v2323
        %v2843 = vunpack.c.l.b16 %v2324
        %v2844 = vunpack.c.l.b16 %v2325
        %v2845 = vunpack.c.l.b16 %v2326
        %v2846 = vunpack.c.l.b16 %v2327
        %v2847 = vunpack.c.l.b16 %v2328
        %v2848 = vunpack.c.l.b16 %v2329
        %v2849 = vunpack.c.l.b16 %v2330
        %v2850 = vunpack.c.l.b16 %v2331
        %v2851 = vunpack.c.l.b16 %v2332
        %v2852 = vunpack.c.l.b16 %v2333
        %v2853 = vunpack.c.l.b16 %v2334
        %v2854 = vunpack.c.l.b16 %v2335
        %v2855 = vunpack.c.l.b16 %v2336
        %v2856 = vunpack.c.l.b16 %v2337
        %v2857 = vunpack.c.l.b16 %v2338
        %v2858 = vunpack.c.l.b16 %v2339
        %v2859 = vunpack.c.l.b16 %v2340
        %v2860 = vunpack.c.l.b16 %v2341
        %v2861 = vunpack.c.l.b16 %v2342
        %v2862 = vunpack.c.l.b16 %v2343
        %v2863 = vunpack.c.l.b16 %v2344
        %v2864 = vunpack.c.l.b16 %v2345
        %v2865 = vunpack.c.l.b16 %v2346
        %v2866 = vunpack.c.l.b16 %v2347
        %v2867 = vunpack.c.l.b16 %v2348
        %v2868 = vunpack.c.l.b16 %v2349
        %v2869 = vunpack.c.l.b16 %v2350
        %v2870 = vunpack.c.l.b16 %v2351
        %v2871 = vunpack.c.l.b16 %v2352
        %v2872 = vunpack.c.l.b16 %v2353
        %v2873 = vunpack.c.l.b16 %v2354
        %v2874 = vunpack.c.l.b16 %v2355
        %v2875 = vunpack.c.l.b16 %v2356
        %v2876 = vunpack.c.l.b16 %v2357
        %v2877 = vunpack.c.l.b16 %v2358
        %v2878 = vunpack.c.l.b16 %v2359
        %v2879 = vunpack.c.l.b16 %v2360
        %v2880 = vunpack.c.l.b16 %v2361
        %v2881 = vunpack.c.l.b16 %v2362
        %v2882 = vunpack.c.l.b16 %v2363
        %v2883 = vunpack.c.l.b16 %v2364
        %v2884 = vunpack.c.l.b16 %v2365
        %v2885 = vunpack.c.l.b16 %v2366
        %v2886 = vunpack.c.l.b16 %v2367
        %v2887 = vunpack.c.l.b16 %v2368
        %v2888 = vunpack.c.l.b16 %v2369
        %v2889 = vunpack.c.l.b16 %v2370
        %v2890 = vunpack.c.l.b16 %v2371
        %v2891 = vunpack.c.l.b16 %v2372
        %v2892 = vunpack.c.l.b16 %v2373
        %v2893 = vunpack.c.l.b16 %v2374
        %v2894 = vunpack.c.l.b16 %v2375
        %v2895 = vunpack.c.l.b16 %v2376
        %v2896 = vunpack.c.l.b16 %v2377
        %v2897 = vunpack.c.l.b16 %v2378
        %v2898 = vunpack.c.l.b16 %v2379
        %v2899 = vunpack.c.l.b16 %v2380
        %v2900 = vunpack.c.l.b16 %v2381
        %v2901 = vunpack.c.l.b16 %v2382
        %v2902 = vunpack.c.l.b16 %v2383
        %v2903 = vunpack.c.l.b16 %v2384
        %v2904 = vunpack.c.l.b16 %v2385
        %v2905 = vunpack.c.l.b16 %v2386
        %v2906 = vunpack.c.l.b16 %v2387
        %v2907 = vunpack.c.l.b16 %v2388
        %v2908 = vunpack.c.l.b16 %v2389
        %v2909 = vunpack.c.l.b16 %v2390
        %v2910 = vunpack.c.l.b16 %v2391
        %v2911 = vunpack.c.l.b16 %v2392
        %v2912 = vunpack.c.l.b16 %v2393
        %v2913 = vunpack.c.l.b16 %v2394
        %v2914 = vunpack.c.l.b16 %v2395
        %v2915 = vunpack.c.l.b16 %v2396
        %v2916 = vunpack.c.l.b16 %v2397
        %v2917 = vunpack.c.l.b16 %v2398
        %v2918 = vunpack.c.l.b16 %v2399
        %v2919 = vunpack.c.l.b16 %v2400
        %v2920 = vunpack.c.l.b16 %v2401
        %v2921 = vunpack.c.l.b16 %v2402
        %v2922 = vunpack.c.l.b16 %v2403
        %v2923 = vunpack.c.l.b16 %v2404
        %v2924 = vunpack.c.l.b16 %v2405
        %v2925 = vunpack.c.l.b16 %v2406
        %v2926 = vunpack.c.l.b16 %v2407
        %v2927 = vunpack.c.l.b16 %v2408
        %v2928 = vunpack.c.l.b16 %v2409
        %v2929 = vunpack.c.l.b16 %v2410
        %v2930 = vunpack.c.l.b16 %v2411
        %v2931 = vunpack.c.l.b16 %v2412
        %v2932 = vunpack.c.l.b16 %v2413
        %v2933 = vunpack.c.l.b16 %v2414
        %v2934 = vunpack.c.l.b16 %v2415
        %v2935 = vunpack.c.l.b16 %v2416
        %v2936 = vunpack.c.l.b16 %v2417
        %v2937 = vunpack.c.l.b16 %v2418
        %v2938 = vunpack.c.l.b16 %v2419
        %v2939 = vunpack.c.l.b16 %v2420
        %v2940 = vunpack.c.l.b16 %v2421
        %v2941 = vunpack.c.l.b16 %v2422
        %v2942 = vunpack.c.l.b16 %v2423
        %v2943 = vunpack.c.l.b16 %v2424
        %v2944 = vunpack.c.l.b16 %v2425
        %v2945 = vunpack.c.l.b16 %v2426
        %v2946 = vunpack.c.l.b16 %v2427
        %v2947 = vunpack.c.l.b16 %v2428
        %v2948 = vunpack.c.l.b16 %v2429
        %v2949 = vunpack.c.l.b16 %v2430
        %v2950 = vunpack.c.l.b16 %v2431
        %v2951 = vunpack.c.l.b16 %v2432
        %v2952 = vunpack.c.l.b16 %v2433
        %v2953 = vunpack.c.l.b16 %v2434
        %v2954 = vunpack.c.l.b16 %v2435
        %v2955 = vunpack.c.l.b16 %v2436
        %v2956 = vunpack.c.l.b16 %v2437
        %v2957 = vunpack.c.l.b16 %v2438
        %v2958 = vunpack.c.l.b16 %v2439
        %v2959 = vunpack.c.l.b16 %v2440
        %v2960 = vunpack.c.l.b16 %v2441
        %v2961 = vunpack.c.l.b16 %v2442
        %v2962 = vunpack.c.l.b16 %v2443
        %v2963 = vunpack.c.l.b16 %v2444
        %v2964 = vunpack.c.l.b16 %v2445
        %v2965 = vunpack.c.l.b16 %v2446
        %v2966 = vunpack.c.l.b16 %v2447
        %v2967 = vunpack.c.l.b16 %v2448
        %v2968 = vunpack.c.l.b16 %v2449
        %v2969 = vunpack.c.l.b16 %v2450
        %v2970 = vunpack.c.l.b16 %v2451
        %v2971 = vunpack.c.l.b16 %v2452
        %v2972 = vunpack.c.l.b16 %v2453
        %v2973 = vunpack.c.l.b16 %v2454
        %v2974 = vunpack.c.l.b16 %v2455
        %v2975 = vunpack.c.l.b16 %v2456
        %v2976 = vunpack.c.l.b16 %v2457
        %v2977 = vunpack.c.l.b16 %v2458
        %v2978 = vunpack.c.l.b16 %v2459
        %v2979 = vunpack.c.l.b16 %v2460
        %v2980 = vunpack.c.l.b16 %v2461
        %v2981 = vunpack.c.l.b16 %v2462
        %v2982 = vunpack.c.l.b16 %v2463
        %v2983 = vunpack.c.l.b16 %v2464
        %v2984 = vunpack.c.l.b16 %v2465
        %v2985 = vunpack.c.l.b16 %v2466
        %v2986 = vunpack.c.l.b16 %v2467
        %v2987 = vunpack.c.l.b16 %v2468
        %v2988 = vunpack.c.l.b16 %v2469
        %v2989 = vunpack.c.l.b16 %v2470
        %v2990 = vunpack.c.l.b16 %v2471
        %v2991 = vunpack.c.l.b16 %v2472
        %v2992 = vunpack.c.l.b16 %v2473
        %v2993 = vunpack.c.l.b16 %v2474
        %v2994 = vunpack.c.l.b16 %v2475
        %v2995 = vunpack.c.l.b16 %v2476
        %v2996 = vunpack.c.l.b16 %v2477
        %v2997 = vunpack.c.l.b16 %v2478
        %v2998 = vunpack.c.l.b16 %v2479
        %v2999 = vunpack.c.l.b16 %v2480
        %v3000 = vunpack.c.l.b16 %v2481
        %v3001 = vunpack.c.l.b16 %v2482
        %v3002 = vunpack.c.l.b16 %v2483
        %v3003 = vunpack.c.l.b16 %v2484
        %v3004 = vunpack.c.l.b16 %v2485
        %v3005 = vunpack.c.l.b16 %v2486
        %v3006 = vunpack.c.l.b16 %v2487
        %v3007 = vunpack.c.l.b16 %v2488
        %v3008 = vunpack.c.l.b16 %v2489
        %v3009 = vunpack.c.l.b16 %v2490
        %v3010 = vunpack.c.l.b16 %v2491
        %v3011 = vunpack.c.l.b16 %v2492
        %v3012 = vunpack.c.l.b16 %v2493
        %v3013 = vunpack.c.l.b16 %v2494
        %v3014 = vunpack.c.l.b16 %v2495
        %v3015 = vunpack.c.l.b16 %v2496
        %v3016 = vunpack.c.l.b16 %v2497
        %v3017 = vunpack.c.l.b16 %v2498
        %v3018 = vunpack.c.l.b16 %v2499
        %v3019 = vunpack.c.l.b16 %v2500
        %v3020 = vunpack.c.l.b16 %v2501
        %v3021 = vunpack.c.l.b16 %v2502
        %v3022 = vunpack.c.l.b16 %v2503
        %v3023 = vunpack.c.l.b16 %v2504
        %v3024 = vunpack.c.l.b16 %v2505
        %v3025 = vunpack.c.l.b16 %v2506
        %v3026 = vunpack.c.l.b16 %v2507
        %v3027 = vunpack.c.l.b16 %v2508
        %v3028 = vunpack.c.l.b16 %v2509
        %v3029 = vunpack.c.l.b16 %v2510
        %v3030 = vunpack.c.l.b16 %v2511
        %v3031 = vunpack.c.l.b16 %v2512
        %v3032 = vunpack.c.l.b16 %v2513
        %v3033 = vunpack.c.l.b16 %v2514
        %v3034 = vunpack.c.l.b16 %v2515
        %v3035 = vunpack.c.l.b16 %v2516
        %v3036 = vunpack.c.l.b16 %v2517
        %v3037 = vunpack.c.l.b16 %v2518
        %v3038 = vunpack.c.l.b16 %v2519
        %v3039 = vunpack.c.l.b16 %v2520
        %v3040 = vunpack.c.l.b16 %v2521
        %v3041 = vunpack.c.l.b16 %v2522
        %v3042 = vunpack.c.l.b16 %v2523
        %v3043 = vunpack.c.l.b16 %v2524
        %v3044 = vunpack.c.l.b16 %v2525
        %v3045 = vunpack.c.l.b16 %v2526
        %v3046 = vpack.c.b16 %v2791, %v2790
        %v3047 = vpack.c.b16 %v2793, %v2792
        %v3048 = vpack.c.b16 %v2795, %v2794
        %v3049 = vpack.c.b16 %v2797, %v2796
        %v3050 = vpack.c.b16 %v2799, %v2798
        %v3051 = vpack.c.b16 %v2801, %v2800
        %v3052 = vpack.c.b16 %v2803, %v2802
        %v3053 = vpack.c.b16 %v2805, %v2804
        %v3054 = vpack.c.b16 %v2807, %v2806
        %v3055 = vpack.c.b16 %v2809, %v2808
        %v3056 = vpack.c.b16 %v2811, %v2810
        %v3057 = vpack.c.b16 %v2813, %v2812
        %v3058 = vpack.c.b16 %v2815, %v2814
        %v3059 = vpack.c.b16 %v2817, %v2816
        %v3060 = vpack.c.b16 %v2819, %v2818
        %v3061 = vpack.c.b16 %v2821, %v2820
        %v3062 = vpack.c.b16 %v2823, %v2822
        %v3063 = vpack.c.b16 %v2825, %v2824
        %v3064 = vpack.c.b16 %v2827, %v2826
        %v3065 = vpack.c.b16 %v2829, %v2828
        %v3066 = vpack.c.b16 %v2831, %v2830
        %v3067 = vpack.c.b16 %v2833, %v2832
        %v3068 = vpack.c.b16 %v2835, %v2834
        %v3069 = vpack.c.b16 %v2837, %v2836
        %v3070 = vpack.c.b16 %v2839, %v2838
        %v3071 = vpack.c.b16 %v2841, %v2840
        %v3072 = vpack.c.b16 %v2843, %v2842
        %v3073 = vpack.c.b16 %v2845, %v2844
        %v3074 = vpack.c.b16 %v2847, %v2846
        %v3075 = vpack.c.b16 %v2849, %v2848
        %v3076 = vpack.c.b16 %v2851, %v2850
        %v3077 = vpack.c.b16 %v2853, %v2852
        %v3078 = vpack.c.b16 %v2855, %v2854
        %v3079 = vpack.c.b16 %v2857, %v2856
        %v3080 = vpack.c.b16 %v2859, %v2858
        %v3081 = vpack.c.b16 %v2861, %v2860
        %v3082 = vpack.c.b16 %v2863, %v2862
        %v3083 = vpack.c.b16 %v2865, %v2864
        %v3084 = vpack.c.b16 %v2867, %v2866
        %v3085 = vpack.c.b16 %v2869, %v2868
        %v3086 = vpack.c.b16 %v2871, %v2870
        %v3087 = vpack.c.b16 %v2873, %v2872
        %v3088 = vpack.c.b16 %v2875, %v2874
        %v3089 = vpack.c.b16 %v2877, %v2876
        %v3090 = vpack.c.b16 %v2879, %v2878
        %v3091 = vpack.c.b16 %v2881, %v2880
        %v3092 = vpack.c.b16 %v2883, %v2882
        %v3093 = vpack.c.b16 %v2885, %v2884
        %v3094 = vpack.c.b16 %v2887, %v2886
        %v3095 = vpack.c.b16 %v2889, %v2888
        %v3096 = vpack.c.b16 %v2891, %v2890
        %v3097 = vpack.c.b16 %v2893, %v2892
        %v3098 = vpack.c.b16 %v2895, %v2894
        %v3099 = vpack.c.b16 %v2897, %v2896
        %v3100 = vpack.c.b16 %v2899, %v2898
        %v3101 = vpack.c.b16 %v2901, %v2900
        %v3102 = vpack.c.b16 %v2903, %v2902
        %v3103 = vpack.c.b16 %v2905, %v2904
        %v3104 = vpack.c.b16 %v2907, %v2906
        %v3105 = vpack.c.b16 %v2909, %v2908
        %v3106 = vpack.c.b16 %v2911, %v2910
        %v3107 = vpack.c.b16 %v2913, %v2912
        %v3108 = vpack.c.b16 %v2915, %v2914
        %v3109 = vpack.c.b16 %v2917, %v2916
        %v3110 = vpack.c.b16 %v2919, %v2918
        %v3111 = vpack.c.b16 %v2921, %v2920
        %v3112 = vpack.c.b16 %v2923, %v2922
        %v3113 = vpack.c.b16 %v2925, %v2924
        %v3114 = vpack.c.b16 %v2927, %v2926
        %v3115 = vpack.c.b16 %v2929, %v2928
        %v3116 = vpack.c.b16 %v2931, %v2930
        %v3117 = vpack.c.b16 %v2933, %v2932
        %v3118 = vpack.c.b16 %v2935, %v2934
        %v3119 = vpack.c.b16 %v2937, %v2936
        %v3120 = vpack.c.b16 %v2939, %v2938
        %v3121 = vpack.c.b16 %v2941, %v2940
        %v3122 = vpack.c.b16 %v2943, %v2942
        %v3123 = vpack.c.b16 %v2945, %v2944
        %v3124 = vpack.c.b16 %v2947, %v2946
        %v3125 = vpack.c.b16 %v2949, %v2948
        %v3126 = vpack.c.b16 %v2951, %v2950
        %v3127 = vpack.c.b16 %v2953, %v2952
        %v3128 = vpack.c.b16 %v2955, %v2954
        %v3129 = vpack.c.b16 %v2957, %v2956
        %v3130 = vpack.c.b16 %v2959, %v2958
        %v3131 = vpack.c.b16 %v2961, %v2960
        %v3132 = vpack.c.b16 %v2963, %v2962
        %v3133 = vpack.c.b16 %v2965, %v2964
        %v3134 = vpack.c.b16 %v2967, %v2966
        %v3135 = vpack.c.b16 %v2969, %v2968
        %v3136 = vpack.c.b16 %v2971, %v2970
        %v3137 = vpack.c.b16 %v2973, %v2972
        %v3138 = vpack.c.b16 %v2975, %v2974
        %v3139 = vpack.c.b16 %v2977, %v2976
        %v3140 = vpack.c.b16 %v2979, %v2978
        %v3141 = vpack.c.b16 %v2981, %v2980
        %v3142 = vpack.c.b16 %v2983, %v2982
        %v3143 = vpack.c.b16 %v2985, %v2984
        %v3144 = vpack.c.b16 %v2987, %v2986
        %v3145 = vpack.c.b16 %v2989, %v2988
        %v3146 = vpack.c.b16 %v2991, %v2990
        %v3147 = vpack.c.b16 %v2993, %v2992
        %v3148 = vpack.c.b16 %v2995, %v2994
        %v3149 = vpack.c.b16 %v2997, %v2996
        %v3150 = vpack.c.b16 %v2999, %v2998
        %v3151 = vpack.c.b16 %v3001, %v3000
        %v3152 = vpack.c.b16 %v3003, %v3002
        %v3153 = vpack.c.b16 %v3005, %v3004
        %v3154 = vpack.c.b16 %v3007, %v3006
        %v3155 = vpack.c.b16 %v3009, %v3008
        %v3156 = vpack.c.b16 %v3011, %v3010
        %v3157 = vpack.c.b16 %v3013, %v3012
        %v3158 = vpack.c.b16 %v3015, %v3014
        %v3159 = vpack.c.b16 %v3017, %v3016
        %v3160 = vpack.c.b16 %v3019, %v3018
        %v3161 = vpack.c.b16 %v3021, %v3020
        %v3162 = vpack.c.b16 %v3023, %v3022
        %v3163 = vpack.c.b16 %v3025, %v3024
        %v3164 = vpack.c.b16 %v3027, %v3026
        %v3165 = vpack.c.b16 %v3029, %v3028
        %v3166 = vpack.c.b16 %v3031, %v3030
        %v3167 = vpack.c.b16 %v3033, %v3032
        %v3168 = vpack.c.b16 %v3035, %v3034
        %v3169 = vpack.c.b16 %v3037, %v3036
        %v3170 = vpack.c.b16 %v3039, %v3038
        %v3171 = vpack.c.b16 %v3041, %v3040
        %v3172 = vpack.c.b16 %v3043, %v3042
        %v3173 = vpack.c.b16 %v3045, %v3044
        %3302 = vmatprep.subr.bf16.mxu0 0
        %3303 = vmatpush1.bf16.msra.mxu0 %v3046
        %3304 = vmatprep.subr.bf16.mxu0 0
        %3305 = vmatpush1.bf16.msra.mxu0 %v3047
        %3306 = vmatprep.subr.bf16.mxu0 0
        %3307 = vmatpush1.bf16.msra.mxu0 %v3048
        %3308 = vmatprep.subr.bf16.mxu0 0
        %3309 = vmatpush1.bf16.msra.mxu0 %v3049
        %3310 = vmatprep.subr.bf16.mxu0 0
        %3311 = vmatpush1.bf16.msra.mxu0 %v3050
        %3312 = vmatprep.subr.bf16.mxu0 0
        %3313 = vmatpush1.bf16.msra.mxu0 %v3051
        %3314 = vmatprep.subr.bf16.mxu0 0
        %3315 = vmatpush1.bf16.msra.mxu0 %v3052
        %3316 = vmatprep.subr.bf16.mxu0 0
        %3317 = vmatpush1.bf16.msra.mxu0 %v3053
        %3318 = vmatprep.subr.bf16.mxu0 0
        %3319 = vmatpush1.bf16.msra.mxu0 %v3054
        %3320 = vmatprep.subr.bf16.mxu0 0
        %3321 = vmatpush1.bf16.msra.mxu0 %v3055
        %3322 = vmatprep.subr.bf16.mxu0 0
        %3323 = vmatpush1.bf16.msra.mxu0 %v3056
        %3324 = vmatprep.subr.bf16.mxu0 0
        %3325 = vmatpush1.bf16.msra.mxu0 %v3057
        %3326 = vmatprep.subr.bf16.mxu0 0
        %3327 = vmatpush1.bf16.msra.mxu0 %v3058
        %3328 = vmatprep.subr.bf16.mxu0 0
        %3329 = vmatpush1.bf16.msra.mxu0 %v3059
        %3330 = vmatprep.subr.bf16.mxu0 0
        %3331 = vmatpush1.bf16.msra.mxu0 %v3060
        %3332 = vmatprep.subr.bf16.mxu0 0
        %3333 = vmatpush1.bf16.msra.mxu0 %v3061
        %3334 = vmatprep.mubr.bf16.mxu0 %v2256
        %3335 = vmatmul.mubr.bf16.gmra.mrb[0].mxu0 %v2255
        %v3336 = vpop.f32.mrb[0].mxu0
        %v3337 = vadd.f32 %v2532, %v3336
        %v3338 = vpop.f32.mrb[0].mxu0
        %v3339 = vpop.f32.mrb[0].mxu0
        %v3340 = vpop.f32.mrb[0].mxu0
        %3341 = vdwg.mxu0
        %3342 = vmatprep.subr.bf16.mxu0 0
        %3343 = vmatpush1.bf16.msra.mxu0 %v3062
        %3344 = vmatprep.subr.bf16.mxu0 0
        %3345 = vmatpush1.bf16.msra.mxu0 %v3063
        %3346 = vmatprep.subr.bf16.mxu0 0
        %3347 = vmatpush1.bf16.msra.mxu0 %v3064
        %3348 = vmatprep.subr.bf16.mxu0 0
        %3349 = vmatpush1.bf16.msra.mxu0 %v3065
        %3350 = vmatprep.subr.bf16.mxu0 0
        %3351 = vmatpush1.bf16.msra.mxu0 %v3066
        %3352 = vmatprep.subr.bf16.mxu0 0
        %3353 = vmatpush1.bf16.msra.mxu0 %v3067
        %3354 = vmatprep.subr.bf16.mxu0 0
        %3355 = vmatpush1.bf16.msra.mxu0 %v3068
        %3356 = vmatprep.subr.bf16.mxu0 0
        %3357 = vmatpush1.bf16.msra.mxu0 %v3069
        %3358 = vmatprep.subr.bf16.mxu0 0
        %3359 = vmatpush1.bf16.msra.mxu0 %v3070
        %3360 = vmatprep.subr.bf16.mxu0 0
        %3361 = vmatpush1.bf16.msra.mxu0 %v3071
        %3362 = vmatprep.subr.bf16.mxu0 0
        %3363 = vmatpush1.bf16.msra.mxu0 %v3072
        %3364 = vmatprep.subr.bf16.mxu0 0
        %3365 = vmatpush1.bf16.msra.mxu0 %v3073
        %3366 = vmatprep.subr.bf16.mxu0 0
        %3367 = vmatpush1.bf16.msra.mxu0 %v3074
        %3368 = vmatprep.subr.bf16.mxu0 0
        %3369 = vmatpush1.bf16.msra.mxu0 %v3075
        %3370 = vmatprep.subr.bf16.mxu0 0
        %3371 = vmatpush1.bf16.msra.mxu0 %v3076
        %3372 = vmatprep.subr.bf16.mxu0 0
        %3373 = vmatpush1.bf16.msra.mxu0 %v3077
        %3374 = vmatprep.mubr.bf16.mxu0 %v2258
        %3375 = vmatmul.mubr.bf16.gmra.mrb[0].mxu0 %v2257
        %v3376 = vpop.f32.mrb[0].mxu0
        %v3377 = vadd.f32 %v3337, %v3376
        %v3378 = vpop.f32.mrb[0].mxu0
        %v3379 = vpop.f32.mrb[0].mxu0
        %v3380 = vpop.f32.mrb[0].mxu0
        %3381 = vdwg.mxu0
        %3382 = vmatprep.subr.bf16.mxu0 0
        %3383 = vmatpush1.bf16.msra.mxu0 %v3078
        %3384 = vmatprep.subr.bf16.mxu0 0
        %3385 = vmatpush1.bf16.msra.mxu0 %v3079
        %3386 = vmatprep.subr.bf16.mxu0 0
        %3387 = vmatpush1.bf16.msra.mxu0 %v3080
        %3388 = vmatprep.subr.bf16.mxu0 0
        %3389 = vmatpush1.bf16.msra.mxu0 %v3081
        %3390 = vmatprep.subr.bf16.mxu0 0
        %3391 = vmatpush1.bf16.msra.mxu0 %v3082
        %3392 = vmatprep.subr.bf16.mxu0 0
        %3393 = vmatpush1.bf16.msra.mxu0 %v3083
        %3394 = vmatprep.subr.bf16.mxu0 0
        %3395 = vmatpush1.bf16.msra.mxu0 %v3084
        %3396 = vmatprep.subr.bf16.mxu0 0
        %3397 = vmatpush1.bf16.msra.mxu0 %v3085
        %3398 = vmatprep.subr.bf16.mxu0 0
        %3399 = vmatpush1.bf16.msra.mxu0 %v3086
        %3400 = vmatprep.subr.bf16.mxu0 0
        %3401 = vmatpush1.bf16.msra.mxu0 %v3087
        %3402 = vmatprep.subr.bf16.mxu0 0
        %3403 = vmatpush1.bf16.msra.mxu0 %v3088
        %3404 = vmatprep.subr.bf16.mxu0 0
        %3405 = vmatpush1.bf16.msra.mxu0 %v3089
        %3406 = vmatprep.subr.bf16.mxu0 0
        %3407 = vmatpush1.bf16.msra.mxu0 %v3090
        %3408 = vmatprep.subr.bf16.mxu0 0
        %3409 = vmatpush1.bf16.msra.mxu0 %v3091
        %3410 = vmatprep.subr.bf16.mxu0 0
        %3411 = vmatpush1.bf16.msra.mxu0 %v3092
        %3412 = vmatprep.subr.bf16.mxu0 0
        %3413 = vmatpush1.bf16.msra.mxu0 %v3093
        %3414 = vmatprep.mubr.bf16.mxu0 %v2260
        %3415 = vmatmul.mubr.bf16.gmra.mrb[0].mxu0 %v2259
        %v3416 = vpop.f32.mrb[0].mxu0
        %v3417 = vadd.f32 %v3377, %v3416
        %v3418 = vpop.f32.mrb[0].mxu0
        %v3419 = vpop.f32.mrb[0].mxu0
        %v3420 = vpop.f32.mrb[0].mxu0
        %3421 = vdwg.mxu0
        %3422 = vmatprep.subr.bf16.mxu0 0
        %3423 = vmatpush1.bf16.msra.mxu0 %v3094
        %3424 = vmatprep.subr.bf16.mxu0 0
        %3425 = vmatpush1.bf16.msra.mxu0 %v3095
        %3426 = vmatprep.subr.bf16.mxu0 0
        %3427 = vmatpush1.bf16.msra.mxu0 %v3096
        %3428 = vmatprep.subr.bf16.mxu0 0
        %3429 = vmatpush1.bf16.msra.mxu0 %v3097
        %3430 = vmatprep.subr.bf16.mxu0 0
        %3431 = vmatpush1.bf16.msra.mxu0 %v3098
        %3432 = vmatprep.subr.bf16.mxu0 0
        %3433 = vmatpush1.bf16.msra.mxu0 %v3099
        %3434 = vmatprep.subr.bf16.mxu0 0
        %3435 = vmatpush1.bf16.msra.mxu0 %v3100
        %3436 = vmatprep.subr.bf16.mxu0 0
        %3437 = vmatpush1.bf16.msra.mxu0 %v3101
        %3438 = vmatprep.subr.bf16.mxu0 0
        %3439 = vmatpush1.bf16.msra.mxu0 %v3102
        %3440 = vmatprep.subr.bf16.mxu0 0
        %3441 = vmatpush1.bf16.msra.mxu0 %v3103
        %3442 = vmatprep.subr.bf16.mxu0 0
        %3443 = vmatpush1.bf16.msra.mxu0 %v3104
        %3444 = vmatprep.subr.bf16.mxu0 0
        %3445 = vmatpush1.bf16.msra.mxu0 %v3105
        %3446 = vmatprep.subr.bf16.mxu0 0
        %3447 = vmatpush1.bf16.msra.mxu0 %v3106
        %3448 = vmatprep.subr.bf16.mxu0 0
        %3449 = vmatpush1.bf16.msra.mxu0 %v3107
        %3450 = vmatprep.subr.bf16.mxu0 0
        %3451 = vmatpush1.bf16.msra.mxu0 %v3108
        %3452 = vmatprep.subr.bf16.mxu0 0
        %3453 = vmatpush1.bf16.msra.mxu0 %v3109
        %3454 = vmatprep.mubr.bf16.mxu0 %v2262
        %3455 = vmatmul.mubr.bf16.gmra.mrb[0].mxu0 %v2261
        %v3456 = vpop.f32.mrb[0].mxu0
        %v3457 = vadd.f32 %v3417, %v3456
        %v3458 = vpop.f32.mrb[0].mxu0
        %v3459 = vpop.f32.mrb[0].mxu0
        %v3460 = vpop.f32.mrb[0].mxu0
        %3461 = vdwg.mxu0
        %3462 = vmatprep.subr.bf16.mxu0 0
        %3463 = vmatpush1.bf16.msra.mxu0 %v3110
        %3464 = vmatprep.subr.bf16.mxu0 0
        %3465 = vmatpush1.bf16.msra.mxu0 %v3111
        %3466 = vmatprep.subr.bf16.mxu0 0
        %3467 = vmatpush1.bf16.msra.mxu0 %v3112
        %3468 = vmatprep.subr.bf16.mxu0 0
        %3469 = vmatpush1.bf16.msra.mxu0 %v3113
        %3470 = vmatprep.subr.bf16.mxu0 0
        %3471 = vmatpush1.bf16.msra.mxu0 %v3114
        %3472 = vmatprep.subr.bf16.mxu0 0
        %3473 = vmatpush1.bf16.msra.mxu0 %v3115
        %3474 = vmatprep.subr.bf16.mxu0 0
        %3475 = vmatpush1.bf16.msra.mxu0 %v3116
        %3476 = vmatprep.subr.bf16.mxu0 0
        %3477 = vmatpush1.bf16.msra.mxu0 %v3117
        %3478 = vmatprep.subr.bf16.mxu0 0
        %3479 = vmatpush1.bf16.msra.mxu0 %v3118
        %3480 = vmatprep.subr.bf16.mxu0 0
        %3481 = vmatpush1.bf16.msra.mxu0 %v3119
        %3482 = vmatprep.subr.bf16.mxu0 0
        %3483 = vmatpush1.bf16.msra.mxu0 %v3120
        %3484 = vmatprep.subr.bf16.mxu0 0
        %3485 = vmatpush1.bf16.msra.mxu0 %v3121
        %3486 = vmatprep.subr.bf16.mxu0 0
        %3487 = vmatpush1.bf16.msra.mxu0 %v3122
        %3488 = vmatprep.subr.bf16.mxu0 0
        %3489 = vmatpush1.bf16.msra.mxu0 %v3123
        %3490 = vmatprep.subr.bf16.mxu0 0
        %3491 = vmatpush1.bf16.msra.mxu0 %v3124
        %3492 = vmatprep.subr.bf16.mxu0 0
        %3493 = vmatpush1.bf16.msra.mxu0 %v3125
        %3494 = vmatprep.mubr.bf16.mxu0 %v2264
        %3495 = vmatmul.mubr.bf16.gmra.mrb[0].mxu0 %v2263
        %v3496 = vpop.f32.mrb[0].mxu0
        %v3497 = vadd.f32 %v3457, %v3496
        %v3498 = vpop.f32.mrb[0].mxu0
        %v3499 = vpop.f32.mrb[0].mxu0
        %v3500 = vpop.f32.mrb[0].mxu0
        %3501 = vdwg.mxu0
        %3502 = vmatprep.subr.bf16.mxu0 0
        %3503 = vmatpush1.bf16.msra.mxu0 %v3126
        %3504 = vmatprep.subr.bf16.mxu0 0
        %3505 = vmatpush1.bf16.msra.mxu0 %v3127
        %3506 = vmatprep.subr.bf16.mxu0 0
        %3507 = vmatpush1.bf16.msra.mxu0 %v3128
        %3508 = vmatprep.subr.bf16.mxu0 0
        %3509 = vmatpush1.bf16.msra.mxu0 %v3129
        %3510 = vmatprep.subr.bf16.mxu0 0
        %3511 = vmatpush1.bf16.msra.mxu0 %v3130
        %3512 = vmatprep.subr.bf16.mxu0 0
        %3513 = vmatpush1.bf16.msra.mxu0 %v3131
        %3514 = vmatprep.subr.bf16.mxu0 0
        %3515 = vmatpush1.bf16.msra.mxu0 %v3132
        %3516 = vmatprep.subr.bf16.mxu0 0
        %3517 = vmatpush1.bf16.msra.mxu0 %v3133
        %3518 = vmatprep.subr.bf16.mxu0 0
        %3519 = vmatpush1.bf16.msra.mxu0 %v3134
        %3520 = vmatprep.subr.bf16.mxu0 0
        %3521 = vmatpush1.bf16.msra.mxu0 %v3135
        %3522 = vmatprep.subr.bf16.mxu0 0
        %3523 = vmatpush1.bf16.msra.mxu0 %v3136
        %3524 = vmatprep.subr.bf16.mxu0 0
        %3525 = vmatpush1.bf16.msra.mxu0 %v3137
        %3526 = vmatprep.subr.bf16.mxu0 0
        %3527 = vmatpush1.bf16.msra.mxu0 %v3138
        %3528 = vmatprep.subr.bf16.mxu0 0
        %3529 = vmatpush1.bf16.msra.mxu0 %v3139
        %3530 = vmatprep.subr.bf16.mxu0 0
        %3531 = vmatpush1.bf16.msra.mxu0 %v3140
        %3532 = vmatprep.subr.bf16.mxu0 0
        %3533 = vmatpush1.bf16.msra.mxu0 %v3141
        %3534 = vmatprep.mubr.bf16.mxu0 %v2266
        %3535 = vmatmul.mubr.bf16.gmra.mrb[0].mxu0 %v2265
        %v3536 = vpop.f32.mrb[0].mxu0
        %v3537 = vadd.f32 %v3497, %v3536
        %v3538 = vpop.f32.mrb[0].mxu0
        %v3539 = vpop.f32.mrb[0].mxu0
        %v3540 = vpop.f32.mrb[0].mxu0
        %3541 = vdwg.mxu0
        %3542 = vmatprep.subr.bf16.mxu0 0
        %3543 = vmatpush1.bf16.msra.mxu0 %v3142
        %3544 = vmatprep.subr.bf16.mxu0 0
        %3545 = vmatpush1.bf16.msra.mxu0 %v3143
        %3546 = vmatprep.subr.bf16.mxu0 0
        %3547 = vmatpush1.bf16.msra.mxu0 %v3144
        %3548 = vmatprep.subr.bf16.mxu0 0
        %3549 = vmatpush1.bf16.msra.mxu0 %v3145
        %3550 = vmatprep.subr.bf16.mxu0 0
        %3551 = vmatpush1.bf16.msra.mxu0 %v3146
        %3552 = vmatprep.subr.bf16.mxu0 0
        %3553 = vmatpush1.bf16.msra.mxu0 %v3147
        %3554 = vmatprep.subr.bf16.mxu0 0
        %3555 = vmatpush1.bf16.msra.mxu0 %v3148
        %3556 = vmatprep.subr.bf16.mxu0 0
        %3557 = vmatpush1.bf16.msra.mxu0 %v3149
        %3558 = vmatprep.subr.bf16.mxu0 0
        %3559 = vmatpush1.bf16.msra.mxu0 %v3150
        %3560 = vmatprep.subr.bf16.mxu0 0
        %3561 = vmatpush1.bf16.msra.mxu0 %v3151
        %3562 = vmatprep.subr.bf16.mxu0 0
        %3563 = vmatpush1.bf16.msra.mxu0 %v3152
        %3564 = vmatprep.subr.bf16.mxu0 0
        %3565 = vmatpush1.bf16.msra.mxu0 %v3153
        %3566 = vmatprep.subr.bf16.mxu0 0
        %3567 = vmatpush1.bf16.msra.mxu0 %v3154
        %3568 = vmatprep.subr.bf16.mxu0 0
        %3569 = vmatpush1.bf16.msra.mxu0 %v3155
        %3570 = vmatprep.subr.bf16.mxu0 0
        %3571 = vmatpush1.bf16.msra.mxu0 %v3156
        %3572 = vmatprep.subr.bf16.mxu0 0
        %3573 = vmatpush1.bf16.msra.mxu0 %v3157
        %3574 = vmatprep.mubr.bf16.mxu0 %v2268
        %3575 = vmatmul.mubr.bf16.gmra.mrb[0].mxu0 %v2267
        %v3576 = vpop.f32.mrb[0].mxu0
        %v3577 = vadd.f32 %v3537, %v3576
        %v3578 = vpop.f32.mrb[0].mxu0
        %v3579 = vpop.f32.mrb[0].mxu0
        %v3580 = vpop.f32.mrb[0].mxu0
        %3581 = vdwg.mxu0
        %3582 = vmatprep.subr.bf16.mxu0 0
        %3583 = vmatpush1.bf16.msra.mxu0 %v3158
        %3584 = vmatprep.subr.bf16.mxu0 0
        %3585 = vmatpush1.bf16.msra.mxu0 %v3159
        %3586 = vmatprep.subr.bf16.mxu0 0
        %3587 = vmatpush1.bf16.msra.mxu0 %v3160
        %3588 = vmatprep.subr.bf16.mxu0 0
        %3589 = vmatpush1.bf16.msra.mxu0 %v3161
        %3590 = vmatprep.subr.bf16.mxu0 0
        %3591 = vmatpush1.bf16.msra.mxu0 %v3162
        %3592 = vmatprep.subr.bf16.mxu0 0
        %3593 = vmatpush1.bf16.msra.mxu0 %v3163
        %3594 = vmatprep.subr.bf16.mxu0 0
        %3595 = vmatpush1.bf16.msra.mxu0 %v3164
        %3596 = vmatprep.subr.bf16.mxu0 0
        %3597 = vmatpush1.bf16.msra.mxu0 %v3165
        %3598 = vmatprep.subr.bf16.mxu0 0
        %3599 = vmatpush1.bf16.msra.mxu0 %v3166
        %3600 = vmatprep.subr.bf16.mxu0 0
        %3601 = vmatpush1.bf16.msra.mxu0 %v3167
        %3602 = vmatprep.subr.bf16.mxu0 0
        %3603 = vmatpush1.bf16.msra.mxu0 %v3168
        %3604 = vmatprep.subr.bf16.mxu0 0
        %3605 = vmatpush1.bf16.msra.mxu0 %v3169
        %3606 = vmatprep.subr.bf16.mxu0 0
        %3607 = vmatpush1.bf16.msra.mxu0 %v3170
        %3608 = vmatprep.subr.bf16.mxu0 0
        %3609 = vmatpush1.bf16.msra.mxu0 %v3171
        %3610 = vmatprep.subr.bf16.mxu0 0
        %3611 = vmatpush1.bf16.msra.mxu0 %v3172
        %3612 = vmatprep.subr.bf16.mxu0 0
        %3613 = vmatpush1.bf16.msra.mxu0 %v3173
        %3614 = vmatprep.mubr.bf16.mxu0 %v2270
        %3615 = vmatmul.mubr.bf16.gmra.mrb[0].mxu0 %v2269
        %v3616 = vpop.f32.mrb[0].mxu0
        %v3617 = vadd.f32 %v3577, %v3616
        %v3618 = vpop.f32.mrb[0].mxu0
        %v3619 = vpop.f32.mrb[0].mxu0
        %v3620 = vpop.f32.mrb[0].mxu0
        %3621 = vdwg.mxu0
        %v3622 = vadd.f32 %v3617, %v1630
        %v3623 = vsel %vm686, %v3622, 0.0
        %3624 = vadd.xlane.f32.xlu0 %v3623
        %v3625 = vpop.xlane.xlu0 %3624
        %v3626 = vmul.f32 %v3625, %v1112
        %v3627 = vsub.f32 %v3622, %v3626
        %v3628 = vmul.f32 %v3627, %v3627
        %v3629 = vsel %vm686, %v3628, 0.0
        %3630 = vadd.xlane.f32.xlu0 %v3629
        %v3631 = vpop.xlane.xlu0 %3630
        %v3632 = vmul.f32 %v3631, %v1112
        %v3633 = vadd.f32 %v3632, 1e-06
        %v3634 = vrsqrt.pop %v3633
        %v3635 = vmul.f32 %v3627, %v3634
        %v3636 = vld [vmem:[%s16] sm:$0x1]
        %v3638 = vlaneseq
        %v3639 = vshrl.u32 %v3638, 7
        %v3640 = vsub.s32 0, %v3639
        %v3641 = vrot.slane %v3636, %v3640
        %v3643 = vmul.f32 %v3635, %v3641
        %v3644 = vld [vmem:[%s17] sm:$0x1]
        %v3646 = vlaneseq
        %v3647 = vshrl.u32 %v3646, 7
        %v3648 = vsub.s32 0, %v3647
        %v3649 = vrot.slane %v3644, %v3648
        %v3651 = vadd.f32 %v3643, %v3649
        %v3652 = vpack.c.bf16 %v3651, %v3651
        %vm3653 = vcmask 257024
        %3654 = vst.msk [vmem:[%s642] sm:$0xf] %vm3653, %v3652
        %p3655 = scmp.lt.s32.totalorder %s34, 1
        %s3656 = scalar_select %p3655, %s34, 1
        %s3657 = smul.addr %s3656, 4
        %s3658 = scalar_lea.vmem %s18, %s3657
        %s3659 = sand.u32 %s461, 1
        %s3660 = scalar_lea.sflag [#allocation3], %s3659
        %s3661 = sand.u32 %s461, 1
        %s3662 = smul.addr %s3661, 16
        %s3663 = scalar_lea.vmem [#allocation2], %s3662
        // Predicated region
        $region93: #{transformer_forward.5} parent=91 // pred_check
          %p3664 = pneg %p445
        $region94: #{transformer_forward.5} parent=91 // pred_check_branch
          %3666 = sbr.rel (%p3664) target = $region96
        $region95: #{transformer_forward.5} parent=91 // pred_region
          _
        $region96: #{transformer_forward.5} parent=91 // pred_fallthru
          _
        // Predicated region
        $region97: #{transformer_forward.5} parent=91 // pred_check
          %p3667 = pneg %p471
        $region98: #{transformer_forward.5} parent=91 // pred_check_branch
          %3669 = sbr.rel (%p3667) target = $region100
        $region99: #{transformer_forward.5} parent=91 // pred_region
          %s3671 = ssub.s32 256, 256
          %3672 = vsyncadd %s3660, %s3671
          %s3673 = smul.addr %s34, 2
          %s3674 = smul.addr %s3673, 128
          %s3675 = scalar_lea.hbm %s19, %s3674
          %s3676 = sshll.u32 %s3663, 4
          %s3677 = int_to_ptr.vmem [resolvable:$true] %s3676
          %3682 = dma.vmem_to_hbm [thread:$0]  %s3677, 256, %s3675, %s3660, 128, 128, 8
        $region100: #{transformer_forward.5} parent=91 // pred_fallthru
          _
      $region92: #{transformer_forward.5} parent=5 // pred_fallthru
        _
      %p3683 = scmp.le.s32.totalorder 2, %s29
      // Predicated region
      $region101: #{transformer_forward.5} parent=5 // pred_check
        %p3684 = pneg %p3683
      $region102: #{transformer_forward.5} parent=5 // pred_check_branch
        %3686 = sbr.rel (%p3684) target = $region104
      $region103: #{transformer_forward.5} parent=5 // pred_region
        %s3687 = ssub.s32 %s29, 2
        // Predicated region
        $region105: #{transformer_forward.5} parent=103 // pred_check
          %p3688 = pneg %p451
        $region106: #{transformer_forward.5} parent=103 // pred_check_branch
          %3690 = sbr.rel (%p3688) target = $region108
        $region107: #{transformer_forward.5} parent=103 // pred_region
          %p3691 = scmp.lt.s32.totalorder %s35, 1
          %s3692 = scalar_select %p3691, %s35, 1
          %s3693 = smul.addr %s3692, 4
          %s3694 = scalar_lea.vmem %s18, %s3693
        $region108: #{transformer_forward.5} parent=103 // pred_fallthru
          _
        // Predicated region
        $region109: #{transformer_forward.5} parent=103 // pred_check
          %p3695 = pneg %p477
        $region110: #{transformer_forward.5} parent=103 // pred_check_branch
          %3697 = sbr.rel (%p3695) target = $region112
        $region111: #{transformer_forward.5} parent=103 // pred_region
          %s3698 = sand.u32 %s462, 1
          %s3699 = scalar_lea.sflag [#allocation3], %s3698
          %s3700 = sand.u32 %s462, 1
          %s3701 = smul.addr %s3700, 16
          %s3702 = scalar_lea.vmem [#allocation2], %s3701
          %3703 = dma.done %s3699, 256
        $region112: #{transformer_forward.5} parent=103 // pred_fallthru
          _
      $region104: #{transformer_forward.5} parent=5 // pred_fallthru
        _
    $region6: #{transformer_forward.5} parent=1 // loop_footer
      %s33 = sadd.s32 1, %s29
    $region7: #{transformer_forward.5} parent=1 // loop_footer_branch
      %28 = sbr.rel target = $region3
    $region8: #{transformer_forward.5} parent=1 // loop_exit
      _
    %3704 = vsyncpa [#allocation3], 1
    %s3705 = scalar_lea.sflag [#allocation3], 1
    %3706 = vsyncpa %s3705, 1

</llo_original>
